<compile_context>
chip_gen: v7x
topology: tpu7x:2x2x1
jax: 0.10.0
libtpu: 0.0.40
codegen_flags: <defaults>
</compile_context>

<pallas_src>
import jax
import jax.numpy as jnp
from jax.experimental import pallas as pl
from jax.experimental.pallas import tpu as pltpu


def _round_up(v, m):
    return (v + m - 1) // m * m


def _twolayers_kernel(g_ref, w1_ref, b1_ref, w2_ref, b2_ref, o_ref,
                      padc_ref, padm_ref):
    # g_ref:    (1, H, W, Cin)  gathered input (NHWC), f32
    # w1_ref:   (9*Cin, Cmid)   im2col-flattened conv1 weight, bf16
    # b1_ref:   (1, Cmid)       f32
    # w2_ref:   (9*Cmid, 1)     im2col-flattened conv2 weight, bf16
    # b2_ref:   (1, 1)          f32
    # o_ref:    (1, H*W, 1)     f32 output
    # padc_ref: (H+2, Wp, Cin)  zero-padded scratch for conv1 (Wp = roundup(W+2, 8))
    # padm_ref: (H+2, Wp, Cmid) zero-padded scratch for conv2
    H, W, Cin = g_ref.shape[1], g_ref.shape[2], g_ref.shape[3]
    Cmid = w1_ref.shape[1]
    HW = H * W

    def zero_pad_border(ref):
        # Only the halo needs zeroing: the interior [1:H+1, 1:W+1, :] is fully
        # overwritten every grid step.  Re-zeroing every step (instead of only at
        # program_id==0) keeps the kernel correct if the batch axis is sharded
        # across TensorCores; the border is tiny.
        h2, wp, c = ref.shape
        ref[0:1, :, :] = jnp.zeros((1, wp, c), ref.dtype)
        ref[H + 1:H + 2, :, :] = jnp.zeros((1, wp, c), ref.dtype)
        ref[:, 0:1, :] = jnp.zeros((h2, 1, c), ref.dtype)
        ref[:, W + 1:wp, :] = jnp.zeros((h2, wp - (W + 1), c), ref.dtype)

    def conv3x3_im2col(pad_ref, w_flat, c):
        # Gather the 9 shifted views, lane-concatenate into (H*W, 9*c) and do a
        # single MXU matmul with the (9*c, cout) flattened weight (bf16 operands,
        # f32 accumulation).
        cols = []
        for dy in range(3):
            for dx in range(3):
                cols.append(pad_ref[dy:dy + H, dx:dx + W, :].reshape(HW, c))
        patches = jnp.concatenate(cols, axis=1).astype(w_flat.dtype)  # (HW, 9c)
        return jnp.dot(patches, w_flat, preferred_element_type=jnp.float32)

    zero_pad_border(padc_ref)
    zero_pad_border(padm_ref)

    # ---- tanh0 (on the gathered NHWC tile) ----
    padc_ref[1:H + 1, 1:W + 1, :] = jnp.tanh(g_ref[0])

    # ---- conv1 (3x3, Cin -> Cmid) + bias + ReLU ----
    h = conv3x3_im2col(padc_ref, w1_ref[...], Cin) + b1_ref[...]      # (HW, Cmid) f32
    h = jnp.maximum(h, 0.0)
    padm_ref[1:H + 1, 1:W + 1, :] = h.reshape(H, W, Cmid)

    # ---- conv2 (3x3, Cmid -> 1) + bias ----
    y = conv3x3_im2col(padm_ref, w2_ref[...], Cmid) + b2_ref[...]     # (HW, 1) f32
    o_ref[0] = y.astype(o_ref.dtype)


@jax.jit
def twolayersnetsd_forward(x, ttds_x, ttds_y, w1, b1, w2, b2):
    """x: (N, X, Y, 128) f32.  ttds_x/ttds_y: (H, W) int32 index maps.
    w1: (3,3,128,64) HWIO, b1: (64,), w2: (3,3,64,1) HWIO, b2: (1,).
    Returns (N, 1, H, W), matching the PyTorch module's NCHW output."""
    N, _, _, Cin = x.shape
    H, W = ttds_x.shape
    Cmid = w1.shape[-1]
    HW = H * W
    Wp = _round_up(W + 2, 8)

    # Data-dependent gather (exact) + layout: result is already NHWC, which is the
    # lane-dense layout the kernel wants (Cin = 128 lanes).
    g = x[:, ttds_x, ttds_y].astype(jnp.float32)                      # (N, H, W, Cin)

    # im2col-flattened weights; bf16 halves weight HBM/VMEM traffic, matmuls
    # still accumulate in f32.
    w1f = w1.reshape(9 * Cin, Cmid).astype(jnp.bfloat16)
    w2f = w2.reshape(9 * Cmid, 1).astype(jnp.bfloat16)
    b1r = b1.reshape(1, Cmid).astype(jnp.float32)
    b2r = b2.reshape(1, 1).astype(jnp.float32)

    cost = pl.CostEstimate(
        flops=2 * N * HW * 9 * (Cin * Cmid + Cmid * 1),
        transcendentals=N * HW * Cin,                                  # tanh
        bytes_accessed=(g.size * 4 + w1f.size * 2 + w2f.size * 2 +
                        b1r.size * 4 + b2r.size * 4 + N * HW * 4))

    out = pl.pallas_call(
        _twolayers_kernel,
        out_shape=jax.ShapeDtypeStruct((N, HW, 1), jnp.float32),
        grid=(N,),
        in_specs=[
            pl.BlockSpec((1, H, W, Cin), lambda n: (n, 0, 0, 0)),
            pl.BlockSpec((9 * Cin, Cmid), lambda n: (0, 0)),
            pl.BlockSpec((1, Cmid), lambda n: (0, 0)),
            pl.BlockSpec((9 * Cmid, 1), lambda n: (0, 0)),
            pl.BlockSpec((1, 1), lambda n: (0, 0)),
        ],
        out_specs=pl.BlockSpec((1, HW, 1), lambda n: (n, 0, 0)),
        scratch_shapes=[
            pltpu.VMEM((H + 2, Wp, Cin), jnp.float32),
            pltpu.VMEM((H + 2, Wp, Cmid), jnp.float32),
        ],
        compiler_params=pltpu.CompilerParams(
            dimension_semantics=("parallel",)),
        cost_estimate=cost,
    )(g, w1f, b1r, w2f, b2r)

    # (N, H*W, 1) -> (N, 1, H, W): the 1-channel output is tiny, reshape in the wrapper.
    return out.reshape(N, H, W, 1).transpose(0, 3, 1, 2)


# ---------------- pure-JAX f32 reference (for correctness check) ----------------
def _conv3x3_ref(x, w, b):
    out = jax.lax.conv_general_dilated(
        x, w, window_strides=(1, 1), padding="SAME",
        dimension_numbers=("NHWC", "HWIO", "NHWC"),
        precision=jax.lax.Precision.HIGHEST)
    return out + b.reshape(1, 1, 1, -1)


def reference_forward(x, ttds_x, ttds_y, w1, b1, w2, b2):
    g = jnp.tanh(x[:, ttds_x, ttds_y])                # (N, H, W, 128)
    h = jnp.maximum(_conv3x3_ref(g, w1, b1), 0.0)     # (N, H, W, 64)
    y = _conv3x3_ref(h, w2, b2)                       # (N, H, W, 1)
    return jnp.transpose(y, (0, 3, 1, 2))             # (N, 1, H, W)


if __name__ == "__main__":
    key = jax.random.PRNGKey(0)
    ks = jax.random.split(key, 7)

    # Small shapes consistent with the module: Cin=128 / Cmid=64 / Cout=1 are fixed
    # by conv1/conv2; source grid 18x18, gathered output grid 16x16, batch 2.
    N, X, Y, Cin, Cmid = 2, 18, 18, 128, 64
    H, W = 16, 16

    x = jax.random.normal(ks[0], (N, X, Y, Cin), jnp.float32)
    ttds_x = jax.random.randint(ks[1], (H, W), 0, X, dtype=jnp.int32)
    ttds_y = jax.random.randint(ks[2], (H, W), 0, Y, dtype=jnp.int32)

    # Conv parameters (HWIO), scaled roughly like PyTorch's default init.
    w1 = jax.random.normal(ks[3], (3, 3, Cin, Cmid), jnp.float32) * 0.03
    b1 = jax.random.normal(ks[4], (Cmid,), jnp.float32) * 0.03
    w2 = jax.random.normal(ks[5], (3, 3, Cmid, 1), jnp.float32) * 0.04
    b2 = jax.random.normal(ks[6], (1,), jnp.float32) * 0.04

    out = twolayersnetsd_forward(x, ttds_x, ttds_y, w1, b1, w2, b2)
    out = jax.block_until_ready(out)

    ref = reference_forward(x, ttds_x, ttds_y, w1, b1, w2, b2)
    err = float(jnp.max(jnp.abs(out - ref)))
    # Tolerance accounts for bf16 MXU operands (f32 accumulation) vs the f32
    # HIGHEST-precision reference; expected max-abs error is a few 1e-3 here.
    assert err < 2e-2, f"mismatch vs reference: max abs err = {err}"
    print("KERNEL_OK")
</pallas_src>

<mosaic_0001>
module attributes {stable_mosaic.version = 11 : i64} {
  func.func @_twolayers_kernel(%arg0: i32, %arg1: memref<1x16x16x128xf32, #tpu.memory_space<vmem>>, %arg2: memref<1152x64xbf16, #tpu.memory_space<vmem>>, %arg3: memref<1x64xf32, #tpu.memory_space<vmem>>, %arg4: memref<576x1xbf16, #tpu.memory_space<vmem>>, %arg5: memref<1x1xf32, #tpu.memory_space<vmem>>, %arg6: memref<1x256x1xf32, #tpu.memory_space<vmem>>, %arg7: memref<18x24x128xf32, #tpu.memory_space<vmem>>, %arg8: memref<18x24x64xf32, #tpu.memory_space<vmem>>) attributes {dimension_semantics = [#tpu.dimension_semantics<parallel>], iteration_bounds = array<i64: 2>, scalar_prefetch = 0 : i64, scratch_operands = 2 : i64, tpu.core_type = #tpu.core_type<tc>, window_params = [{transform_indices = @transform_0, window_bounds = array<i64: 1, 16, 16, 128>}, {pipeline_mode = #tpu.pipeline_mode<synchronous>, transform_indices = @transform_1, window_bounds = array<i64: 1152, 64>}, {pipeline_mode = #tpu.pipeline_mode<synchronous>, transform_indices = @transform_2, window_bounds = array<i64: 1, 64>}, {pipeline_mode = #tpu.pipeline_mode<synchronous>, transform_indices = @transform_3, window_bounds = array<i64: 576, 1>}, {pipeline_mode = #tpu.pipeline_mode<synchronous>, transform_indices = @transform_4, window_bounds = array<i64: 1, 1>}, {transform_indices = @transform_5, window_bounds = array<i64: 1, 256, 1>}]} {
    %cst = arith.constant 0.000000e+00 : f32
    %0 = vector.broadcast %cst : f32 to vector<1x24x128xf32>
    %c0 = arith.constant 0 : index
    %c0_0 = arith.constant 0 : index
    %c0_1 = arith.constant 0 : index
    %1 = vector.load %arg7[%c0, %c0_0, %c0_1] : memref<18x24x128xf32, #tpu.memory_space<vmem>>, vector<1x24x128xf32>
    tpu.vector_store %arg7[%c0, %c0_0, %c0_1], %0 {strides = array<i32>} : memref<18x24x128xf32, #tpu.memory_space<vmem>>, vector<1x24x128xf32>,
    %cst_2 = arith.constant 0.000000e+00 : f32
    %2 = vector.broadcast %cst_2 : f32 to vector<1x24x128xf32>
    %c17 = arith.constant 17 : index
    %c0_3 = arith.constant 0 : index
    %c0_4 = arith.constant 0 : index
    %3 = vector.load %arg7[%c17, %c0_3, %c0_4] : memref<18x24x128xf32, #tpu.memory_space<vmem>>, vector<1x24x128xf32>
    tpu.vector_store %arg7[%c17, %c0_3, %c0_4], %2 {strides = array<i32>} : memref<18x24x128xf32, #tpu.memory_space<vmem>>, vector<1x24x128xf32>,
    %cst_5 = arith.constant 0.000000e+00 : f32
    %4 = vector.broadcast %cst_5 : f32 to vector<18x1x128xf32>
    %c0_6 = arith.constant 0 : index
    %c0_7 = arith.constant 0 : index
    %c0_8 = arith.constant 0 : index
    %5 = vector.load %arg7[%c0_6, %c0_7, %c0_8] : memref<18x24x128xf32, #tpu.memory_space<vmem>>, vector<18x1x128xf32>
    tpu.vector_store %arg7[%c0_6, %c0_7, %c0_8], %4 {strides = array<i32>} : memref<18x24x128xf32, #tpu.memory_space<vmem>>, vector<18x1x128xf32>,
    %cst_9 = arith.constant 0.000000e+00 : f32
    %6 = vector.broadcast %cst_9 : f32 to vector<18x7x128xf32>
    %c0_10 = arith.constant 0 : index
    %c17_11 = arith.constant 17 : index
    %c0_12 = arith.constant 0 : index
    %7 = vector.load %arg7[%c0_10, %c17_11, %c0_12] : memref<18x24x128xf32, #tpu.memory_space<vmem>>, vector<18x7x128xf32>
    tpu.vector_store %arg7[%c0_10, %c17_11, %c0_12], %6 {strides = array<i32>} : memref<18x24x128xf32, #tpu.memory_space<vmem>>, vector<18x7x128xf32>,
    %cst_13 = arith.constant 0.000000e+00 : f32
    %8 = vector.broadcast %cst_13 : f32 to vector<1x24x64xf32>
    %c0_14 = arith.constant 0 : index
    %c0_15 = arith.constant 0 : index
    %c0_16 = arith.constant 0 : index
    %9 = vector.load %arg8[%c0_14, %c0_15, %c0_16] : memref<18x24x64xf32, #tpu.memory_space<vmem>>, vector<1x24x64xf32>
    tpu.vector_store %arg8[%c0_14, %c0_15, %c0_16], %8 {strides = array<i32>} : memref<18x24x64xf32, #tpu.memory_space<vmem>>, vector<1x24x64xf32>,
    %cst_17 = arith.constant 0.000000e+00 : f32
    %10 = vector.broadcast %cst_17 : f32 to vector<1x24x64xf32>
    %c17_18 = arith.constant 17 : index
    %c0_19 = arith.constant 0 : index
    %c0_20 = arith.constant 0 : index
    %11 = vector.load %arg8[%c17_18, %c0_19, %c0_20] : memref<18x24x64xf32, #tpu.memory_space<vmem>>, vector<1x24x64xf32>
    tpu.vector_store %arg8[%c17_18, %c0_19, %c0_20], %10 {strides = array<i32>} : memref<18x24x64xf32, #tpu.memory_space<vmem>>, vector<1x24x64xf32>,
    %cst_21 = arith.constant 0.000000e+00 : f32
    %12 = vector.broadcast %cst_21 : f32 to vector<18x1x64xf32>
    %c0_22 = arith.constant 0 : index
    %c0_23 = arith.constant 0 : index
    %c0_24 = arith.constant 0 : index
    %13 = vector.load %arg8[%c0_22, %c0_23, %c0_24] : memref<18x24x64xf32, #tpu.memory_space<vmem>>, vector<18x1x64xf32>
    tpu.vector_store %arg8[%c0_22, %c0_23, %c0_24], %12 {strides = array<i32>} : memref<18x24x64xf32, #tpu.memory_space<vmem>>, vector<18x1x64xf32>,
    %cst_25 = arith.constant 0.000000e+00 : f32
    %14 = vector.broadcast %cst_25 : f32 to vector<18x7x64xf32>
    %c0_26 = arith.constant 0 : index
    %c17_27 = arith.constant 17 : index
    %c0_28 = arith.constant 0 : index
    %15 = vector.load %arg8[%c0_26, %c17_27, %c0_28] : memref<18x24x64xf32, #tpu.memory_space<vmem>>, vector<18x7x64xf32>
    tpu.vector_store %arg8[%c0_26, %c17_27, %c0_28], %14 {strides = array<i32>} : memref<18x24x64xf32, #tpu.memory_space<vmem>>, vector<18x7x64xf32>,
    %c0_29 = arith.constant 0 : index
    %c0_30 = arith.constant 0 : index
    %c0_31 = arith.constant 0 : index
    %c0_32 = arith.constant 0 : index
    %16 = vector.load %arg1[%c0_29, %c0_30, %c0_31, %c0_32] : memref<1x16x16x128xf32, #tpu.memory_space<vmem>>, vector<1x16x16x128xf32>
    %17 = vector.shape_cast %16 : vector<1x16x16x128xf32> to vector<16x16x128xf32>
    %18 = math.tanh %17 : vector<16x16x128xf32>
    %c1 = arith.constant 1 : index
    %c1_33 = arith.constant 1 : index
    %c0_34 = arith.constant 0 : index
    %19 = vector.load %arg7[%c1, %c1_33, %c0_34] : memref<18x24x128xf32, #tpu.memory_space<vmem>>, vector<16x16x128xf32>
    tpu.vector_store %arg7[%c1, %c1_33, %c0_34], %18 {strides = array<i32>} : memref<18x24x128xf32, #tpu.memory_space<vmem>>, vector<16x16x128xf32>,
    %c0_35 = arith.constant 0 : index
    %c0_36 = arith.constant 0 : index
    %20 = vector.load %arg2[%c0_35, %c0_36] : memref<1152x64xbf16, #tpu.memory_space<vmem>>, vector<1152x64xbf16>
    %c0_37 = arith.constant 0 : index
    %c0_38 = arith.constant 0 : index
    %c0_39 = arith.constant 0 : index
    %21 = vector.load %arg7[%c0_37, %c0_38, %c0_39] : memref<18x24x128xf32, #tpu.memory_space<vmem>>, vector<16x16x128xf32>
    %22 = vector.shape_cast %21 : vector<16x16x128xf32> to vector<256x128xf32>
    %c0_40 = arith.constant 0 : index
    %c1_41 = arith.constant 1 : index
    %c0_42 = arith.constant 0 : index
    %23 = vector.load %arg7[%c0_40, %c1_41, %c0_42] : memref<18x24x128xf32, #tpu.memory_space<vmem>>, vector<16x16x128xf32>
    %24 = vector.shape_cast %23 : vector<16x16x128xf32> to vector<256x128xf32>
    %c0_43 = arith.constant 0 : index
    %c2 = arith.constant 2 : index
    %c0_44 = arith.constant 0 : index
    %25 = vector.load %arg7[%c0_43, %c2, %c0_44] : memref<18x24x128xf32, #tpu.memory_space<vmem>>, vector<16x16x128xf32>
    %26 = vector.shape_cast %25 : vector<16x16x128xf32> to vector<256x128xf32>
    %c1_45 = arith.constant 1 : index
    %c0_46 = arith.constant 0 : index
    %c0_47 = arith.constant 0 : index
    %27 = vector.load %arg7[%c1_45, %c0_46, %c0_47] : memref<18x24x128xf32, #tpu.memory_space<vmem>>, vector<16x16x128xf32>
    %28 = vector.shape_cast %27 : vector<16x16x128xf32> to vector<256x128xf32>
    %c1_48 = arith.constant 1 : index
    %c1_49 = arith.constant 1 : index
    %c0_50 = arith.constant 0 : index
    %29 = vector.load %arg7[%c1_48, %c1_49, %c0_50] : memref<18x24x128xf32, #tpu.memory_space<vmem>>, vector<16x16x128xf32>
    %30 = vector.shape_cast %29 : vector<16x16x128xf32> to vector<256x128xf32>
    %c1_51 = arith.constant 1 : index
    %c2_52 = arith.constant 2 : index
    %c0_53 = arith.constant 0 : index
    %31 = vector.load %arg7[%c1_51, %c2_52, %c0_53] : memref<18x24x128xf32, #tpu.memory_space<vmem>>, vector<16x16x128xf32>
    %32 = vector.shape_cast %31 : vector<16x16x128xf32> to vector<256x128xf32>
    %c2_54 = arith.constant 2 : index
    %c0_55 = arith.constant 0 : index
    %c0_56 = arith.constant 0 : index
    %33 = vector.load %arg7[%c2_54, %c0_55, %c0_56] : memref<18x24x128xf32, #tpu.memory_space<vmem>>, vector<16x16x128xf32>
    %34 = vector.shape_cast %33 : vector<16x16x128xf32> to vector<256x128xf32>
    %c2_57 = arith.constant 2 : index
    %c1_58 = arith.constant 1 : index
    %c0_59 = arith.constant 0 : index
    %35 = vector.load %arg7[%c2_57, %c1_58, %c0_59] : memref<18x24x128xf32, #tpu.memory_space<vmem>>, vector<16x16x128xf32>
    %36 = vector.shape_cast %35 : vector<16x16x128xf32> to vector<256x128xf32>
    %c2_60 = arith.constant 2 : index
    %c2_61 = arith.constant 2 : index
    %c0_62 = arith.constant 0 : index
    %37 = vector.load %arg7[%c2_60, %c2_61, %c0_62] : memref<18x24x128xf32, #tpu.memory_space<vmem>>, vector<16x16x128xf32>
    %38 = vector.shape_cast %37 : vector<16x16x128xf32> to vector<256x128xf32>
    %39 = tpu.concatenate %22, %24, %26, %28, %30, %32, %34, %36, %38 in 1 : vector<256x128xf32>, vector<256x128xf32>, vector<256x128xf32>, vector<256x128xf32>, vector<256x128xf32>, vector<256x128xf32>, vector<256x128xf32>, vector<256x128xf32>, vector<256x128xf32> -> vector<256x1152xf32>
    %40 = arith.truncf %39 : vector<256x1152xf32> to vector<256x1152xbf16>
    %cst_63 = arith.constant dense<0.000000e+00> : vector<256x64xf32>
    %41 = tpu.matmul %40, %20, %cst_63 {dimension_numbers = #tpu.dot_dimension_numbers<[1], [0], [0], [1], [0, 0, 1, 1], [], []>} : vector<256x1152xbf16>, vector<1152x64xbf16>, vector<256x64xf32> -> vector<256x64xf32>
    %c0_64 = arith.constant 0 : index
    %c0_65 = arith.constant 0 : index
    %42 = vector.load %arg3[%c0_64, %c0_65] : memref<1x64xf32, #tpu.memory_space<vmem>>, vector<1x64xf32>
    %43 = vector.broadcast %42 : vector<1x64xf32> to vector<256x64xf32>
    %44 = arith.addf %41, %43 : vector<256x64xf32>
    %cst_66 = arith.constant 0.000000e+00 : f32
    %45 = vector.broadcast %cst_66 : f32 to vector<256x64xf32>
    %46 = arith.maximumf %44, %45 : vector<256x64xf32>
    %47 = vector.shape_cast %46 : vector<256x64xf32> to vector<16x16x64xf32>
    %c1_67 = arith.constant 1 : index
    %c1_68 = arith.constant 1 : index
    %c0_69 = arith.constant 0 : index
    %48 = vector.load %arg8[%c1_67, %c1_68, %c0_69] : memref<18x24x64xf32, #tpu.memory_space<vmem>>, vector<16x16x64xf32>
    tpu.vector_store %arg8[%c1_67, %c1_68, %c0_69], %47 {strides = array<i32>} : memref<18x24x64xf32, #tpu.memory_space<vmem>>, vector<16x16x64xf32>,
    %c0_70 = arith.constant 0 : index
    %c0_71 = arith.constant 0 : index
    %49 = vector.load %arg4[%c0_70, %c0_71] : memref<576x1xbf16, #tpu.memory_space<vmem>>, vector<576x1xbf16>
    %c0_72 = arith.constant 0 : index
    %c0_73 = arith.constant 0 : index
    %c0_74 = arith.constant 0 : index
    %50 = vector.load %arg8[%c0_72, %c0_73, %c0_74] : memref<18x24x64xf32, #tpu.memory_space<vmem>>, vector<16x16x64xf32>
    %51 = vector.shape_cast %50 : vector<16x16x64xf32> to vector<256x64xf32>
    %c0_75 = arith.constant 0 : index
    %c1_76 = arith.constant 1 : index
    %c0_77 = arith.constant 0 : index
    %52 = vector.load %arg8[%c0_75, %c1_76, %c0_77] : memref<18x24x64xf32, #tpu.memory_space<vmem>>, vector<16x16x64xf32>
    %53 = vector.shape_cast %52 : vector<16x16x64xf32> to vector<256x64xf32>
    %c0_78 = arith.constant 0 : index
    %c2_79 = arith.constant 2 : index
    %c0_80 = arith.constant 0 : index
    %54 = vector.load %arg8[%c0_78, %c2_79, %c0_80] : memref<18x24x64xf32, #tpu.memory_space<vmem>>, vector<16x16x64xf32>
    %55 = vector.shape_cast %54 : vector<16x16x64xf32> to vector<256x64xf32>
    %c1_81 = arith.constant 1 : index
    %c0_82 = arith.constant 0 : index
    %c0_83 = arith.constant 0 : index
    %56 = vector.load %arg8[%c1_81, %c0_82, %c0_83] : memref<18x24x64xf32, #tpu.memory_space<vmem>>, vector<16x16x64xf32>
    %57 = vector.shape_cast %56 : vector<16x16x64xf32> to vector<256x64xf32>
    %c1_84 = arith.constant 1 : index
    %c1_85 = arith.constant 1 : index
    %c0_86 = arith.constant 0 : index
    %58 = vector.load %arg8[%c1_84, %c1_85, %c0_86] : memref<18x24x64xf32, #tpu.memory_space<vmem>>, vector<16x16x64xf32>
    %59 = vector.shape_cast %58 : vector<16x16x64xf32> to vector<256x64xf32>
    %c1_87 = arith.constant 1 : index
    %c2_88 = arith.constant 2 : index
    %c0_89 = arith.constant 0 : index
    %60 = vector.load %arg8[%c1_87, %c2_88, %c0_89] : memref<18x24x64xf32, #tpu.memory_space<vmem>>, vector<16x16x64xf32>
    %61 = vector.shape_cast %60 : vector<16x16x64xf32> to vector<256x64xf32>
    %c2_90 = arith.constant 2 : index
    %c0_91 = arith.constant 0 : index
    %c0_92 = arith.constant 0 : index
    %62 = vector.load %arg8[%c2_90, %c0_91, %c0_92] : memref<18x24x64xf32, #tpu.memory_space<vmem>>, vector<16x16x64xf32>
    %63 = vector.shape_cast %62 : vector<16x16x64xf32> to vector<256x64xf32>
    %c2_93 = arith.constant 2 : index
    %c1_94 = arith.constant 1 : index
    %c0_95 = arith.constant 0 : index
    %64 = vector.load %arg8[%c2_93, %c1_94, %c0_95] : memref<18x24x64xf32, #tpu.memory_space<vmem>>, vector<16x16x64xf32>
    %65 = vector.shape_cast %64 : vector<16x16x64xf32> to vector<256x64xf32>
    %c2_96 = arith.constant 2 : index
    %c2_97 = arith.constant 2 : index
    %c0_98 = arith.constant 0 : index
    %66 = vector.load %arg8[%c2_96, %c2_97, %c0_98] : memref<18x24x64xf32, #tpu.memory_space<vmem>>, vector<16x16x64xf32>
    %67 = vector.shape_cast %66 : vector<16x16x64xf32> to vector<256x64xf32>
    %68 = tpu.concatenate %51, %53, %55, %57, %59, %61, %63, %65, %67 in 1 : vector<256x64xf32>, vector<256x64xf32>, vector<256x64xf32>, vector<256x64xf32>, vector<256x64xf32>, vector<256x64xf32>, vector<256x64xf32>, vector<256x64xf32>, vector<256x64xf32> -> vector<256x576xf32>
    %69 = arith.truncf %68 : vector<256x576xf32> to vector<256x576xbf16>
    %cst_99 = arith.constant dense<0.000000e+00> : vector<256x1xf32>
    %70 = tpu.matmul %69, %49, %cst_99 {dimension_numbers = #tpu.dot_dimension_numbers<[1], [0], [0], [1], [0, 0, 1, 1], [], []>} : vector<256x576xbf16>, vector<576x1xbf16>, vector<256x1xf32> -> vector<256x1xf32>
    %c0_100 = arith.constant 0 : index
    %c0_101 = arith.constant 0 : index
    %71 = vector.load %arg5[%c0_100, %c0_101] : memref<1x1xf32, #tpu.memory_space<vmem>>, vector<1x1xf32>
    %72 = vector.broadcast %71 : vector<1x1xf32> to vector<256x1xf32>
    %73 = arith.addf %70, %72 : vector<256x1xf32>
    %c0_102 = arith.constant 0 : index
    %c0_103 = arith.constant 0 : index
    %c0_104 = arith.constant 0 : index
    %74 = vector.load %arg6[%c0_102, %c0_103, %c0_104] : memref<1x256x1xf32, #tpu.memory_space<vmem>>, vector<1x256x1xf32>
    %75 = vector.shape_cast %74 : vector<1x256x1xf32> to vector<256x1xf32>
    %76 = vector.shape_cast %73 : vector<256x1xf32> to vector<1x256x1xf32>
    tpu.vector_store %arg6[%c0_102, %c0_103, %c0_104], %76 {strides = array<i32>} : memref<1x256x1xf32, #tpu.memory_space<vmem>>, vector<1x256x1xf32>,
    return
  }
  func.func @transform_0(%arg0: i32) -> (i32, i32, i32, i32) {
    %c0_i32 = arith.constant 0 : i32
    %c0_i32_0 = arith.constant 0 : i32
    %c0_i32_1 = arith.constant 0 : i32
    %c0_i32_2 = arith.constant 0 : i32
    return %arg0, %c0_i32, %c0_i32_0, %c0_i32_1 : i32, i32, i32, i32
  }
  func.func @transform_1(%arg0: i32) -> (i32, i32) {
    %c0_i32 = arith.constant 0 : i32
    %c0_i32_0 = arith.constant 0 : i32
    %c0_i32_1 = arith.constant 0 : i32
    return %c0_i32, %c0_i32_0 : i32, i32
  }
  func.func @transform_2(%arg0: i32) -> (i32, i32) {
    %c0_i32 = arith.constant 0 : i32
    %c0_i32_0 = arith.constant 0 : i32
    %c0_i32_1 = arith.constant 0 : i32
    return %c0_i32, %c0_i32_0 : i32, i32
  }
  func.func @transform_3(%arg0: i32) -> (i32, i32) {
    %c0_i32 = arith.constant 0 : i32
    %c0_i32_0 = arith.constant 0 : i32
    %c0_i32_1 = arith.constant 0 : i32
    return %c0_i32, %c0_i32_0 : i32, i32
  }
  func.func @transform_4(%arg0: i32) -> (i32, i32) {
    %c0_i32 = arith.constant 0 : i32
    %c0_i32_0 = arith.constant 0 : i32
    %c0_i32_1 = arith.constant 0 : i32
    return %c0_i32, %c0_i32_0 : i32, i32
  }
  func.func @transform_5(%arg0: i32) -> (i32, i32, i32) {
    %c0_i32 = arith.constant 0 : i32
    %c0_i32_0 = arith.constant 0 : i32
    %c0_i32_1 = arith.constant 0 : i32
    return %arg0, %c0_i32, %c0_i32_0 : i32, i32, i32
  }
}

</mosaic_0001>

<llo_original>
// kernel: twolayersnetsd_forward.1
$region0: #{twolayersnetsd_forward.1}
  #allocation0 [shape = 'u32[]', space=smem, size = 0x4, offset = 0x4, fixed_abs, tag = 'smem constant byte address 0x4 - core index']
  #allocation1 [shape = 'u32[144,128]{1,0:T(1,128)}', space=vmem, size = 0x12000, scoped, tag = 'internal scratch']
  #allocation2 [shape = 'f32[18,24,128]{2,1,0:T(8,128)}', space=vmem, size = 0x36000, scoped, tag = 'scratch operand']
  #allocation3 [shape = 'f32[18,24,64]{2,1,0:T(8,128)}', space=vmem, size = 0x36000, scoped, tag = 'scratch operand']
  #allocation4 [shape = 'f32[1,1]{1,0:T(1,128)S(1)}', space=vmem, size = 0x200, scoped, tag = 'scoped memory for twolayersnetsd_forward.1']
  %s0 = inlined_call_operand.vmem [shape: f32[2,16,16,128], index: 0, kind: input, shape index: {}]
  %s1 = inlined_call_operand.vmem [shape: bf16[1152,64], index: 1, kind: input, shape index: {}]
  %s2 = inlined_call_operand.vmem [shape: f32[1,64], index: 2, kind: input, shape index: {}]
  %s3 = inlined_call_operand.vmem [shape: bf16[576,1], index: 3, kind: input, shape index: {}]
  %s4 = inlined_call_operand.<no memory space> [shape: f32[1,1], index: 4, kind: input, shape index: {}]
  %s5 = inlined_call_operand.vmem [shape: f32[2,256,1], index: 5, kind: output, shape index: {}]
  %s6 = sld [smem:[#allocation0]]
  $region53: #{twolayersnetsd_forward.1} parent=0
    _
  %s8 = ssub.s32 1, %s6
  %s9 = scalar_select 0, %s8, %s6
  %v10 = vstv %s4
  %11 = vst [vmem:[#allocation4] sm:$0x1] %v10
  loop: start=0, step=1, limit=4
  $region2: #{twolayersnetsd_forward.1} parent=0 // loop_pre_header
    _
  $region3: #{twolayersnetsd_forward.1} parent=0 // loop_header
    %s13 = sphi 0, %s17
    %p14 = scmp.ge.s32.totalorder %s13, 4
    %s23 = sphi 0, %s25
    %s26 = sphi 0, %s23
    %s27 = sphi 0, %s26
    %s43 = sphi 0, %s27
    %s47 = sphi 0, %s47
    %s49 = sphi 0, %s47
    %s50 = sphi 0, %s49
    %s64 = sphi 0, %s50
    %s68 = sphi 0, %s68
    %s70 = sphi 0, %s68
    %s71 = sphi 0, %s70
    %s85 = sphi 0, %s71
    %s89 = sphi 0, %s89
    %s91 = sphi 0, %s89
    %s92 = sphi 0, %s91
    %s106 = sphi 0, %s92
    %s110 = sphi 0, %s110
    %s112 = sphi 0, %s110
    %s113 = sphi 0, %s112
    %s127 = sphi 0, %s113
    %s133 = sphi 0, %s135
    %s136 = sphi 0, %s133
    %s137 = sphi 0, %s136
    %s153 = sphi 0, %s137
  $region4: #{twolayersnetsd_forward.1} parent=0 // loop_header_branch
    %16 = sbr.rel (%p14) target = $region8
  $region5: #{twolayersnetsd_forward.1} parent=0 // loop_body
    %s18 = ssub.s32 %s13, 1
    %s19 = ssub.s32 %s13, 2
    %s20 = sadd.s32 %s13, 1
    %s21 = ssub.s32 %s13, %s20
    %p22 = scmp.eq.s32.totalorder %s21, 0
    %s24 = sadd.s32 %s23, 1
    %s25 = scalar_select %p22, %s23, %s24
    %p28 = pneg %p22
    %p29 = scmp.eq.s32.totalorder %s13, 1
    %p30 = por %p28, %p29
    %p31 = scmp.ne.s32.totalorder %s23, %s26
    %p32 = scmp.eq.s32.totalorder %s13, 0
    %p33 = por %p31, %p32
    %p34 = scmp.ne.s32.totalorder %s23, %s26
    %p35 = scmp.eq.s32.totalorder %s18, 1
    %p36 = por %p34, %p35
    %p37 = scmp.ne.s32.totalorder %s26, %s27
    %p38 = scmp.eq.s32.totalorder %s18, 0
    %p39 = por %p37, %p38
    %p40 = scmp.ne.s32.totalorder %s26, %s27
    %p41 = scmp.eq.s32.totalorder %s19, 1
    %p42 = por %p40, %p41
    %p44 = scmp.ne.s32.totalorder %s27, %s43
    %p45 = scmp.eq.s32.totalorder %s19, 0
    %p46 = por %p44, %p45
    %s48 = sadd.s32 %s47, 1
    %p51 = scmp.eq.s32.totalorder %s13, 1
    %p52 = scmp.ne.s32.totalorder %s47, %s49
    %p53 = scmp.eq.s32.totalorder %s13, 0
    %p54 = por %p52, %p53
    %p55 = scmp.ne.s32.totalorder %s47, %s49
    %p56 = scmp.eq.s32.totalorder %s18, 1
    %p57 = por %p55, %p56
    %p58 = scmp.ne.s32.totalorder %s49, %s50
    %p59 = scmp.eq.s32.totalorder %s18, 0
    %p60 = por %p58, %p59
    %p61 = scmp.ne.s32.totalorder %s49, %s50
    %p62 = scmp.eq.s32.totalorder %s19, 1
    %p63 = por %p61, %p62
    %p65 = scmp.ne.s32.totalorder %s50, %s64
    %p66 = scmp.eq.s32.totalorder %s19, 0
    %p67 = por %p65, %p66
    %s69 = sadd.s32 %s68, 1
    %p72 = scmp.eq.s32.totalorder %s13, 1
    %p73 = scmp.ne.s32.totalorder %s68, %s70
    %p74 = scmp.eq.s32.totalorder %s13, 0
    %p75 = por %p73, %p74
    %p76 = scmp.ne.s32.totalorder %s68, %s70
    %p77 = scmp.eq.s32.totalorder %s18, 1
    %p78 = por %p76, %p77
    %p79 = scmp.ne.s32.totalorder %s70, %s71
    %p80 = scmp.eq.s32.totalorder %s18, 0
    %p81 = por %p79, %p80
    %p82 = scmp.ne.s32.totalorder %s70, %s71
    %p83 = scmp.eq.s32.totalorder %s19, 1
    %p84 = por %p82, %p83
    %p86 = scmp.ne.s32.totalorder %s71, %s85
    %p87 = scmp.eq.s32.totalorder %s19, 0
    %p88 = por %p86, %p87
    %s90 = sadd.s32 %s89, 1
    %p93 = scmp.eq.s32.totalorder %s13, 1
    %p94 = scmp.ne.s32.totalorder %s89, %s91
    %p95 = scmp.eq.s32.totalorder %s13, 0
    %p96 = por %p94, %p95
    %p97 = scmp.ne.s32.totalorder %s89, %s91
    %p98 = scmp.eq.s32.totalorder %s18, 1
    %p99 = por %p97, %p98
    %p100 = scmp.ne.s32.totalorder %s91, %s92
    %p101 = scmp.eq.s32.totalorder %s18, 0
    %p102 = por %p100, %p101
    %p103 = scmp.ne.s32.totalorder %s91, %s92
    %p104 = scmp.eq.s32.totalorder %s19, 1
    %p105 = por %p103, %p104
    %p107 = scmp.ne.s32.totalorder %s92, %s106
    %p108 = scmp.eq.s32.totalorder %s19, 0
    %p109 = por %p107, %p108
    %s111 = sadd.s32 %s110, 1
    %p114 = scmp.eq.s32.totalorder %s13, 1
    %p115 = scmp.ne.s32.totalorder %s110, %s112
    %p116 = scmp.eq.s32.totalorder %s13, 0
    %p117 = por %p115, %p116
    %p118 = scmp.ne.s32.totalorder %s110, %s112
    %p119 = scmp.eq.s32.totalorder %s18, 1
    %p120 = por %p118, %p119
    %p121 = scmp.ne.s32.totalorder %s112, %s113
    %p122 = scmp.eq.s32.totalorder %s18, 0
    %p123 = por %p121, %p122
    %p124 = scmp.ne.s32.totalorder %s112, %s113
    %p125 = scmp.eq.s32.totalorder %s19, 1
    %p126 = por %p124, %p125
    %p128 = scmp.ne.s32.totalorder %s113, %s127
    %p129 = scmp.eq.s32.totalorder %s19, 0
    %p130 = por %p128, %p129
    %s131 = ssub.s32 %s13, %s20
    %p132 = scmp.eq.s32.totalorder %s131, 0
    %s134 = sadd.s32 %s133, 1
    %s135 = scalar_select %p132, %s133, %s134
    %p138 = pneg %p132
    %p139 = scmp.eq.s32.totalorder %s13, 1
    %p140 = por %p138, %p139
    %p141 = scmp.ne.s32.totalorder %s133, %s136
    %p142 = scmp.eq.s32.totalorder %s13, 0
    %p143 = por %p141, %p142
    %p144 = scmp.ne.s32.totalorder %s133, %s136
    %p145 = scmp.eq.s32.totalorder %s18, 1
    %p146 = por %p144, %p145
    %p147 = scmp.ne.s32.totalorder %s136, %s137
    %p148 = scmp.eq.s32.totalorder %s18, 0
    %p149 = por %p147, %p148
    %p150 = scmp.ne.s32.totalorder %s136, %s137
    %p151 = scmp.eq.s32.totalorder %s19, 1
    %p152 = por %p150, %p151
    %p154 = scmp.ne.s32.totalorder %s137, %s153
    %p155 = scmp.eq.s32.totalorder %s19, 0
    %p156 = por %p154, %p155
    %p157 = scmp.le.s32.totalorder 1, %s13
    %p158 = scmp.lt.s32.totalorder %s13, 3
    %p159 = pnand %p157, %p158
    %p160 = pneg %p159
    // Predicated region
    $region9: #{twolayersnetsd_forward.1} parent=5 // pred_check
      _
    $region10: #{twolayersnetsd_forward.1} parent=5 // pred_check_branch
      %162 = sbr.rel (%p159) target = $region12
    $region11: #{twolayersnetsd_forward.1} parent=5 // pred_region
      %s163 = ssub.s32 %s13, 1
      // Predicated region
      $region13: #{twolayersnetsd_forward.1} parent=11 // pred_check
        %p164 = pneg %p60
      $region14: #{twolayersnetsd_forward.1} parent=11 // pred_check_branch
        %166 = sbr.rel (%p164) target = $region16
      $region15: #{twolayersnetsd_forward.1} parent=11 // pred_region
        _
      $region16: #{twolayersnetsd_forward.1} parent=11 // pred_fallthru
        _
      // Predicated region
      $region17: #{twolayersnetsd_forward.1} parent=11 // pred_check
        %p167 = pneg %p81
      $region18: #{twolayersnetsd_forward.1} parent=11 // pred_check_branch
        %169 = sbr.rel (%p167) target = $region20
      $region19: #{twolayersnetsd_forward.1} parent=11 // pred_region
        _
      $region20: #{twolayersnetsd_forward.1} parent=11 // pred_fallthru
        _
      // Predicated region
      $region21: #{twolayersnetsd_forward.1} parent=11 // pred_check
        %p170 = pneg %p102
      $region22: #{twolayersnetsd_forward.1} parent=11 // pred_check_branch
        %172 = sbr.rel (%p170) target = $region24
      $region23: #{twolayersnetsd_forward.1} parent=11 // pred_region
        _
      $region24: #{twolayersnetsd_forward.1} parent=11 // pred_fallthru
        _
      // Predicated region
      $region25: #{twolayersnetsd_forward.1} parent=11 // pred_check
        %p173 = pneg %p123
      $region26: #{twolayersnetsd_forward.1} parent=11 // pred_check_branch
        %175 = sbr.rel (%p173) target = $region28
      $region27: #{twolayersnetsd_forward.1} parent=11 // pred_region
        _
      $region28: #{twolayersnetsd_forward.1} parent=11 // pred_fallthru
        _
    $region12: #{twolayersnetsd_forward.1} parent=5 // pred_fallthru
      _
    %p176 = scmp.lt.s32.totalorder %s13, 2
    // Predicated region
    $region29: #{twolayersnetsd_forward.1} parent=5 // pred_check
      %p177 = pneg %p176
    $region30: #{twolayersnetsd_forward.1} parent=5 // pred_check_branch
      %179 = sbr.rel (%p177) target = $region32
    $region31: #{twolayersnetsd_forward.1} parent=5 // pred_region
      // Predicated region
      $region33: #{twolayersnetsd_forward.1} parent=31 // pred_check
        %p180 = pneg %p33
      $region34: #{twolayersnetsd_forward.1} parent=31 // pred_check_branch
        %182 = sbr.rel (%p180) target = $region36
      $region35: #{twolayersnetsd_forward.1} parent=31 // pred_region
        %p183 = scmp.lt.s32.totalorder %s13, 1
        %s184 = scalar_select %p183, %s13, 1
        %s185 = smul.addr %s184, 32
        %s186 = smul.addr %s185, 8
        %s187 = scalar_lea.vmem %s0, %s186
      $region36: #{twolayersnetsd_forward.1} parent=31 // pred_fallthru
        _
    $region32: #{twolayersnetsd_forward.1} parent=5 // pred_fallthru
      _
    %p188 = scmp.le.s32.totalorder 1, %s13
    %p189 = scmp.lt.s32.totalorder %s13, 3
    %p190 = pnand %p188, %p189
    %p191 = pneg %p190
    // Predicated region
    $region37: #{twolayersnetsd_forward.1} parent=5 // pred_check
      _
    $region38: #{twolayersnetsd_forward.1} parent=5 // pred_check_branch
      %193 = sbr.rel (%p190) target = $region40
    $region39: #{twolayersnetsd_forward.1} parent=5 // pred_region
      %s194 = ssub.s32 %s13, 1
      %p195 = scmp.lt.s32.totalorder %s18, 1
      %s196 = scalar_select %p195, %s18, 1
      %s197 = smul.addr %s196, 32
      %s198 = smul.addr %s197, 8
      %s199 = scalar_lea.vmem %s0, %s198
      %p200 = pneg %p39
      %p201 = pneg %p36
      %p202 = pneg %p60
      %p203 = pneg %p57
      %p204 = pneg %p81
      %p205 = pneg %p78
      %p206 = pneg %p102
      %p207 = pneg %p99
      %p208 = pneg %p123
      %p209 = pneg %p120
      %p210 = pneg %p149
      %p211 = pneg %p146
      %p212 = scmp.lt.s32.totalorder %s18, 1
      %s213 = scalar_select %p212, %s18, 1
      %s214 = smul.addr %s213, 32
      %s215 = smul.addr %s214, 8
      %s216 = scalar_lea.vmem %s5, %s215
      %p217 = scmp.lt.s32.totalorder %s18, 1
      %s218 = scalar_select %p217, %s18, 1
      %s219 = smul.addr %s218, 32
      %s220 = smul.addr %s219, 8
      %s221 = scalar_lea.vmem %s0, %s220
      %p222 = scmp.lt.s32.totalorder %s18, 1
      %s223 = scalar_select %p222, %s18, 1
      %s224 = smul.addr %s223, 32
      %s225 = smul.addr %s224, 8
      %s226 = scalar_lea.vmem %s5, %s225
      %228 = vst [vmem:[#allocation2] sm:$0xff] 0.0
      %229 = vst [vmem:[#allocation2 + $0x8] sm:$0xff] 0.0
      %230 = vst [vmem:[#allocation2 + $0x10] sm:$0xff] 0.0
      %s231 = scalar_lea.vmem [#allocation2], 408
      %232 = vst [vmem:[%s231] sm:$0xff] 0.0
      %233 = vst [vmem:[%s231 + $0x8] sm:$0xff] 0.0
      %234 = vst [vmem:[%s231 + $0x10] sm:$0xff] 0.0
      %235 = vst [vmem:[#allocation2] sm:$0x1] 0.0
      %236 = vst [vmem:[#allocation2 + $0x18] sm:$0x1] 0.0
      %237 = vst [vmem:[#allocation2 + $0x30] sm:$0x1] 0.0
      %238 = vst [vmem:[#allocation2 + $0x48] sm:$0x1] 0.0
      %239 = vst [vmem:[#allocation2 + $0x60] sm:$0x1] 0.0
      %240 = vst [vmem:[#allocation2 + $0x78] sm:$0x1] 0.0
      %241 = vst [vmem:[#allocation2 + $0x90] sm:$0x1] 0.0
      %242 = vst [vmem:[#allocation2 + $0xa8] sm:$0x1] 0.0
      %243 = vst [vmem:[#allocation2 + $0xc0] sm:$0x1] 0.0
      %244 = vst [vmem:[#allocation2 + $0xd8] sm:$0x1] 0.0
      %245 = vst [vmem:[#allocation2 + $0xf0] sm:$0x1] 0.0
      %246 = vst [vmem:[#allocation2 + $0x108] sm:$0x1] 0.0
      %247 = vst [vmem:[#allocation2 + $0x120] sm:$0x1] 0.0
      %248 = vst [vmem:[#allocation2 + $0x138] sm:$0x1] 0.0
      %249 = vst [vmem:[#allocation2 + $0x150] sm:$0x1] 0.0
      %250 = vst [vmem:[#allocation2 + $0x168] sm:$0x1] 0.0
      %251 = vst [vmem:[#allocation2 + $0x180] sm:$0x1] 0.0
      %252 = vst [vmem:[#allocation2 + $0x198] sm:$0x1] 0.0
      %253 = vst [vmem:[#allocation2 + $0x11] sm:$0x7f] 0.0
      %254 = vst [vmem:[#allocation2 + $0x29] sm:$0x7f] 0.0
      %255 = vst [vmem:[#allocation2 + $0x41] sm:$0x7f] 0.0
      %256 = vst [vmem:[#allocation2 + $0x59] sm:$0x7f] 0.0
      %257 = vst [vmem:[#allocation2 + $0x71] sm:$0x7f] 0.0
      %258 = vst [vmem:[#allocation2 + $0x89] sm:$0x7f] 0.0
      %259 = vst [vmem:[#allocation2 + $0xa1] sm:$0x7f] 0.0
      %260 = vst [vmem:[#allocation2 + $0xb9] sm:$0x7f] 0.0
      %261 = vst [vmem:[#allocation2 + $0xd1] sm:$0x7f] 0.0
      %262 = vst [vmem:[#allocation2 + $0xe9] sm:$0x7f] 0.0
      %263 = vst [vmem:[#allocation2 + $0x101] sm:$0x7f] 0.0
      %264 = vst [vmem:[#allocation2 + $0x119] sm:$0x7f] 0.0
      %265 = vst [vmem:[#allocation2 + $0x131] sm:$0x7f] 0.0
      %266 = vst [vmem:[#allocation2 + $0x149] sm:$0x7f] 0.0
      %267 = vst [vmem:[#allocation2 + $0x161] sm:$0x7f] 0.0
      %268 = vst [vmem:[#allocation2 + $0x179] sm:$0x7f] 0.0
      %269 = vst [vmem:[#allocation2 + $0x191] sm:$0x7f] 0.0
      %270 = vst [vmem:[#allocation2 + $0x1a9] sm:$0x7f] 0.0
      %vm271 = vcmask 523264
      %272 = vst.msk [vmem:[#allocation3] sm:$0xff] %vm271, 0.0
      %273 = vst.msk [vmem:[#allocation3 + $0x8] sm:$0xff] %vm271, 0.0
      %274 = vst.msk [vmem:[#allocation3 + $0x10] sm:$0xff] %vm271, 0.0
      %s275 = scalar_lea.vmem [#allocation3], 408
      %276 = vst.msk [vmem:[%s275] sm:$0xff] %vm271, 0.0
      %277 = vst.msk [vmem:[%s275 + $0x8] sm:$0xff] %vm271, 0.0
      %278 = vst.msk [vmem:[%s275 + $0x10] sm:$0xff] %vm271, 0.0
      %vm279 = vcmask 516096
      %280 = vst.msk [vmem:[#allocation3] sm:$0x1] %vm279, 0.0
      %281 = vst.msk [vmem:[#allocation3 + $0x18] sm:$0x1] %vm279, 0.0
      %282 = vst.msk [vmem:[#allocation3 + $0x30] sm:$0x1] %vm279, 0.0
      %283 = vst.msk [vmem:[#allocation3 + $0x48] sm:$0x1] %vm279, 0.0
      %284 = vst.msk [vmem:[#allocation3 + $0x60] sm:$0x1] %vm279, 0.0
      %285 = vst.msk [vmem:[#allocation3 + $0x78] sm:$0x1] %vm279, 0.0
      %286 = vst.msk [vmem:[#allocation3 + $0x90] sm:$0x1] %vm279, 0.0
      %287 = vst.msk [vmem:[#allocation3 + $0xa8] sm:$0x1] %vm279, 0.0
      %288 = vst.msk [vmem:[#allocation3 + $0xc0] sm:$0x1] %vm279, 0.0
      %289 = vst.msk [vmem:[#allocation3 + $0xd8] sm:$0x1] %vm279, 0.0
      %290 = vst.msk [vmem:[#allocation3 + $0xf0] sm:$0x1] %vm279, 0.0
      %291 = vst.msk [vmem:[#allocation3 + $0x108] sm:$0x1] %vm279, 0.0
      %292 = vst.msk [vmem:[#allocation3 + $0x120] sm:$0x1] %vm279, 0.0
      %293 = vst.msk [vmem:[#allocation3 + $0x138] sm:$0x1] %vm279, 0.0
      %294 = vst.msk [vmem:[#allocation3 + $0x150] sm:$0x1] %vm279, 0.0
      %295 = vst.msk [vmem:[#allocation3 + $0x168] sm:$0x1] %vm279, 0.0
      %296 = vst.msk [vmem:[#allocation3 + $0x180] sm:$0x1] %vm279, 0.0
      %297 = vst.msk [vmem:[#allocation3 + $0x198] sm:$0x1] %vm279, 0.0
      %vm298 = vcmask 522240
      %299 = vst.msk [vmem:[#allocation3 + $0x11] sm:$0x7f] %vm298, 0.0
      %300 = vst.msk [vmem:[#allocation3 + $0x29] sm:$0x7f] %vm298, 0.0
      %301 = vst.msk [vmem:[#allocation3 + $0x41] sm:$0x7f] %vm298, 0.0
      %302 = vst.msk [vmem:[#allocation3 + $0x59] sm:$0x7f] %vm298, 0.0
      %303 = vst.msk [vmem:[#allocation3 + $0x71] sm:$0x7f] %vm298, 0.0
      %304 = vst.msk [vmem:[#allocation3 + $0x89] sm:$0x7f] %vm298, 0.0
      %305 = vst.msk [vmem:[#allocation3 + $0xa1] sm:$0x7f] %vm298, 0.0
      %306 = vst.msk [vmem:[#allocation3 + $0xb9] sm:$0x7f] %vm298, 0.0
      %307 = vst.msk [vmem:[#allocation3 + $0xd1] sm:$0x7f] %vm298, 0.0
      %308 = vst.msk [vmem:[#allocation3 + $0xe9] sm:$0x7f] %vm298, 0.0
      %309 = vst.msk [vmem:[#allocation3 + $0x101] sm:$0x7f] %vm298, 0.0
      %310 = vst.msk [vmem:[#allocation3 + $0x119] sm:$0x7f] %vm298, 0.0
      %311 = vst.msk [vmem:[#allocation3 + $0x131] sm:$0x7f] %vm298, 0.0
      %312 = vst.msk [vmem:[#allocation3 + $0x149] sm:$0x7f] %vm298, 0.0
      %313 = vst.msk [vmem:[#allocation3 + $0x161] sm:$0x7f] %vm298, 0.0
      %314 = vst.msk [vmem:[#allocation3 + $0x179] sm:$0x7f] %vm298, 0.0
      %315 = vst.msk [vmem:[#allocation3 + $0x191] sm:$0x7f] %vm298, 0.0
      %316 = vst.msk [vmem:[#allocation3 + $0x1a9] sm:$0x7f] %vm298, 0.0
      %v317 = vld [vmem:[%s221] sm:$0xff]
      %v318 = vld [vmem:[%s221 + $0x8] sm:$0xff]
      %v319 = vld [vmem:[%s221 + $0x10] sm:$0xff]
      %v320 = vld [vmem:[%s221 + $0x18] sm:$0xff]
      %v321 = vld [vmem:[%s221 + $0x20] sm:$0xff]
      %v322 = vld [vmem:[%s221 + $0x28] sm:$0xff]
      %v323 = vld [vmem:[%s221 + $0x30] sm:$0xff]
      %v324 = vld [vmem:[%s221 + $0x38] sm:$0xff]
      %v325 = vld [vmem:[%s221 + $0x40] sm:$0xff]
      %v326 = vld [vmem:[%s221 + $0x48] sm:$0xff]
      %v327 = vld [vmem:[%s221 + $0x50] sm:$0xff]
      %v328 = vld [vmem:[%s221 + $0x58] sm:$0xff]
      %v329 = vld [vmem:[%s221 + $0x60] sm:$0xff]
      %v330 = vld [vmem:[%s221 + $0x68] sm:$0xff]
      %v331 = vld [vmem:[%s221 + $0x70] sm:$0xff]
      %v332 = vld [vmem:[%s221 + $0x78] sm:$0xff]
      %v333 = vld [vmem:[%s221 + $0x80] sm:$0xff]
      %v334 = vld [vmem:[%s221 + $0x88] sm:$0xff]
      %v335 = vld [vmem:[%s221 + $0x90] sm:$0xff]
      %v336 = vld [vmem:[%s221 + $0x98] sm:$0xff]
      %v337 = vld [vmem:[%s221 + $0xa0] sm:$0xff]
      %v338 = vld [vmem:[%s221 + $0xa8] sm:$0xff]
      %v339 = vld [vmem:[%s221 + $0xb0] sm:$0xff]
      %v340 = vld [vmem:[%s221 + $0xb8] sm:$0xff]
      %v341 = vld [vmem:[%s221 + $0xc0] sm:$0xff]
      %v342 = vld [vmem:[%s221 + $0xc8] sm:$0xff]
      %v343 = vld [vmem:[%s221 + $0xd0] sm:$0xff]
      %v344 = vld [vmem:[%s221 + $0xd8] sm:$0xff]
      %v345 = vld [vmem:[%s221 + $0xe0] sm:$0xff]
      %v346 = vld [vmem:[%s221 + $0xe8] sm:$0xff]
      %v347 = vld [vmem:[%s221 + $0xf0] sm:$0xff]
      %v348 = vld [vmem:[%s221 + $0xf8] sm:$0xff]
      %v349 = vtanh.pop %v317
      %v350 = vtanh.pop %v318
      %v351 = vtanh.pop %v319
      %v352 = vtanh.pop %v320
      %v353 = vtanh.pop %v321
      %v354 = vtanh.pop %v322
      %v355 = vtanh.pop %v323
      %v356 = vtanh.pop %v324
      %v357 = vtanh.pop %v325
      %v358 = vtanh.pop %v326
      %v359 = vtanh.pop %v327
      %v360 = vtanh.pop %v328
      %v361 = vtanh.pop %v329
      %v362 = vtanh.pop %v330
      %v363 = vtanh.pop %v331
      %v364 = vtanh.pop %v332
      %v365 = vtanh.pop %v333
      %v366 = vtanh.pop %v334
      %v367 = vtanh.pop %v335
      %v368 = vtanh.pop %v336
      %v369 = vtanh.pop %v337
      %v370 = vtanh.pop %v338
      %v371 = vtanh.pop %v339
      %v372 = vtanh.pop %v340
      %v373 = vtanh.pop %v341
      %v374 = vtanh.pop %v342
      %v375 = vtanh.pop %v343
      %v376 = vtanh.pop %v344
      %v377 = vtanh.pop %v345
      %v378 = vtanh.pop %v346
      %v379 = vtanh.pop %v347
      %v380 = vtanh.pop %v348
      %s381 = scalar_lea.vmem [#allocation2], 24
      %382 = vst [vmem:[%s381 + $0x1] sm:$0xff] %v349
      %383 = vst [vmem:[%s381 + $0x9] sm:$0xff] %v350
      %384 = vst [vmem:[%s381 + $0x19] sm:$0xff] %v351
      %385 = vst [vmem:[%s381 + $0x21] sm:$0xff] %v352
      %386 = vst [vmem:[%s381 + $0x31] sm:$0xff] %v353
      %387 = vst [vmem:[%s381 + $0x39] sm:$0xff] %v354
      %388 = vst [vmem:[%s381 + $0x49] sm:$0xff] %v355
      %389 = vst [vmem:[%s381 + $0x51] sm:$0xff] %v356
      %390 = vst [vmem:[%s381 + $0x61] sm:$0xff] %v357
      %391 = vst [vmem:[%s381 + $0x69] sm:$0xff] %v358
      %392 = vst [vmem:[%s381 + $0x79] sm:$0xff] %v359
      %393 = vst [vmem:[%s381 + $0x81] sm:$0xff] %v360
      %394 = vst [vmem:[%s381 + $0x91] sm:$0xff] %v361
      %395 = vst [vmem:[%s381 + $0x99] sm:$0xff] %v362
      %396 = vst [vmem:[%s381 + $0xa9] sm:$0xff] %v363
      %397 = vst [vmem:[%s381 + $0xb1] sm:$0xff] %v364
      %398 = vst [vmem:[%s381 + $0xc1] sm:$0xff] %v365
      %399 = vst [vmem:[%s381 + $0xc9] sm:$0xff] %v366
      %400 = vst [vmem:[%s381 + $0xd9] sm:$0xff] %v367
      %401 = vst [vmem:[%s381 + $0xe1] sm:$0xff] %v368
      %402 = vst [vmem:[%s381 + $0xf1] sm:$0xff] %v369
      %403 = vst [vmem:[%s381 + $0xf9] sm:$0xff] %v370
      %404 = vst [vmem:[%s381 + $0x109] sm:$0xff] %v371
      %405 = vst [vmem:[%s381 + $0x111] sm:$0xff] %v372
      %406 = vst [vmem:[%s381 + $0x121] sm:$0xff] %v373
      %407 = vst [vmem:[%s381 + $0x129] sm:$0xff] %v374
      %408 = vst [vmem:[%s381 + $0x139] sm:$0xff] %v375
      %409 = vst [vmem:[%s381 + $0x141] sm:$0xff] %v376
      %410 = vst [vmem:[%s381 + $0x151] sm:$0xff] %v377
      %411 = vst [vmem:[%s381 + $0x159] sm:$0xff] %v378
      %412 = vst [vmem:[%s381 + $0x169] sm:$0xff] %v379
      %413 = vst [vmem:[%s381 + $0x171] sm:$0xff] %v380
      %v414 = vld [vmem:[%s1] sm:$0xf]
      %v415 = vld [vmem:[%s1 + $0x4] sm:$0xf]
      %v416 = vld [vmem:[%s1 + $0x8] sm:$0xf]
      %v417 = vld [vmem:[%s1 + $0xc] sm:$0xf]
      %v418 = vld [vmem:[%s1 + $0x10] sm:$0xf]
      %v419 = vld [vmem:[%s1 + $0x14] sm:$0xf]
      %v420 = vld [vmem:[%s1 + $0x18] sm:$0xf]
      %v421 = vld [vmem:[%s1 + $0x1c] sm:$0xf]
      %v422 = vld [vmem:[%s1 + $0x20] sm:$0xf]
      %v423 = vld [vmem:[%s1 + $0x24] sm:$0xf]
      %v424 = vld [vmem:[%s1 + $0x28] sm:$0xf]
      %v425 = vld [vmem:[%s1 + $0x2c] sm:$0xf]
      %v426 = vld [vmem:[%s1 + $0x30] sm:$0xf]
      %v427 = vld [vmem:[%s1 + $0x34] sm:$0xf]
      %v428 = vld [vmem:[%s1 + $0x38] sm:$0xf]
      %v429 = vld [vmem:[%s1 + $0x3c] sm:$0xf]
      %v430 = vld [vmem:[%s1 + $0x40] sm:$0xf]
      %v431 = vld [vmem:[%s1 + $0x44] sm:$0xf]
      %v432 = vld [vmem:[%s1 + $0x48] sm:$0xf]
      %v433 = vld [vmem:[%s1 + $0x4c] sm:$0xf]
      %v434 = vld [vmem:[%s1 + $0x50] sm:$0xf]
      %v435 = vld [vmem:[%s1 + $0x54] sm:$0xf]
      %v436 = vld [vmem:[%s1 + $0x58] sm:$0xf]
      %v437 = vld [vmem:[%s1 + $0x5c] sm:$0xf]
      %v438 = vld [vmem:[%s1 + $0x60] sm:$0xf]
      %v439 = vld [vmem:[%s1 + $0x64] sm:$0xf]
      %v440 = vld [vmem:[%s1 + $0x68] sm:$0xf]
      %v441 = vld [vmem:[%s1 + $0x6c] sm:$0xf]
      %v442 = vld [vmem:[%s1 + $0x70] sm:$0xf]
      %v443 = vld [vmem:[%s1 + $0x74] sm:$0xf]
      %v444 = vld [vmem:[%s1 + $0x78] sm:$0xf]
      %v445 = vld [vmem:[%s1 + $0x7c] sm:$0xf]
      %v446 = vld [vmem:[%s1 + $0x80] sm:$0xf]
      %v447 = vld [vmem:[%s1 + $0x84] sm:$0xf]
      %v448 = vld [vmem:[%s1 + $0x88] sm:$0xf]
      %v449 = vld [vmem:[%s1 + $0x8c] sm:$0xf]
      %v450 = vld [vmem:[%s1 + $0x90] sm:$0xf]
      %v451 = vld [vmem:[%s1 + $0x94] sm:$0xf]
      %v452 = vld [vmem:[%s1 + $0x98] sm:$0xf]
      %v453 = vld [vmem:[%s1 + $0x9c] sm:$0xf]
      %v454 = vld [vmem:[%s1 + $0xa0] sm:$0xf]
      %v455 = vld [vmem:[%s1 + $0xa4] sm:$0xf]
      %v456 = vld [vmem:[%s1 + $0xa8] sm:$0xf]
      %v457 = vld [vmem:[%s1 + $0xac] sm:$0xf]
      %v458 = vld [vmem:[%s1 + $0xb0] sm:$0xf]
      %v459 = vld [vmem:[%s1 + $0xb4] sm:$0xf]
      %v460 = vld [vmem:[%s1 + $0xb8] sm:$0xf]
      %v461 = vld [vmem:[%s1 + $0xbc] sm:$0xf]
      %v462 = vld [vmem:[%s1 + $0xc0] sm:$0xf]
      %v463 = vld [vmem:[%s1 + $0xc4] sm:$0xf]
      %v464 = vld [vmem:[%s1 + $0xc8] sm:$0xf]
      %v465 = vld [vmem:[%s1 + $0xcc] sm:$0xf]
      %v466 = vld [vmem:[%s1 + $0xd0] sm:$0xf]
      %v467 = vld [vmem:[%s1 + $0xd4] sm:$0xf]
      %v468 = vld [vmem:[%s1 + $0xd8] sm:$0xf]
      %v469 = vld [vmem:[%s1 + $0xdc] sm:$0xf]
      %v470 = vld [vmem:[%s1 + $0xe0] sm:$0xf]
      %v471 = vld [vmem:[%s1 + $0xe4] sm:$0xf]
      %v472 = vld [vmem:[%s1 + $0xe8] sm:$0xf]
      %v473 = vld [vmem:[%s1 + $0xec] sm:$0xf]
      %v474 = vld [vmem:[%s1 + $0xf0] sm:$0xf]
      %v475 = vld [vmem:[%s1 + $0xf4] sm:$0xf]
      %v476 = vld [vmem:[%s1 + $0xf8] sm:$0xf]
      %v477 = vld [vmem:[%s1 + $0xfc] sm:$0xf]
      %v478 = vld [vmem:[%s1 + $0x100] sm:$0xf]
      %v479 = vld [vmem:[%s1 + $0x104] sm:$0xf]
      %v480 = vld [vmem:[%s1 + $0x108] sm:$0xf]
      %v481 = vld [vmem:[%s1 + $0x10c] sm:$0xf]
      %v482 = vld [vmem:[%s1 + $0x110] sm:$0xf]
      %v483 = vld [vmem:[%s1 + $0x114] sm:$0xf]
      %v484 = vld [vmem:[%s1 + $0x118] sm:$0xf]
      %v485 = vld [vmem:[%s1 + $0x11c] sm:$0xf]
      %v486 = vld [vmem:[%s1 + $0x120] sm:$0xf]
      %v487 = vld [vmem:[%s1 + $0x124] sm:$0xf]
      %v488 = vld [vmem:[%s1 + $0x128] sm:$0xf]
      %v489 = vld [vmem:[%s1 + $0x12c] sm:$0xf]
      %v490 = vld [vmem:[%s1 + $0x130] sm:$0xf]
      %v491 = vld [vmem:[%s1 + $0x134] sm:$0xf]
      %v492 = vld [vmem:[%s1 + $0x138] sm:$0xf]
      %v493 = vld [vmem:[%s1 + $0x13c] sm:$0xf]
      %v494 = vld [vmem:[%s1 + $0x140] sm:$0xf]
      %v495 = vld [vmem:[%s1 + $0x144] sm:$0xf]
      %v496 = vld [vmem:[%s1 + $0x148] sm:$0xf]
      %v497 = vld [vmem:[%s1 + $0x14c] sm:$0xf]
      %v498 = vld [vmem:[%s1 + $0x150] sm:$0xf]
      %v499 = vld [vmem:[%s1 + $0x154] sm:$0xf]
      %v500 = vld [vmem:[%s1 + $0x158] sm:$0xf]
      %v501 = vld [vmem:[%s1 + $0x15c] sm:$0xf]
      %v502 = vld [vmem:[%s1 + $0x160] sm:$0xf]
      %v503 = vld [vmem:[%s1 + $0x164] sm:$0xf]
      %v504 = vld [vmem:[%s1 + $0x168] sm:$0xf]
      %v505 = vld [vmem:[%s1 + $0x16c] sm:$0xf]
      %v506 = vld [vmem:[%s1 + $0x170] sm:$0xf]
      %v507 = vld [vmem:[%s1 + $0x174] sm:$0xf]
      %v508 = vld [vmem:[%s1 + $0x178] sm:$0xf]
      %v509 = vld [vmem:[%s1 + $0x17c] sm:$0xf]
      %v510 = vld [vmem:[%s1 + $0x180] sm:$0xf]
      %v511 = vld [vmem:[%s1 + $0x184] sm:$0xf]
      %v512 = vld [vmem:[%s1 + $0x188] sm:$0xf]
      %v513 = vld [vmem:[%s1 + $0x18c] sm:$0xf]
      %v514 = vld [vmem:[%s1 + $0x190] sm:$0xf]
      %v515 = vld [vmem:[%s1 + $0x194] sm:$0xf]
      %v516 = vld [vmem:[%s1 + $0x198] sm:$0xf]
      %v517 = vld [vmem:[%s1 + $0x19c] sm:$0xf]
      %v518 = vld [vmem:[%s1 + $0x1a0] sm:$0xf]
      %v519 = vld [vmem:[%s1 + $0x1a4] sm:$0xf]
      %v520 = vld [vmem:[%s1 + $0x1a8] sm:$0xf]
      %v521 = vld [vmem:[%s1 + $0x1ac] sm:$0xf]
      %v522 = vld [vmem:[%s1 + $0x1b0] sm:$0xf]
      %v523 = vld [vmem:[%s1 + $0x1b4] sm:$0xf]
      %v524 = vld [vmem:[%s1 + $0x1b8] sm:$0xf]
      %v525 = vld [vmem:[%s1 + $0x1bc] sm:$0xf]
      %v526 = vld [vmem:[%s1 + $0x1c0] sm:$0xf]
      %v527 = vld [vmem:[%s1 + $0x1c4] sm:$0xf]
      %v528 = vld [vmem:[%s1 + $0x1c8] sm:$0xf]
      %v529 = vld [vmem:[%s1 + $0x1cc] sm:$0xf]
      %v530 = vld [vmem:[%s1 + $0x1d0] sm:$0xf]
      %v531 = vld [vmem:[%s1 + $0x1d4] sm:$0xf]
      %v532 = vld [vmem:[%s1 + $0x1d8] sm:$0xf]
      %v533 = vld [vmem:[%s1 + $0x1dc] sm:$0xf]
      %v534 = vld [vmem:[%s1 + $0x1e0] sm:$0xf]
      %v535 = vld [vmem:[%s1 + $0x1e4] sm:$0xf]
      %v536 = vld [vmem:[%s1 + $0x1e8] sm:$0xf]
      %v537 = vld [vmem:[%s1 + $0x1ec] sm:$0xf]
      %v538 = vld [vmem:[%s1 + $0x1f0] sm:$0xf]
      %v539 = vld [vmem:[%s1 + $0x1f4] sm:$0xf]
      %v540 = vld [vmem:[%s1 + $0x1f8] sm:$0xf]
      %v541 = vld [vmem:[%s1 + $0x1fc] sm:$0xf]
      %v542 = vld [vmem:[%s1 + $0x200] sm:$0xf]
      %v543 = vld [vmem:[%s1 + $0x204] sm:$0xf]
      %v544 = vld [vmem:[%s1 + $0x208] sm:$0xf]
      %v545 = vld [vmem:[%s1 + $0x20c] sm:$0xf]
      %v546 = vld [vmem:[%s1 + $0x210] sm:$0xf]
      %v547 = vld [vmem:[%s1 + $0x214] sm:$0xf]
      %v548 = vld [vmem:[%s1 + $0x218] sm:$0xf]
      %v549 = vld [vmem:[%s1 + $0x21c] sm:$0xf]
      %v550 = vld [vmem:[%s1 + $0x220] sm:$0xf]
      %v551 = vld [vmem:[%s1 + $0x224] sm:$0xf]
      %v552 = vld [vmem:[%s1 + $0x228] sm:$0xf]
      %v553 = vld [vmem:[%s1 + $0x22c] sm:$0xf]
      %v554 = vld [vmem:[%s1 + $0x230] sm:$0xf]
      %v555 = vld [vmem:[%s1 + $0x234] sm:$0xf]
      %v556 = vld [vmem:[%s1 + $0x238] sm:$0xf]
      %v557 = vld [vmem:[%s1 + $0x23c] sm:$0xf]
      %v558 = vld [vmem:[#allocation2] sm:$0xff]
      %v559 = vld [vmem:[#allocation2 + $0x8] sm:$0xff]
      %v560 = vld [vmem:[#allocation2 + $0x18] sm:$0xff]
      %v561 = vld [vmem:[#allocation2 + $0x20] sm:$0xff]
      %v562 = vld [vmem:[#allocation2 + $0x30] sm:$0xff]
      %v563 = vld [vmem:[#allocation2 + $0x38] sm:$0xff]
      %v564 = vld [vmem:[#allocation2 + $0x48] sm:$0xff]
      %v565 = vld [vmem:[#allocation2 + $0x50] sm:$0xff]
      %v566 = vld [vmem:[#allocation2 + $0x60] sm:$0xff]
      %v567 = vld [vmem:[#allocation2 + $0x68] sm:$0xff]
      %v568 = vld [vmem:[#allocation2 + $0x78] sm:$0xff]
      %v569 = vld [vmem:[#allocation2 + $0x80] sm:$0xff]
      %v570 = vld [vmem:[#allocation2 + $0x90] sm:$0xff]
      %v571 = vld [vmem:[#allocation2 + $0x98] sm:$0xff]
      %v572 = vld [vmem:[#allocation2 + $0xa8] sm:$0xff]
      %v573 = vld [vmem:[#allocation2 + $0xb0] sm:$0xff]
      %v574 = vld [vmem:[#allocation2 + $0xc0] sm:$0xff]
      %v575 = vld [vmem:[#allocation2 + $0xc8] sm:$0xff]
      %v576 = vld [vmem:[#allocation2 + $0xd8] sm:$0xff]
      %v577 = vld [vmem:[#allocation2 + $0xe0] sm:$0xff]
      %v578 = vld [vmem:[#allocation2 + $0xf0] sm:$0xff]
      %v579 = vld [vmem:[#allocation2 + $0xf8] sm:$0xff]
      %v580 = vld [vmem:[#allocation2 + $0x108] sm:$0xff]
      %v581 = vld [vmem:[#allocation2 + $0x110] sm:$0xff]
      %v582 = vld [vmem:[#allocation2 + $0x120] sm:$0xff]
      %v583 = vld [vmem:[#allocation2 + $0x128] sm:$0xff]
      %v584 = vld [vmem:[#allocation2 + $0x138] sm:$0xff]
      %v585 = vld [vmem:[#allocation2 + $0x140] sm:$0xff]
      %v586 = vld [vmem:[#allocation2 + $0x150] sm:$0xff]
      %v587 = vld [vmem:[#allocation2 + $0x158] sm:$0xff]
      %v588 = vld [vmem:[#allocation2 + $0x168] sm:$0xff]
      %v589 = vld [vmem:[#allocation2 + $0x170] sm:$0xff]
      %v590 = vld [vmem:[#allocation2 + $0x1] sm:$0xff]
      %v591 = vld [vmem:[#allocation2 + $0x9] sm:$0xff]
      %v592 = vld [vmem:[#allocation2 + $0x19] sm:$0xff]
      %v593 = vld [vmem:[#allocation2 + $0x21] sm:$0xff]
      %v594 = vld [vmem:[#allocation2 + $0x31] sm:$0xff]
      %v595 = vld [vmem:[#allocation2 + $0x39] sm:$0xff]
      %v596 = vld [vmem:[#allocation2 + $0x49] sm:$0xff]
      %v597 = vld [vmem:[#allocation2 + $0x51] sm:$0xff]
      %v598 = vld [vmem:[#allocation2 + $0x61] sm:$0xff]
      %v599 = vld [vmem:[#allocation2 + $0x69] sm:$0xff]
      %v600 = vld [vmem:[#allocation2 + $0x79] sm:$0xff]
      %v601 = vld [vmem:[#allocation2 + $0x81] sm:$0xff]
      %v602 = vld [vmem:[#allocation2 + $0x91] sm:$0xff]
      %v603 = vld [vmem:[#allocation2 + $0x99] sm:$0xff]
      %v604 = vld [vmem:[#allocation2 + $0xa9] sm:$0xff]
      %v605 = vld [vmem:[#allocation2 + $0xb1] sm:$0xff]
      %v606 = vld [vmem:[#allocation2 + $0xc1] sm:$0xff]
      %v607 = vld [vmem:[#allocation2 + $0xc9] sm:$0xff]
      %v608 = vld [vmem:[#allocation2 + $0xd9] sm:$0xff]
      %v609 = vld [vmem:[#allocation2 + $0xe1] sm:$0xff]
      %v610 = vld [vmem:[#allocation2 + $0xf1] sm:$0xff]
      %v611 = vld [vmem:[#allocation2 + $0xf9] sm:$0xff]
      %v612 = vld [vmem:[#allocation2 + $0x109] sm:$0xff]
      %v613 = vld [vmem:[#allocation2 + $0x111] sm:$0xff]
      %v614 = vld [vmem:[#allocation2 + $0x121] sm:$0xff]
      %v615 = vld [vmem:[#allocation2 + $0x129] sm:$0xff]
      %v616 = vld [vmem:[#allocation2 + $0x139] sm:$0xff]
      %v617 = vld [vmem:[#allocation2 + $0x141] sm:$0xff]
      %v618 = vld [vmem:[#allocation2 + $0x151] sm:$0xff]
      %v619 = vld [vmem:[#allocation2 + $0x159] sm:$0xff]
      %v620 = vld [vmem:[#allocation2 + $0x169] sm:$0xff]
      %v621 = vld [vmem:[#allocation2 + $0x171] sm:$0xff]
      %v622 = vld [vmem:[#allocation2 + $0x2] sm:$0xff]
      %v623 = vld [vmem:[#allocation2 + $0xa] sm:$0xff]
      %v624 = vld [vmem:[#allocation2 + $0x1a] sm:$0xff]
      %v625 = vld [vmem:[#allocation2 + $0x22] sm:$0xff]
      %v626 = vld [vmem:[#allocation2 + $0x32] sm:$0xff]
      %v627 = vld [vmem:[#allocation2 + $0x3a] sm:$0xff]
      %v628 = vld [vmem:[#allocation2 + $0x4a] sm:$0xff]
      %v629 = vld [vmem:[#allocation2 + $0x52] sm:$0xff]
      %v630 = vld [vmem:[#allocation2 + $0x62] sm:$0xff]
      %v631 = vld [vmem:[#allocation2 + $0x6a] sm:$0xff]
      %v632 = vld [vmem:[#allocation2 + $0x7a] sm:$0xff]
      %v633 = vld [vmem:[#allocation2 + $0x82] sm:$0xff]
      %v634 = vld [vmem:[#allocation2 + $0x92] sm:$0xff]
      %v635 = vld [vmem:[#allocation2 + $0x9a] sm:$0xff]
      %v636 = vld [vmem:[#allocation2 + $0xaa] sm:$0xff]
      %v637 = vld [vmem:[#allocation2 + $0xb2] sm:$0xff]
      %v638 = vld [vmem:[#allocation2 + $0xc2] sm:$0xff]
      %v639 = vld [vmem:[#allocation2 + $0xca] sm:$0xff]
      %v640 = vld [vmem:[#allocation2 + $0xda] sm:$0xff]
      %v641 = vld [vmem:[#allocation2 + $0xe2] sm:$0xff]
      %v642 = vld [vmem:[#allocation2 + $0xf2] sm:$0xff]
      %v643 = vld [vmem:[#allocation2 + $0xfa] sm:$0xff]
      %v644 = vld [vmem:[#allocation2 + $0x10a] sm:$0xff]
      %v645 = vld [vmem:[#allocation2 + $0x112] sm:$0xff]
      %v646 = vld [vmem:[#allocation2 + $0x122] sm:$0xff]
      %v647 = vld [vmem:[#allocation2 + $0x12a] sm:$0xff]
      %v648 = vld [vmem:[#allocation2 + $0x13a] sm:$0xff]
      %v649 = vld [vmem:[#allocation2 + $0x142] sm:$0xff]
      %v650 = vld [vmem:[#allocation2 + $0x152] sm:$0xff]
      %v651 = vld [vmem:[#allocation2 + $0x15a] sm:$0xff]
      %v652 = vld [vmem:[#allocation2 + $0x16a] sm:$0xff]
      %v653 = vld [vmem:[#allocation2 + $0x172] sm:$0xff]
      %v654 = vld [vmem:[%s381] sm:$0xff]
      %v655 = vld [vmem:[%s381 + $0x8] sm:$0xff]
      %v656 = vld [vmem:[%s381 + $0x18] sm:$0xff]
      %v657 = vld [vmem:[%s381 + $0x20] sm:$0xff]
      %v658 = vld [vmem:[%s381 + $0x30] sm:$0xff]
      %v659 = vld [vmem:[%s381 + $0x38] sm:$0xff]
      %v660 = vld [vmem:[%s381 + $0x48] sm:$0xff]
      %v661 = vld [vmem:[%s381 + $0x50] sm:$0xff]
      %v662 = vld [vmem:[%s381 + $0x60] sm:$0xff]
      %v663 = vld [vmem:[%s381 + $0x68] sm:$0xff]
      %v664 = vld [vmem:[%s381 + $0x78] sm:$0xff]
      %v665 = vld [vmem:[%s381 + $0x80] sm:$0xff]
      %v666 = vld [vmem:[%s381 + $0x90] sm:$0xff]
      %v667 = vld [vmem:[%s381 + $0x98] sm:$0xff]
      %v668 = vld [vmem:[%s381 + $0xa8] sm:$0xff]
      %v669 = vld [vmem:[%s381 + $0xb0] sm:$0xff]
      %v670 = vld [vmem:[%s381 + $0xc0] sm:$0xff]
      %v671 = vld [vmem:[%s381 + $0xc8] sm:$0xff]
      %v672 = vld [vmem:[%s381 + $0xd8] sm:$0xff]
      %v673 = vld [vmem:[%s381 + $0xe0] sm:$0xff]
      %v674 = vld [vmem:[%s381 + $0xf0] sm:$0xff]
      %v675 = vld [vmem:[%s381 + $0xf8] sm:$0xff]
      %v676 = vld [vmem:[%s381 + $0x108] sm:$0xff]
      %v677 = vld [vmem:[%s381 + $0x110] sm:$0xff]
      %v678 = vld [vmem:[%s381 + $0x120] sm:$0xff]
      %v679 = vld [vmem:[%s381 + $0x128] sm:$0xff]
      %v680 = vld [vmem:[%s381 + $0x138] sm:$0xff]
      %v681 = vld [vmem:[%s381 + $0x140] sm:$0xff]
      %v682 = vld [vmem:[%s381 + $0x150] sm:$0xff]
      %v683 = vld [vmem:[%s381 + $0x158] sm:$0xff]
      %v684 = vld [vmem:[%s381 + $0x168] sm:$0xff]
      %v685 = vld [vmem:[%s381 + $0x170] sm:$0xff]
      %v686 = vld [vmem:[%s381 + $0x1] sm:$0xff]
      %v687 = vld [vmem:[%s381 + $0x9] sm:$0xff]
      %v688 = vld [vmem:[%s381 + $0x19] sm:$0xff]
      %v689 = vld [vmem:[%s381 + $0x21] sm:$0xff]
      %v690 = vld [vmem:[%s381 + $0x31] sm:$0xff]
      %v691 = vld [vmem:[%s381 + $0x39] sm:$0xff]
      %v692 = vld [vmem:[%s381 + $0x49] sm:$0xff]
      %v693 = vld [vmem:[%s381 + $0x51] sm:$0xff]
      %v694 = vld [vmem:[%s381 + $0x61] sm:$0xff]
      %v695 = vld [vmem:[%s381 + $0x69] sm:$0xff]
      %v696 = vld [vmem:[%s381 + $0x79] sm:$0xff]
      %v697 = vld [vmem:[%s381 + $0x81] sm:$0xff]
      %v698 = vld [vmem:[%s381 + $0x91] sm:$0xff]
      %v699 = vld [vmem:[%s381 + $0x99] sm:$0xff]
      %v700 = vld [vmem:[%s381 + $0xa9] sm:$0xff]
      %v701 = vld [vmem:[%s381 + $0xb1] sm:$0xff]
      %v702 = vld [vmem:[%s381 + $0xc1] sm:$0xff]
      %v703 = vld [vmem:[%s381 + $0xc9] sm:$0xff]
      %v704 = vld [vmem:[%s381 + $0xd9] sm:$0xff]
      %v705 = vld [vmem:[%s381 + $0xe1] sm:$0xff]
      %v706 = vld [vmem:[%s381 + $0xf1] sm:$0xff]
      %v707 = vld [vmem:[%s381 + $0xf9] sm:$0xff]
      %v708 = vld [vmem:[%s381 + $0x109] sm:$0xff]
      %v709 = vld [vmem:[%s381 + $0x111] sm:$0xff]
      %v710 = vld [vmem:[%s381 + $0x121] sm:$0xff]
      %v711 = vld [vmem:[%s381 + $0x129] sm:$0xff]
      %v712 = vld [vmem:[%s381 + $0x139] sm:$0xff]
      %v713 = vld [vmem:[%s381 + $0x141] sm:$0xff]
      %v714 = vld [vmem:[%s381 + $0x151] sm:$0xff]
      %v715 = vld [vmem:[%s381 + $0x159] sm:$0xff]
      %v716 = vld [vmem:[%s381 + $0x169] sm:$0xff]
      %v717 = vld [vmem:[%s381 + $0x171] sm:$0xff]
      %v718 = vld [vmem:[%s381 + $0x2] sm:$0xff]
      %v719 = vld [vmem:[%s381 + $0xa] sm:$0xff]
      %v720 = vld [vmem:[%s381 + $0x1a] sm:$0xff]
      %v721 = vld [vmem:[%s381 + $0x22] sm:$0xff]
      %v722 = vld [vmem:[%s381 + $0x32] sm:$0xff]
      %v723 = vld [vmem:[%s381 + $0x3a] sm:$0xff]
      %v724 = vld [vmem:[%s381 + $0x4a] sm:$0xff]
      %v725 = vld [vmem:[%s381 + $0x52] sm:$0xff]
      %v726 = vld [vmem:[%s381 + $0x62] sm:$0xff]
      %v727 = vld [vmem:[%s381 + $0x6a] sm:$0xff]
      %v728 = vld [vmem:[%s381 + $0x7a] sm:$0xff]
      %v729 = vld [vmem:[%s381 + $0x82] sm:$0xff]
      %v730 = vld [vmem:[%s381 + $0x92] sm:$0xff]
      %v731 = vld [vmem:[%s381 + $0x9a] sm:$0xff]
      %v732 = vld [vmem:[%s381 + $0xaa] sm:$0xff]
      %v733 = vld [vmem:[%s381 + $0xb2] sm:$0xff]
      %v734 = vld [vmem:[%s381 + $0xc2] sm:$0xff]
      %v735 = vld [vmem:[%s381 + $0xca] sm:$0xff]
      %v736 = vld [vmem:[%s381 + $0xda] sm:$0xff]
      %v737 = vld [vmem:[%s381 + $0xe2] sm:$0xff]
      %v738 = vld [vmem:[%s381 + $0xf2] sm:$0xff]
      %v739 = vld [vmem:[%s381 + $0xfa] sm:$0xff]
      %v740 = vld [vmem:[%s381 + $0x10a] sm:$0xff]
      %v741 = vld [vmem:[%s381 + $0x112] sm:$0xff]
      %v742 = vld [vmem:[%s381 + $0x122] sm:$0xff]
      %v743 = vld [vmem:[%s381 + $0x12a] sm:$0xff]
      %v744 = vld [vmem:[%s381 + $0x13a] sm:$0xff]
      %v745 = vld [vmem:[%s381 + $0x142] sm:$0xff]
      %v746 = vld [vmem:[%s381 + $0x152] sm:$0xff]
      %v747 = vld [vmem:[%s381 + $0x15a] sm:$0xff]
      %v748 = vld [vmem:[%s381 + $0x16a] sm:$0xff]
      %v749 = vld [vmem:[%s381 + $0x172] sm:$0xff]
      %s750 = scalar_lea.vmem [#allocation2], 48
      %v751 = vld [vmem:[%s750] sm:$0xff]
      %v752 = vld [vmem:[%s750 + $0x8] sm:$0xff]
      %v753 = vld [vmem:[%s750 + $0x18] sm:$0xff]
      %v754 = vld [vmem:[%s750 + $0x20] sm:$0xff]
      %v755 = vld [vmem:[%s750 + $0x30] sm:$0xff]
      %v756 = vld [vmem:[%s750 + $0x38] sm:$0xff]
      %v757 = vld [vmem:[%s750 + $0x48] sm:$0xff]
      %v758 = vld [vmem:[%s750 + $0x50] sm:$0xff]
      %v759 = vld [vmem:[%s750 + $0x60] sm:$0xff]
      %v760 = vld [vmem:[%s750 + $0x68] sm:$0xff]
      %v761 = vld [vmem:[%s750 + $0x78] sm:$0xff]
      %v762 = vld [vmem:[%s750 + $0x80] sm:$0xff]
      %v763 = vld [vmem:[%s750 + $0x90] sm:$0xff]
      %v764 = vld [vmem:[%s750 + $0x98] sm:$0xff]
      %v765 = vld [vmem:[%s750 + $0xa8] sm:$0xff]
      %v766 = vld [vmem:[%s750 + $0xb0] sm:$0xff]
      %v767 = vld [vmem:[%s750 + $0xc0] sm:$0xff]
      %v768 = vld [vmem:[%s750 + $0xc8] sm:$0xff]
      %v769 = vld [vmem:[%s750 + $0xd8] sm:$0xff]
      %v770 = vld [vmem:[%s750 + $0xe0] sm:$0xff]
      %v771 = vld [vmem:[%s750 + $0xf0] sm:$0xff]
      %v772 = vld [vmem:[%s750 + $0xf8] sm:$0xff]
      %v773 = vld [vmem:[%s750 + $0x108] sm:$0xff]
      %v774 = vld [vmem:[%s750 + $0x110] sm:$0xff]
      %v775 = vld [vmem:[%s750 + $0x120] sm:$0xff]
      %v776 = vld [vmem:[%s750 + $0x128] sm:$0xff]
      %v777 = vld [vmem:[%s750 + $0x138] sm:$0xff]
      %v778 = vld [vmem:[%s750 + $0x140] sm:$0xff]
      %v779 = vld [vmem:[%s750 + $0x150] sm:$0xff]
      %v780 = vld [vmem:[%s750 + $0x158] sm:$0xff]
      %v781 = vld [vmem:[%s750 + $0x168] sm:$0xff]
      %v782 = vld [vmem:[%s750 + $0x170] sm:$0xff]
      %v783 = vld [vmem:[%s750 + $0x1] sm:$0xff]
      %v784 = vld [vmem:[%s750 + $0x9] sm:$0xff]
      %v785 = vld [vmem:[%s750 + $0x19] sm:$0xff]
      %v786 = vld [vmem:[%s750 + $0x21] sm:$0xff]
      %v787 = vld [vmem:[%s750 + $0x31] sm:$0xff]
      %v788 = vld [vmem:[%s750 + $0x39] sm:$0xff]
      %v789 = vld [vmem:[%s750 + $0x49] sm:$0xff]
      %v790 = vld [vmem:[%s750 + $0x51] sm:$0xff]
      %v791 = vld [vmem:[%s750 + $0x61] sm:$0xff]
      %v792 = vld [vmem:[%s750 + $0x69] sm:$0xff]
      %v793 = vld [vmem:[%s750 + $0x79] sm:$0xff]
      %v794 = vld [vmem:[%s750 + $0x81] sm:$0xff]
      %v795 = vld [vmem:[%s750 + $0x91] sm:$0xff]
      %v796 = vld [vmem:[%s750 + $0x99] sm:$0xff]
      %v797 = vld [vmem:[%s750 + $0xa9] sm:$0xff]
      %v798 = vld [vmem:[%s750 + $0xb1] sm:$0xff]
      %v799 = vld [vmem:[%s750 + $0xc1] sm:$0xff]
      %v800 = vld [vmem:[%s750 + $0xc9] sm:$0xff]
      %v801 = vld [vmem:[%s750 + $0xd9] sm:$0xff]
      %v802 = vld [vmem:[%s750 + $0xe1] sm:$0xff]
      %v803 = vld [vmem:[%s750 + $0xf1] sm:$0xff]
      %v804 = vld [vmem:[%s750 + $0xf9] sm:$0xff]
      %v805 = vld [vmem:[%s750 + $0x109] sm:$0xff]
      %v806 = vld [vmem:[%s750 + $0x111] sm:$0xff]
      %v807 = vld [vmem:[%s750 + $0x121] sm:$0xff]
      %v808 = vld [vmem:[%s750 + $0x129] sm:$0xff]
      %v809 = vld [vmem:[%s750 + $0x139] sm:$0xff]
      %v810 = vld [vmem:[%s750 + $0x141] sm:$0xff]
      %v811 = vld [vmem:[%s750 + $0x151] sm:$0xff]
      %v812 = vld [vmem:[%s750 + $0x159] sm:$0xff]
      %v813 = vld [vmem:[%s750 + $0x169] sm:$0xff]
      %v814 = vld [vmem:[%s750 + $0x171] sm:$0xff]
      %v815 = vld [vmem:[%s750 + $0x2] sm:$0xff]
      %v816 = vld [vmem:[%s750 + $0xa] sm:$0xff]
      %v817 = vld [vmem:[%s750 + $0x1a] sm:$0xff]
      %v818 = vld [vmem:[%s750 + $0x22] sm:$0xff]
      %v819 = vld [vmem:[%s750 + $0x32] sm:$0xff]
      %v820 = vld [vmem:[%s750 + $0x3a] sm:$0xff]
      %v821 = vld [vmem:[%s750 + $0x4a] sm:$0xff]
      %v822 = vld [vmem:[%s750 + $0x52] sm:$0xff]
      %v823 = vld [vmem:[%s750 + $0x62] sm:$0xff]
      %v824 = vld [vmem:[%s750 + $0x6a] sm:$0xff]
      %v825 = vld [vmem:[%s750 + $0x7a] sm:$0xff]
      %v826 = vld [vmem:[%s750 + $0x82] sm:$0xff]
      %v827 = vld [vmem:[%s750 + $0x92] sm:$0xff]
      %v828 = vld [vmem:[%s750 + $0x9a] sm:$0xff]
      %v829 = vld [vmem:[%s750 + $0xaa] sm:$0xff]
      %v830 = vld [vmem:[%s750 + $0xb2] sm:$0xff]
      %v831 = vld [vmem:[%s750 + $0xc2] sm:$0xff]
      %v832 = vld [vmem:[%s750 + $0xca] sm:$0xff]
      %v833 = vld [vmem:[%s750 + $0xda] sm:$0xff]
      %v834 = vld [vmem:[%s750 + $0xe2] sm:$0xff]
      %v835 = vld [vmem:[%s750 + $0xf2] sm:$0xff]
      %v836 = vld [vmem:[%s750 + $0xfa] sm:$0xff]
      %v837 = vld [vmem:[%s750 + $0x10a] sm:$0xff]
      %v838 = vld [vmem:[%s750 + $0x112] sm:$0xff]
      %v839 = vld [vmem:[%s750 + $0x122] sm:$0xff]
      %v840 = vld [vmem:[%s750 + $0x12a] sm:$0xff]
      %v841 = vld [vmem:[%s750 + $0x13a] sm:$0xff]
      %v842 = vld [vmem:[%s750 + $0x142] sm:$0xff]
      %v843 = vld [vmem:[%s750 + $0x152] sm:$0xff]
      %v844 = vld [vmem:[%s750 + $0x15a] sm:$0xff]
      %v845 = vld [vmem:[%s750 + $0x16a] sm:$0xff]
      %v846 = vld [vmem:[%s750 + $0x172] sm:$0xff]
      %v847 = vpack.c.bf16 %v559, %v558
      %v848 = vpack.c.bf16 %v591, %v590
      %v849 = vpack.c.bf16 %v623, %v622
      %v850 = vpack.c.bf16 %v655, %v654
      %v851 = vpack.c.bf16 %v687, %v686
      %v852 = vpack.c.bf16 %v719, %v718
      %v853 = vpack.c.bf16 %v752, %v751
      %v854 = vpack.c.bf16 %v784, %v783
      %v855 = vpack.c.bf16 %v816, %v815
      %v856 = vpack.c.bf16 %v561, %v560
      %v857 = vpack.c.bf16 %v593, %v592
      %v858 = vpack.c.bf16 %v625, %v624
      %v859 = vpack.c.bf16 %v657, %v656
      %v860 = vpack.c.bf16 %v689, %v688
      %v861 = vpack.c.bf16 %v721, %v720
      %v862 = vpack.c.bf16 %v754, %v753
      %v863 = vpack.c.bf16 %v786, %v785
      %v864 = vpack.c.bf16 %v818, %v817
      %v865 = vpack.c.bf16 %v563, %v562
      %v866 = vpack.c.bf16 %v595, %v594
      %v867 = vpack.c.bf16 %v627, %v626
      %v868 = vpack.c.bf16 %v659, %v658
      %v869 = vpack.c.bf16 %v691, %v690
      %v870 = vpack.c.bf16 %v723, %v722
      %v871 = vpack.c.bf16 %v756, %v755
      %v872 = vpack.c.bf16 %v788, %v787
      %v873 = vpack.c.bf16 %v820, %v819
      %v874 = vpack.c.bf16 %v565, %v564
      %v875 = vpack.c.bf16 %v597, %v596
      %v876 = vpack.c.bf16 %v629, %v628
      %v877 = vpack.c.bf16 %v661, %v660
      %v878 = vpack.c.bf16 %v693, %v692
      %v879 = vpack.c.bf16 %v725, %v724
      %v880 = vpack.c.bf16 %v758, %v757
      %v881 = vpack.c.bf16 %v790, %v789
      %v882 = vpack.c.bf16 %v822, %v821
      %v883 = vpack.c.bf16 %v567, %v566
      %v884 = vpack.c.bf16 %v599, %v598
      %v885 = vpack.c.bf16 %v631, %v630
      %v886 = vpack.c.bf16 %v663, %v662
      %v887 = vpack.c.bf16 %v695, %v694
      %v888 = vpack.c.bf16 %v727, %v726
      %v889 = vpack.c.bf16 %v760, %v759
      %v890 = vpack.c.bf16 %v792, %v791
      %v891 = vpack.c.bf16 %v824, %v823
      %v892 = vpack.c.bf16 %v569, %v568
      %v893 = vpack.c.bf16 %v601, %v600
      %v894 = vpack.c.bf16 %v633, %v632
      %v895 = vpack.c.bf16 %v665, %v664
      %v896 = vpack.c.bf16 %v697, %v696
      %v897 = vpack.c.bf16 %v729, %v728
      %v898 = vpack.c.bf16 %v762, %v761
      %v899 = vpack.c.bf16 %v794, %v793
      %v900 = vpack.c.bf16 %v826, %v825
      %v901 = vpack.c.bf16 %v571, %v570
      %v902 = vpack.c.bf16 %v603, %v602
      %v903 = vpack.c.bf16 %v635, %v634
      %v904 = vpack.c.bf16 %v667, %v666
      %v905 = vpack.c.bf16 %v699, %v698
      %v906 = vpack.c.bf16 %v731, %v730
      %v907 = vpack.c.bf16 %v764, %v763
      %v908 = vpack.c.bf16 %v796, %v795
      %v909 = vpack.c.bf16 %v828, %v827
      %v910 = vpack.c.bf16 %v573, %v572
      %v911 = vpack.c.bf16 %v605, %v604
      %v912 = vpack.c.bf16 %v637, %v636
      %v913 = vpack.c.bf16 %v669, %v668
      %v914 = vpack.c.bf16 %v701, %v700
      %v915 = vpack.c.bf16 %v733, %v732
      %v916 = vpack.c.bf16 %v766, %v765
      %v917 = vpack.c.bf16 %v798, %v797
      %v918 = vpack.c.bf16 %v830, %v829
      %v919 = vpack.c.bf16 %v575, %v574
      %v920 = vpack.c.bf16 %v607, %v606
      %v921 = vpack.c.bf16 %v639, %v638
      %v922 = vpack.c.bf16 %v671, %v670
      %v923 = vpack.c.bf16 %v703, %v702
      %v924 = vpack.c.bf16 %v735, %v734
      %v925 = vpack.c.bf16 %v768, %v767
      %v926 = vpack.c.bf16 %v800, %v799
      %v927 = vpack.c.bf16 %v832, %v831
      %v928 = vpack.c.bf16 %v577, %v576
      %v929 = vpack.c.bf16 %v609, %v608
      %v930 = vpack.c.bf16 %v641, %v640
      %v931 = vpack.c.bf16 %v673, %v672
      %v932 = vpack.c.bf16 %v705, %v704
      %v933 = vpack.c.bf16 %v737, %v736
      %v934 = vpack.c.bf16 %v770, %v769
      %v935 = vpack.c.bf16 %v802, %v801
      %v936 = vpack.c.bf16 %v834, %v833
      %v937 = vpack.c.bf16 %v579, %v578
      %v938 = vpack.c.bf16 %v611, %v610
      %v939 = vpack.c.bf16 %v643, %v642
      %v940 = vpack.c.bf16 %v675, %v674
      %v941 = vpack.c.bf16 %v707, %v706
      %v942 = vpack.c.bf16 %v739, %v738
      %v943 = vpack.c.bf16 %v772, %v771
      %v944 = vpack.c.bf16 %v804, %v803
      %v945 = vpack.c.bf16 %v836, %v835
      %v946 = vpack.c.bf16 %v581, %v580
      %v947 = vpack.c.bf16 %v613, %v612
      %v948 = vpack.c.bf16 %v645, %v644
      %v949 = vpack.c.bf16 %v677, %v676
      %v950 = vpack.c.bf16 %v709, %v708
      %v951 = vpack.c.bf16 %v741, %v740
      %v952 = vpack.c.bf16 %v774, %v773
      %v953 = vpack.c.bf16 %v806, %v805
      %v954 = vpack.c.bf16 %v838, %v837
      %v955 = vpack.c.bf16 %v583, %v582
      %v956 = vpack.c.bf16 %v615, %v614
      %v957 = vpack.c.bf16 %v647, %v646
      %v958 = vpack.c.bf16 %v679, %v678
      %v959 = vpack.c.bf16 %v711, %v710
      %v960 = vpack.c.bf16 %v743, %v742
      %v961 = vpack.c.bf16 %v776, %v775
      %v962 = vpack.c.bf16 %v808, %v807
      %v963 = vpack.c.bf16 %v840, %v839
      %v964 = vpack.c.bf16 %v585, %v584
      %v965 = vpack.c.bf16 %v617, %v616
      %v966 = vpack.c.bf16 %v649, %v648
      %v967 = vpack.c.bf16 %v681, %v680
      %v968 = vpack.c.bf16 %v713, %v712
      %v969 = vpack.c.bf16 %v745, %v744
      %v970 = vpack.c.bf16 %v778, %v777
      %v971 = vpack.c.bf16 %v810, %v809
      %v972 = vpack.c.bf16 %v842, %v841
      %v973 = vpack.c.bf16 %v587, %v586
      %v974 = vpack.c.bf16 %v619, %v618
      %v975 = vpack.c.bf16 %v651, %v650
      %v976 = vpack.c.bf16 %v683, %v682
      %v977 = vpack.c.bf16 %v715, %v714
      %v978 = vpack.c.bf16 %v747, %v746
      %v979 = vpack.c.bf16 %v780, %v779
      %v980 = vpack.c.bf16 %v812, %v811
      %v981 = vpack.c.bf16 %v844, %v843
      %v982 = vpack.c.bf16 %v589, %v588
      %v983 = vpack.c.bf16 %v621, %v620
      %v984 = vpack.c.bf16 %v653, %v652
      %v985 = vpack.c.bf16 %v685, %v684
      %v986 = vpack.c.bf16 %v717, %v716
      %v987 = vpack.c.bf16 %v749, %v748
      %v988 = vpack.c.bf16 %v782, %v781
      %v989 = vpack.c.bf16 %v814, %v813
      %v990 = vpack.c.bf16 %v846, %v845
      %v991 = vld [vmem:[%s2] sm:$0x1]
      %v993 = vlaneseq
      %v994 = vshrl.u32 %v993, 7
      %v995 = vsub.s32 0, %v994
      %v996 = vrot.slane %v991, %v995
      %v1142 = vunpack.c.l.b16 %v414
      %v1143 = vunpack.c.l.b16 %v415
      %v1144 = vunpack.c.l.b16 %v416
      %v1145 = vunpack.c.l.b16 %v417
      %v1146 = vunpack.c.l.b16 %v418
      %v1147 = vunpack.c.l.b16 %v419
      %v1148 = vunpack.c.l.b16 %v420
      %v1149 = vunpack.c.l.b16 %v421
      %v1150 = vunpack.c.l.b16 %v422
      %v1151 = vunpack.c.l.b16 %v423
      %v1152 = vunpack.c.l.b16 %v424
      %v1153 = vunpack.c.l.b16 %v425
      %v1154 = vunpack.c.l.b16 %v426
      %v1155 = vunpack.c.l.b16 %v427
      %v1156 = vunpack.c.l.b16 %v428
      %v1157 = vunpack.c.l.b16 %v429
      %v1158 = vunpack.c.l.b16 %v430
      %v1159 = vunpack.c.l.b16 %v431
      %v1160 = vunpack.c.l.b16 %v432
      %v1161 = vunpack.c.l.b16 %v433
      %v1162 = vunpack.c.l.b16 %v434
      %v1163 = vunpack.c.l.b16 %v435
      %v1164 = vunpack.c.l.b16 %v436
      %v1165 = vunpack.c.l.b16 %v437
      %v1166 = vunpack.c.l.b16 %v438
      %v1167 = vunpack.c.l.b16 %v439
      %v1168 = vunpack.c.l.b16 %v440
      %v1169 = vunpack.c.l.b16 %v441
      %v1170 = vunpack.c.l.b16 %v442
      %v1171 = vunpack.c.l.b16 %v443
      %v1172 = vunpack.c.l.b16 %v444
      %v1173 = vunpack.c.l.b16 %v445
      %v1174 = vunpack.c.l.b16 %v446
      %v1175 = vunpack.c.l.b16 %v447
      %v1176 = vunpack.c.l.b16 %v448
      %v1177 = vunpack.c.l.b16 %v449
      %v1178 = vunpack.c.l.b16 %v450
      %v1179 = vunpack.c.l.b16 %v451
      %v1180 = vunpack.c.l.b16 %v452
      %v1181 = vunpack.c.l.b16 %v453
      %v1182 = vunpack.c.l.b16 %v454
      %v1183 = vunpack.c.l.b16 %v455
      %v1184 = vunpack.c.l.b16 %v456
      %v1185 = vunpack.c.l.b16 %v457
      %v1186 = vunpack.c.l.b16 %v458
      %v1187 = vunpack.c.l.b16 %v459
      %v1188 = vunpack.c.l.b16 %v460
      %v1189 = vunpack.c.l.b16 %v461
      %v1190 = vunpack.c.l.b16 %v462
      %v1191 = vunpack.c.l.b16 %v463
      %v1192 = vunpack.c.l.b16 %v464
      %v1193 = vunpack.c.l.b16 %v465
      %v1194 = vunpack.c.l.b16 %v466
      %v1195 = vunpack.c.l.b16 %v467
      %v1196 = vunpack.c.l.b16 %v468
      %v1197 = vunpack.c.l.b16 %v469
      %v1198 = vunpack.c.l.b16 %v470
      %v1199 = vunpack.c.l.b16 %v471
      %v1200 = vunpack.c.l.b16 %v472
      %v1201 = vunpack.c.l.b16 %v473
      %v1202 = vunpack.c.l.b16 %v474
      %v1203 = vunpack.c.l.b16 %v475
      %v1204 = vunpack.c.l.b16 %v476
      %v1205 = vunpack.c.l.b16 %v477
      %v1206 = vunpack.c.l.b16 %v478
      %v1207 = vunpack.c.l.b16 %v479
      %v1208 = vunpack.c.l.b16 %v480
      %v1209 = vunpack.c.l.b16 %v481
      %v1210 = vunpack.c.l.b16 %v482
      %v1211 = vunpack.c.l.b16 %v483
      %v1212 = vunpack.c.l.b16 %v484
      %v1213 = vunpack.c.l.b16 %v485
      %v1214 = vunpack.c.l.b16 %v486
      %v1215 = vunpack.c.l.b16 %v487
      %v1216 = vunpack.c.l.b16 %v488
      %v1217 = vunpack.c.l.b16 %v489
      %v1218 = vunpack.c.l.b16 %v490
      %v1219 = vunpack.c.l.b16 %v491
      %v1220 = vunpack.c.l.b16 %v492
      %v1221 = vunpack.c.l.b16 %v493
      %v1222 = vunpack.c.l.b16 %v494
      %v1223 = vunpack.c.l.b16 %v495
      %v1224 = vunpack.c.l.b16 %v496
      %v1225 = vunpack.c.l.b16 %v497
      %v1226 = vunpack.c.l.b16 %v498
      %v1227 = vunpack.c.l.b16 %v499
      %v1228 = vunpack.c.l.b16 %v500
      %v1229 = vunpack.c.l.b16 %v501
      %v1230 = vunpack.c.l.b16 %v502
      %v1231 = vunpack.c.l.b16 %v503
      %v1232 = vunpack.c.l.b16 %v504
      %v1233 = vunpack.c.l.b16 %v505
      %v1234 = vunpack.c.l.b16 %v506
      %v1235 = vunpack.c.l.b16 %v507
      %v1236 = vunpack.c.l.b16 %v508
      %v1237 = vunpack.c.l.b16 %v509
      %v1238 = vunpack.c.l.b16 %v510
      %v1239 = vunpack.c.l.b16 %v511
      %v1240 = vunpack.c.l.b16 %v512
      %v1241 = vunpack.c.l.b16 %v513
      %v1242 = vunpack.c.l.b16 %v514
      %v1243 = vunpack.c.l.b16 %v515
      %v1244 = vunpack.c.l.b16 %v516
      %v1245 = vunpack.c.l.b16 %v517
      %v1246 = vunpack.c.l.b16 %v518
      %v1247 = vunpack.c.l.b16 %v519
      %v1248 = vunpack.c.l.b16 %v520
      %v1249 = vunpack.c.l.b16 %v521
      %v1250 = vunpack.c.l.b16 %v522
      %v1251 = vunpack.c.l.b16 %v523
      %v1252 = vunpack.c.l.b16 %v524
      %v1253 = vunpack.c.l.b16 %v525
      %v1254 = vunpack.c.l.b16 %v526
      %v1255 = vunpack.c.l.b16 %v527
      %v1256 = vunpack.c.l.b16 %v528
      %v1257 = vunpack.c.l.b16 %v529
      %v1258 = vunpack.c.l.b16 %v530
      %v1259 = vunpack.c.l.b16 %v531
      %v1260 = vunpack.c.l.b16 %v532
      %v1261 = vunpack.c.l.b16 %v533
      %v1262 = vunpack.c.l.b16 %v534
      %v1263 = vunpack.c.l.b16 %v535
      %v1264 = vunpack.c.l.b16 %v536
      %v1265 = vunpack.c.l.b16 %v537
      %v1266 = vunpack.c.l.b16 %v538
      %v1267 = vunpack.c.l.b16 %v539
      %v1268 = vunpack.c.l.b16 %v540
      %v1269 = vunpack.c.l.b16 %v541
      %v1270 = vunpack.c.l.b16 %v542
      %v1271 = vunpack.c.l.b16 %v543
      %v1272 = vunpack.c.l.b16 %v544
      %v1273 = vunpack.c.l.b16 %v545
      %v1274 = vunpack.c.l.b16 %v546
      %v1275 = vunpack.c.l.b16 %v547
      %v1276 = vunpack.c.l.b16 %v548
      %v1277 = vunpack.c.l.b16 %v549
      %v1278 = vunpack.c.l.b16 %v550
      %v1279 = vunpack.c.l.b16 %v551
      %v1280 = vunpack.c.l.b16 %v552
      %v1281 = vunpack.c.l.b16 %v553
      %v1282 = vunpack.c.l.b16 %v554
      %v1283 = vunpack.c.l.b16 %v555
      %v1284 = vunpack.c.l.b16 %v556
      %v1285 = vunpack.c.l.b16 %v557
      %v1286 = vpack.c.b16 %v1143, %v1142
      %v1287 = vpack.c.b16 %v1145, %v1144
      %v1288 = vpack.c.b16 %v1147, %v1146
      %v1289 = vpack.c.b16 %v1149, %v1148
      %v1290 = vpack.c.b16 %v1151, %v1150
      %v1291 = vpack.c.b16 %v1153, %v1152
      %v1292 = vpack.c.b16 %v1155, %v1154
      %v1293 = vpack.c.b16 %v1157, %v1156
      %v1294 = vpack.c.b16 %v1159, %v1158
      %v1295 = vpack.c.b16 %v1161, %v1160
      %v1296 = vpack.c.b16 %v1163, %v1162
      %v1297 = vpack.c.b16 %v1165, %v1164
      %v1298 = vpack.c.b16 %v1167, %v1166
      %v1299 = vpack.c.b16 %v1169, %v1168
      %v1300 = vpack.c.b16 %v1171, %v1170
      %v1301 = vpack.c.b16 %v1173, %v1172
      %v1302 = vpack.c.b16 %v1175, %v1174
      %v1303 = vpack.c.b16 %v1177, %v1176
      %v1304 = vpack.c.b16 %v1179, %v1178
      %v1305 = vpack.c.b16 %v1181, %v1180
      %v1306 = vpack.c.b16 %v1183, %v1182
      %v1307 = vpack.c.b16 %v1185, %v1184
      %v1308 = vpack.c.b16 %v1187, %v1186
      %v1309 = vpack.c.b16 %v1189, %v1188
      %v1310 = vpack.c.b16 %v1191, %v1190
      %v1311 = vpack.c.b16 %v1193, %v1192
      %v1312 = vpack.c.b16 %v1195, %v1194
      %v1313 = vpack.c.b16 %v1197, %v1196
      %v1314 = vpack.c.b16 %v1199, %v1198
      %v1315 = vpack.c.b16 %v1201, %v1200
      %v1316 = vpack.c.b16 %v1203, %v1202
      %v1317 = vpack.c.b16 %v1205, %v1204
      %v1318 = vpack.c.b16 %v1207, %v1206
      %v1319 = vpack.c.b16 %v1209, %v1208
      %v1320 = vpack.c.b16 %v1211, %v1210
      %v1321 = vpack.c.b16 %v1213, %v1212
      %v1322 = vpack.c.b16 %v1215, %v1214
      %v1323 = vpack.c.b16 %v1217, %v1216
      %v1324 = vpack.c.b16 %v1219, %v1218
      %v1325 = vpack.c.b16 %v1221, %v1220
      %v1326 = vpack.c.b16 %v1223, %v1222
      %v1327 = vpack.c.b16 %v1225, %v1224
      %v1328 = vpack.c.b16 %v1227, %v1226
      %v1329 = vpack.c.b16 %v1229, %v1228
      %v1330 = vpack.c.b16 %v1231, %v1230
      %v1331 = vpack.c.b16 %v1233, %v1232
      %v1332 = vpack.c.b16 %v1235, %v1234
      %v1333 = vpack.c.b16 %v1237, %v1236
      %v1334 = vpack.c.b16 %v1239, %v1238
      %v1335 = vpack.c.b16 %v1241, %v1240
      %v1336 = vpack.c.b16 %v1243, %v1242
      %v1337 = vpack.c.b16 %v1245, %v1244
      %v1338 = vpack.c.b16 %v1247, %v1246
      %v1339 = vpack.c.b16 %v1249, %v1248
      %v1340 = vpack.c.b16 %v1251, %v1250
      %v1341 = vpack.c.b16 %v1253, %v1252
      %v1342 = vpack.c.b16 %v1255, %v1254
      %v1343 = vpack.c.b16 %v1257, %v1256
      %v1344 = vpack.c.b16 %v1259, %v1258
      %v1345 = vpack.c.b16 %v1261, %v1260
      %v1346 = vpack.c.b16 %v1263, %v1262
      %v1347 = vpack.c.b16 %v1265, %v1264
      %v1348 = vpack.c.b16 %v1267, %v1266
      %v1349 = vpack.c.b16 %v1269, %v1268
      %v1350 = vpack.c.b16 %v1271, %v1270
      %v1351 = vpack.c.b16 %v1273, %v1272
      %v1352 = vpack.c.b16 %v1275, %v1274
      %v1353 = vpack.c.b16 %v1277, %v1276
      %v1354 = vpack.c.b16 %v1279, %v1278
      %v1355 = vpack.c.b16 %v1281, %v1280
      %v1356 = vpack.c.b16 %v1283, %v1282
      %v1357 = vpack.c.b16 %v1285, %v1284
      %1430 = vmatprep.subr.bf16.mxu0 0
      %1431 = vmatpush1.bf16.msra.mxu0 %v1286
      %1432 = vmatprep.subr.bf16.mxu0 0
      %1433 = vmatpush1.bf16.msra.mxu0 %v1287
      %1434 = vmatprep.subr.bf16.mxu0 0
      %1435 = vmatpush1.bf16.msra.mxu0 %v1288
      %1436 = vmatprep.subr.bf16.mxu0 0
      %1437 = vmatpush1.bf16.msra.mxu0 %v1289
      %1438 = vmatprep.subr.bf16.mxu0 0
      %1439 = vmatpush1.bf16.msra.mxu0 %v1290
      %1440 = vmatprep.subr.bf16.mxu0 0
      %1441 = vmatpush1.bf16.msra.mxu0 %v1291
      %1442 = vmatprep.subr.bf16.mxu0 0
      %1443 = vmatpush1.bf16.msra.mxu0 %v1292
      %1444 = vmatprep.subr.bf16.mxu0 0
      %1445 = vmatpush1.bf16.msra.mxu0 %v1293
      %1446 = vmatprep.subr.bf16.mxu0 0
      %1447 = vmatpush1.bf16.msra.mxu0 %v1294
      %1448 = vmatprep.subr.bf16.mxu0 0
      %1449 = vmatpush1.bf16.msra.mxu0 %v1295
      %1450 = vmatprep.subr.bf16.mxu0 0
      %1451 = vmatpush1.bf16.msra.mxu0 %v1296
      %1452 = vmatprep.subr.bf16.mxu0 0
      %1453 = vmatpush1.bf16.msra.mxu0 %v1297
      %1454 = vmatprep.subr.bf16.mxu0 0
      %1455 = vmatpush1.bf16.msra.mxu0 %v1298
      %1456 = vmatprep.subr.bf16.mxu0 0
      %1457 = vmatpush1.bf16.msra.mxu0 %v1299
      %1458 = vmatprep.subr.bf16.mxu0 0
      %1459 = vmatpush1.bf16.msra.mxu0 %v1300
      %1460 = vmatprep.subr.bf16.mxu0 0
      %1461 = vmatpush1.bf16.msra.mxu0 %v1301
      %1462 = vmatprep.mubr.bf16.mxu0 %v848
      %1463 = vmatmul.mubr.bf16.gmra.mrb[0].mxu0 %v847
      %v1464 = vpop.f32.mrb[0].mxu0
      %v1465 = vadd.f32 %v996, %v1464
      %v1466 = vpop.f32.mrb[0].mxu0
      %v1467 = vpop.f32.mrb[0].mxu0
      %v1468 = vadd.f32 %v996, %v1467
      %v1469 = vpop.f32.mrb[0].mxu0
      %1470 = vmatprep.mubr.bf16.mxu0 %v857
      %1471 = vmatmul.mubr.bf16.gmra.mrb[0].mxu0 %v856
      %v1472 = vpop.f32.mrb[0].mxu0
      %v1473 = vadd.f32 %v996, %v1472
      %v1474 = vpop.f32.mrb[0].mxu0
      %v1475 = vpop.f32.mrb[0].mxu0
      %v1476 = vadd.f32 %v996, %v1475
      %v1477 = vpop.f32.mrb[0].mxu0
      %1478 = vmatprep.mubr.bf16.mxu0 %v866
      %1479 = vmatmul.mubr.bf16.gmra.mrb[0].mxu0 %v865
      %v1480 = vpop.f32.mrb[0].mxu0
      %v1481 = vadd.f32 %v996, %v1480
      %v1482 = vpop.f32.mrb[0].mxu0
      %v1483 = vpop.f32.mrb[0].mxu0
      %v1484 = vadd.f32 %v996, %v1483
      %v1485 = vpop.f32.mrb[0].mxu0
      %1486 = vmatprep.mubr.bf16.mxu0 %v875
      %1487 = vmatmul.mubr.bf16.gmra.mrb[0].mxu0 %v874
      %v1488 = vpop.f32.mrb[0].mxu0
      %v1489 = vadd.f32 %v996, %v1488
      %v1490 = vpop.f32.mrb[0].mxu0
      %v1491 = vpop.f32.mrb[0].mxu0
      %v1492 = vadd.f32 %v996, %v1491
      %v1493 = vpop.f32.mrb[0].mxu0
      %1494 = vmatprep.mubr.bf16.mxu0 %v884
      %1495 = vmatmul.mubr.bf16.gmra.mrb[0].mxu0 %v883
      %v1496 = vpop.f32.mrb[0].mxu0
      %v1497 = vadd.f32 %v996, %v1496
      %v1498 = vpop.f32.mrb[0].mxu0
      %v1499 = vpop.f32.mrb[0].mxu0
      %v1500 = vadd.f32 %v996, %v1499
      %v1501 = vpop.f32.mrb[0].mxu0
      %1502 = vmatprep.mubr.bf16.mxu0 %v893
      %1503 = vmatmul.mubr.bf16.gmra.mrb[0].mxu0 %v892
      %v1504 = vpop.f32.mrb[0].mxu0
      %v1505 = vadd.f32 %v996, %v1504
      %v1506 = vpop.f32.mrb[0].mxu0
      %v1507 = vpop.f32.mrb[0].mxu0
      %v1508 = vadd.f32 %v996, %v1507
      %v1509 = vpop.f32.mrb[0].mxu0
      %1510 = vmatprep.mubr.bf16.mxu0 %v902
      %1511 = vmatmul.mubr.bf16.gmra.mrb[0].mxu0 %v901
      %v1512 = vpop.f32.mrb[0].mxu0
      %v1513 = vadd.f32 %v996, %v1512
      %v1514 = vpop.f32.mrb[0].mxu0
      %v1515 = vpop.f32.mrb[0].mxu0
      %v1516 = vadd.f32 %v996, %v1515
      %v1517 = vpop.f32.mrb[0].mxu0
      %1518 = vmatprep.mubr.bf16.mxu0 %v911
      %1519 = vmatmul.mubr.bf16.gmra.mrb[0].mxu0 %v910
      %v1520 = vpop.f32.mrb[0].mxu0
      %v1521 = vadd.f32 %v996, %v1520
      %v1522 = vpop.f32.mrb[0].mxu0
      %v1523 = vpop.f32.mrb[0].mxu0
      %v1524 = vadd.f32 %v996, %v1523
      %v1525 = vpop.f32.mrb[0].mxu0
      %1526 = vmatprep.mubr.bf16.mxu0 %v920
      %1527 = vmatmul.mubr.bf16.gmra.mrb[0].mxu0 %v919
      %v1528 = vpop.f32.mrb[0].mxu0
      %v1529 = vadd.f32 %v996, %v1528
      %v1530 = vpop.f32.mrb[0].mxu0
      %v1531 = vpop.f32.mrb[0].mxu0
      %v1532 = vadd.f32 %v996, %v1531
      %v1533 = vpop.f32.mrb[0].mxu0
      %1534 = vmatprep.mubr.bf16.mxu0 %v929
      %1535 = vmatmul.mubr.bf16.gmra.mrb[0].mxu0 %v928
      %v1536 = vpop.f32.mrb[0].mxu0
      %v1537 = vadd.f32 %v996, %v1536
      %v1538 = vpop.f32.mrb[0].mxu0
      %v1539 = vpop.f32.mrb[0].mxu0
      %v1540 = vadd.f32 %v996, %v1539
      %v1541 = vpop.f32.mrb[0].mxu0
      %1542 = vmatprep.mubr.bf16.mxu0 %v938
      %1543 = vmatmul.mubr.bf16.gmra.mrb[0].mxu0 %v937
      %v1544 = vpop.f32.mrb[0].mxu0
      %v1545 = vadd.f32 %v996, %v1544
      %v1546 = vpop.f32.mrb[0].mxu0
      %v1547 = vpop.f32.mrb[0].mxu0
      %v1548 = vadd.f32 %v996, %v1547
      %v1549 = vpop.f32.mrb[0].mxu0
      %1550 = vmatprep.mubr.bf16.mxu0 %v947
      %1551 = vmatmul.mubr.bf16.gmra.mrb[0].mxu0 %v946
      %v1552 = vpop.f32.mrb[0].mxu0
      %v1553 = vadd.f32 %v996, %v1552
      %v1554 = vpop.f32.mrb[0].mxu0
      %v1555 = vpop.f32.mrb[0].mxu0
      %v1556 = vadd.f32 %v996, %v1555
      %v1557 = vpop.f32.mrb[0].mxu0
      %1558 = vmatprep.mubr.bf16.mxu0 %v956
      %1559 = vmatmul.mubr.bf16.gmra.mrb[0].mxu0 %v955
      %v1560 = vpop.f32.mrb[0].mxu0
      %v1561 = vadd.f32 %v996, %v1560
      %v1562 = vpop.f32.mrb[0].mxu0
      %v1563 = vpop.f32.mrb[0].mxu0
      %v1564 = vadd.f32 %v996, %v1563
      %v1565 = vpop.f32.mrb[0].mxu0
      %1566 = vmatprep.mubr.bf16.mxu0 %v965
      %1567 = vmatmul.mubr.bf16.gmra.mrb[0].mxu0 %v964
      %v1568 = vpop.f32.mrb[0].mxu0
      %v1569 = vadd.f32 %v996, %v1568
      %v1570 = vpop.f32.mrb[0].mxu0
      %v1571 = vpop.f32.mrb[0].mxu0
      %v1572 = vadd.f32 %v996, %v1571
      %v1573 = vpop.f32.mrb[0].mxu0
      %1574 = vmatprep.mubr.bf16.mxu0 %v974
      %1575 = vmatmul.mubr.bf16.gmra.mrb[0].mxu0 %v973
      %v1576 = vpop.f32.mrb[0].mxu0
      %v1577 = vadd.f32 %v996, %v1576
      %v1578 = vpop.f32.mrb[0].mxu0
      %v1579 = vpop.f32.mrb[0].mxu0
      %v1580 = vadd.f32 %v996, %v1579
      %v1581 = vpop.f32.mrb[0].mxu0
      %1582 = vmatprep.mubr.bf16.mxu0 %v983
      %1583 = vmatmul.mubr.bf16.gmra.mrb[0].mxu0 %v982
      %v1584 = vpop.f32.mrb[0].mxu0
      %v1585 = vadd.f32 %v996, %v1584
      %v1586 = vpop.f32.mrb[0].mxu0
      %v1587 = vpop.f32.mrb[0].mxu0
      %v1588 = vadd.f32 %v996, %v1587
      %v1589 = vpop.f32.mrb[0].mxu0
      %1590 = vdwg.mxu0
      %1591 = vmatprep.subr.bf16.mxu0 0
      %1592 = vmatpush1.bf16.msra.mxu0 %v1302
      %1593 = vmatprep.subr.bf16.mxu0 0
      %1594 = vmatpush1.bf16.msra.mxu0 %v1303
      %1595 = vmatprep.subr.bf16.mxu0 0
      %1596 = vmatpush1.bf16.msra.mxu0 %v1304
      %1597 = vmatprep.subr.bf16.mxu0 0
      %1598 = vmatpush1.bf16.msra.mxu0 %v1305
      %1599 = vmatprep.subr.bf16.mxu0 0
      %1600 = vmatpush1.bf16.msra.mxu0 %v1306
      %1601 = vmatprep.subr.bf16.mxu0 0
      %1602 = vmatpush1.bf16.msra.mxu0 %v1307
      %1603 = vmatprep.subr.bf16.mxu0 0
      %1604 = vmatpush1.bf16.msra.mxu0 %v1308
      %1605 = vmatprep.subr.bf16.mxu0 0
      %1606 = vmatpush1.bf16.msra.mxu0 %v1309
      %1607 = vmatprep.subr.bf16.mxu0 0
      %1608 = vmatpush1.bf16.msra.mxu0 %v1310
      %1609 = vmatprep.subr.bf16.mxu0 0
      %1610 = vmatpush1.bf16.msra.mxu0 %v1311
      %1611 = vmatprep.subr.bf16.mxu0 0
      %1612 = vmatpush1.bf16.msra.mxu0 %v1312
      %1613 = vmatprep.subr.bf16.mxu0 0
      %1614 = vmatpush1.bf16.msra.mxu0 %v1313
      %1615 = vmatprep.subr.bf16.mxu0 0
      %1616 = vmatpush1.bf16.msra.mxu0 %v1314
      %1617 = vmatprep.subr.bf16.mxu0 0
      %1618 = vmatpush1.bf16.msra.mxu0 %v1315
      %1619 = vmatprep.subr.bf16.mxu0 0
      %1620 = vmatpush1.bf16.msra.mxu0 %v1316
      %1621 = vmatprep.subr.bf16.mxu0 0
      %1622 = vmatpush1.bf16.msra.mxu0 %v1317
      %1623 = vmatprep.mubr.bf16.mxu0 %v850
      %1624 = vmatmul.mubr.bf16.gmra.mrb[0].mxu0 %v849
      %v1625 = vpop.f32.mrb[0].mxu0
      %v1626 = vadd.f32 %v1465, %v1625
      %v1627 = vpop.f32.mrb[0].mxu0
      %v1628 = vpop.f32.mrb[0].mxu0
      %v1629 = vadd.f32 %v1468, %v1628
      %v1630 = vpop.f32.mrb[0].mxu0
      %1631 = vmatprep.mubr.bf16.mxu0 %v859
      %1632 = vmatmul.mubr.bf16.gmra.mrb[0].mxu0 %v858
      %v1633 = vpop.f32.mrb[0].mxu0
      %v1634 = vadd.f32 %v1473, %v1633
      %v1635 = vpop.f32.mrb[0].mxu0
      %v1636 = vpop.f32.mrb[0].mxu0
      %v1637 = vadd.f32 %v1476, %v1636
      %v1638 = vpop.f32.mrb[0].mxu0
      %1639 = vmatprep.mubr.bf16.mxu0 %v868
      %1640 = vmatmul.mubr.bf16.gmra.mrb[0].mxu0 %v867
      %v1641 = vpop.f32.mrb[0].mxu0
      %v1642 = vadd.f32 %v1481, %v1641
      %v1643 = vpop.f32.mrb[0].mxu0
      %v1644 = vpop.f32.mrb[0].mxu0
      %v1645 = vadd.f32 %v1484, %v1644
      %v1646 = vpop.f32.mrb[0].mxu0
      %1647 = vmatprep.mubr.bf16.mxu0 %v877
      %1648 = vmatmul.mubr.bf16.gmra.mrb[0].mxu0 %v876
      %v1649 = vpop.f32.mrb[0].mxu0
      %v1650 = vadd.f32 %v1489, %v1649
      %v1651 = vpop.f32.mrb[0].mxu0
      %v1652 = vpop.f32.mrb[0].mxu0
      %v1653 = vadd.f32 %v1492, %v1652
      %v1654 = vpop.f32.mrb[0].mxu0
      %1655 = vmatprep.mubr.bf16.mxu0 %v886
      %1656 = vmatmul.mubr.bf16.gmra.mrb[0].mxu0 %v885
      %v1657 = vpop.f32.mrb[0].mxu0
      %v1658 = vadd.f32 %v1497, %v1657
      %v1659 = vpop.f32.mrb[0].mxu0
      %v1660 = vpop.f32.mrb[0].mxu0
      %v1661 = vadd.f32 %v1500, %v1660
      %v1662 = vpop.f32.mrb[0].mxu0
      %1663 = vmatprep.mubr.bf16.mxu0 %v895
      %1664 = vmatmul.mubr.bf16.gmra.mrb[0].mxu0 %v894
      %v1665 = vpop.f32.mrb[0].mxu0
      %v1666 = vadd.f32 %v1505, %v1665
      %v1667 = vpop.f32.mrb[0].mxu0
      %v1668 = vpop.f32.mrb[0].mxu0
      %v1669 = vadd.f32 %v1508, %v1668
      %v1670 = vpop.f32.mrb[0].mxu0
      %1671 = vmatprep.mubr.bf16.mxu0 %v904
      %1672 = vmatmul.mubr.bf16.gmra.mrb[0].mxu0 %v903
      %v1673 = vpop.f32.mrb[0].mxu0
      %v1674 = vadd.f32 %v1513, %v1673
      %v1675 = vpop.f32.mrb[0].mxu0
      %v1676 = vpop.f32.mrb[0].mxu0
      %v1677 = vadd.f32 %v1516, %v1676
      %v1678 = vpop.f32.mrb[0].mxu0
      %1679 = vmatprep.mubr.bf16.mxu0 %v913
      %1680 = vmatmul.mubr.bf16.gmra.mrb[0].mxu0 %v912
      %v1681 = vpop.f32.mrb[0].mxu0
      %v1682 = vadd.f32 %v1521, %v1681
      %v1683 = vpop.f32.mrb[0].mxu0
      %v1684 = vpop.f32.mrb[0].mxu0
      %v1685 = vadd.f32 %v1524, %v1684
      %v1686 = vpop.f32.mrb[0].mxu0
      %1687 = vmatprep.mubr.bf16.mxu0 %v922
      %1688 = vmatmul.mubr.bf16.gmra.mrb[0].mxu0 %v921
      %v1689 = vpop.f32.mrb[0].mxu0
      %v1690 = vadd.f32 %v1529, %v1689
      %v1691 = vpop.f32.mrb[0].mxu0
      %v1692 = vpop.f32.mrb[0].mxu0
      %v1693 = vadd.f32 %v1532, %v1692
      %v1694 = vpop.f32.mrb[0].mxu0
      %1695 = vmatprep.mubr.bf16.mxu0 %v931
      %1696 = vmatmul.mubr.bf16.gmra.mrb[0].mxu0 %v930
      %v1697 = vpop.f32.mrb[0].mxu0
      %v1698 = vadd.f32 %v1537, %v1697
      %v1699 = vpop.f32.mrb[0].mxu0
      %v1700 = vpop.f32.mrb[0].mxu0
      %v1701 = vadd.f32 %v1540, %v1700
      %v1702 = vpop.f32.mrb[0].mxu0
      %1703 = vmatprep.mubr.bf16.mxu0 %v940
      %1704 = vmatmul.mubr.bf16.gmra.mrb[0].mxu0 %v939
      %v1705 = vpop.f32.mrb[0].mxu0
      %v1706 = vadd.f32 %v1545, %v1705
      %v1707 = vpop.f32.mrb[0].mxu0
      %v1708 = vpop.f32.mrb[0].mxu0
      %v1709 = vadd.f32 %v1548, %v1708
      %v1710 = vpop.f32.mrb[0].mxu0
      %1711 = vmatprep.mubr.bf16.mxu0 %v949
      %1712 = vmatmul.mubr.bf16.gmra.mrb[0].mxu0 %v948
      %v1713 = vpop.f32.mrb[0].mxu0
      %v1714 = vadd.f32 %v1553, %v1713
      %v1715 = vpop.f32.mrb[0].mxu0
      %v1716 = vpop.f32.mrb[0].mxu0
      %v1717 = vadd.f32 %v1556, %v1716
      %v1718 = vpop.f32.mrb[0].mxu0
      %1719 = vmatprep.mubr.bf16.mxu0 %v958
      %1720 = vmatmul.mubr.bf16.gmra.mrb[0].mxu0 %v957
      %v1721 = vpop.f32.mrb[0].mxu0
      %v1722 = vadd.f32 %v1561, %v1721
      %v1723 = vpop.f32.mrb[0].mxu0
      %v1724 = vpop.f32.mrb[0].mxu0
      %v1725 = vadd.f32 %v1564, %v1724
      %v1726 = vpop.f32.mrb[0].mxu0
      %1727 = vmatprep.mubr.bf16.mxu0 %v967
      %1728 = vmatmul.mubr.bf16.gmra.mrb[0].mxu0 %v966
      %v1729 = vpop.f32.mrb[0].mxu0
      %v1730 = vadd.f32 %v1569, %v1729
      %v1731 = vpop.f32.mrb[0].mxu0
      %v1732 = vpop.f32.mrb[0].mxu0
      %v1733 = vadd.f32 %v1572, %v1732
      %v1734 = vpop.f32.mrb[0].mxu0
      %1735 = vmatprep.mubr.bf16.mxu0 %v976
      %1736 = vmatmul.mubr.bf16.gmra.mrb[0].mxu0 %v975
      %v1737 = vpop.f32.mrb[0].mxu0
      %v1738 = vadd.f32 %v1577, %v1737
      %v1739 = vpop.f32.mrb[0].mxu0
      %v1740 = vpop.f32.mrb[0].mxu0
      %v1741 = vadd.f32 %v1580, %v1740
      %v1742 = vpop.f32.mrb[0].mxu0
      %1743 = vmatprep.mubr.bf16.mxu0 %v985
      %1744 = vmatmul.mubr.bf16.gmra.mrb[0].mxu0 %v984
      %v1745 = vpop.f32.mrb[0].mxu0
      %v1746 = vadd.f32 %v1585, %v1745
      %v1747 = vpop.f32.mrb[0].mxu0
      %v1748 = vpop.f32.mrb[0].mxu0
      %v1749 = vadd.f32 %v1588, %v1748
      %v1750 = vpop.f32.mrb[0].mxu0
      %1751 = vdwg.mxu0
      %1752 = vmatprep.subr.bf16.mxu0 0
      %1753 = vmatpush1.bf16.msra.mxu0 %v1318
      %1754 = vmatprep.subr.bf16.mxu0 0
      %1755 = vmatpush1.bf16.msra.mxu0 %v1319
      %1756 = vmatprep.subr.bf16.mxu0 0
      %1757 = vmatpush1.bf16.msra.mxu0 %v1320
      %1758 = vmatprep.subr.bf16.mxu0 0
      %1759 = vmatpush1.bf16.msra.mxu0 %v1321
      %1760 = vmatprep.subr.bf16.mxu0 0
      %1761 = vmatpush1.bf16.msra.mxu0 %v1322
      %1762 = vmatprep.subr.bf16.mxu0 0
      %1763 = vmatpush1.bf16.msra.mxu0 %v1323
      %1764 = vmatprep.subr.bf16.mxu0 0
      %1765 = vmatpush1.bf16.msra.mxu0 %v1324
      %1766 = vmatprep.subr.bf16.mxu0 0
      %1767 = vmatpush1.bf16.msra.mxu0 %v1325
      %1768 = vmatprep.subr.bf16.mxu0 0
      %1769 = vmatpush1.bf16.msra.mxu0 %v1326
      %1770 = vmatprep.subr.bf16.mxu0 0
      %1771 = vmatpush1.bf16.msra.mxu0 %v1327
      %1772 = vmatprep.subr.bf16.mxu0 0
      %1773 = vmatpush1.bf16.msra.mxu0 %v1328
      %1774 = vmatprep.subr.bf16.mxu0 0
      %1775 = vmatpush1.bf16.msra.mxu0 %v1329
      %1776 = vmatprep.subr.bf16.mxu0 0
      %1777 = vmatpush1.bf16.msra.mxu0 %v1330
      %1778 = vmatprep.subr.bf16.mxu0 0
      %1779 = vmatpush1.bf16.msra.mxu0 %v1331
      %1780 = vmatprep.subr.bf16.mxu0 0
      %1781 = vmatpush1.bf16.msra.mxu0 %v1332
      %1782 = vmatprep.subr.bf16.mxu0 0
      %1783 = vmatpush1.bf16.msra.mxu0 %v1333
      %1784 = vmatprep.mubr.bf16.mxu0 %v852
      %1785 = vmatmul.mubr.bf16.gmra.mrb[0].mxu0 %v851
      %v1786 = vpop.f32.mrb[0].mxu0
      %v1787 = vadd.f32 %v1626, %v1786
      %v1788 = vpop.f32.mrb[0].mxu0
      %v1789 = vpop.f32.mrb[0].mxu0
      %v1790 = vadd.f32 %v1629, %v1789
      %v1791 = vpop.f32.mrb[0].mxu0
      %1792 = vmatprep.mubr.bf16.mxu0 %v861
      %1793 = vmatmul.mubr.bf16.gmra.mrb[0].mxu0 %v860
      %v1794 = vpop.f32.mrb[0].mxu0
      %v1795 = vadd.f32 %v1634, %v1794
      %v1796 = vpop.f32.mrb[0].mxu0
      %v1797 = vpop.f32.mrb[0].mxu0
      %v1798 = vadd.f32 %v1637, %v1797
      %v1799 = vpop.f32.mrb[0].mxu0
      %1800 = vmatprep.mubr.bf16.mxu0 %v870
      %1801 = vmatmul.mubr.bf16.gmra.mrb[0].mxu0 %v869
      %v1802 = vpop.f32.mrb[0].mxu0
      %v1803 = vadd.f32 %v1642, %v1802
      %v1804 = vpop.f32.mrb[0].mxu0
      %v1805 = vpop.f32.mrb[0].mxu0
      %v1806 = vadd.f32 %v1645, %v1805
      %v1807 = vpop.f32.mrb[0].mxu0
      %1808 = vmatprep.mubr.bf16.mxu0 %v879
      %1809 = vmatmul.mubr.bf16.gmra.mrb[0].mxu0 %v878
      %v1810 = vpop.f32.mrb[0].mxu0
      %v1811 = vadd.f32 %v1650, %v1810
      %v1812 = vpop.f32.mrb[0].mxu0
      %v1813 = vpop.f32.mrb[0].mxu0
      %v1814 = vadd.f32 %v1653, %v1813
      %v1815 = vpop.f32.mrb[0].mxu0
      %1816 = vmatprep.mubr.bf16.mxu0 %v888
      %1817 = vmatmul.mubr.bf16.gmra.mrb[0].mxu0 %v887
      %v1818 = vpop.f32.mrb[0].mxu0
      %v1819 = vadd.f32 %v1658, %v1818
      %v1820 = vpop.f32.mrb[0].mxu0
      %v1821 = vpop.f32.mrb[0].mxu0
      %v1822 = vadd.f32 %v1661, %v1821
      %v1823 = vpop.f32.mrb[0].mxu0
      %1824 = vmatprep.mubr.bf16.mxu0 %v897
      %1825 = vmatmul.mubr.bf16.gmra.mrb[0].mxu0 %v896
      %v1826 = vpop.f32.mrb[0].mxu0
      %v1827 = vadd.f32 %v1666, %v1826
      %v1828 = vpop.f32.mrb[0].mxu0
      %v1829 = vpop.f32.mrb[0].mxu0
      %v1830 = vadd.f32 %v1669, %v1829
      %v1831 = vpop.f32.mrb[0].mxu0
      %1832 = vmatprep.mubr.bf16.mxu0 %v906
      %1833 = vmatmul.mubr.bf16.gmra.mrb[0].mxu0 %v905
      %v1834 = vpop.f32.mrb[0].mxu0
      %v1835 = vadd.f32 %v1674, %v1834
      %v1836 = vpop.f32.mrb[0].mxu0
      %v1837 = vpop.f32.mrb[0].mxu0
      %v1838 = vadd.f32 %v1677, %v1837
      %v1839 = vpop.f32.mrb[0].mxu0
      %1840 = vmatprep.mubr.bf16.mxu0 %v915
      %1841 = vmatmul.mubr.bf16.gmra.mrb[0].mxu0 %v914
      %v1842 = vpop.f32.mrb[0].mxu0
      %v1843 = vadd.f32 %v1682, %v1842
      %v1844 = vpop.f32.mrb[0].mxu0
      %v1845 = vpop.f32.mrb[0].mxu0
      %v1846 = vadd.f32 %v1685, %v1845
      %v1847 = vpop.f32.mrb[0].mxu0
      %1848 = vmatprep.mubr.bf16.mxu0 %v924
      %1849 = vmatmul.mubr.bf16.gmra.mrb[0].mxu0 %v923
      %v1850 = vpop.f32.mrb[0].mxu0
      %v1851 = vadd.f32 %v1690, %v1850
      %v1852 = vpop.f32.mrb[0].mxu0
      %v1853 = vpop.f32.mrb[0].mxu0
      %v1854 = vadd.f32 %v1693, %v1853
      %v1855 = vpop.f32.mrb[0].mxu0
      %1856 = vmatprep.mubr.bf16.mxu0 %v933
      %1857 = vmatmul.mubr.bf16.gmra.mrb[0].mxu0 %v932
      %v1858 = vpop.f32.mrb[0].mxu0
      %v1859 = vadd.f32 %v1698, %v1858
      %v1860 = vpop.f32.mrb[0].mxu0
      %v1861 = vpop.f32.mrb[0].mxu0
      %v1862 = vadd.f32 %v1701, %v1861
      %v1863 = vpop.f32.mrb[0].mxu0
      %1864 = vmatprep.mubr.bf16.mxu0 %v942
      %1865 = vmatmul.mubr.bf16.gmra.mrb[0].mxu0 %v941
      %v1866 = vpop.f32.mrb[0].mxu0
      %v1867 = vadd.f32 %v1706, %v1866
      %v1868 = vpop.f32.mrb[0].mxu0
      %v1869 = vpop.f32.mrb[0].mxu0
      %v1870 = vadd.f32 %v1709, %v1869
      %v1871 = vpop.f32.mrb[0].mxu0
      %1872 = vmatprep.mubr.bf16.mxu0 %v951
      %1873 = vmatmul.mubr.bf16.gmra.mrb[0].mxu0 %v950
      %v1874 = vpop.f32.mrb[0].mxu0
      %v1875 = vadd.f32 %v1714, %v1874
      %v1876 = vpop.f32.mrb[0].mxu0
      %v1877 = vpop.f32.mrb[0].mxu0
      %v1878 = vadd.f32 %v1717, %v1877
      %v1879 = vpop.f32.mrb[0].mxu0
      %1880 = vmatprep.mubr.bf16.mxu0 %v960
      %1881 = vmatmul.mubr.bf16.gmra.mrb[0].mxu0 %v959
      %v1882 = vpop.f32.mrb[0].mxu0
      %v1883 = vadd.f32 %v1722, %v1882
      %v1884 = vpop.f32.mrb[0].mxu0
      %v1885 = vpop.f32.mrb[0].mxu0
      %v1886 = vadd.f32 %v1725, %v1885
      %v1887 = vpop.f32.mrb[0].mxu0
      %1888 = vmatprep.mubr.bf16.mxu0 %v969
      %1889 = vmatmul.mubr.bf16.gmra.mrb[0].mxu0 %v968
      %v1890 = vpop.f32.mrb[0].mxu0
      %v1891 = vadd.f32 %v1730, %v1890
      %v1892 = vpop.f32.mrb[0].mxu0
      %v1893 = vpop.f32.mrb[0].mxu0
      %v1894 = vadd.f32 %v1733, %v1893
      %v1895 = vpop.f32.mrb[0].mxu0
      %1896 = vmatprep.mubr.bf16.mxu0 %v978
      %1897 = vmatmul.mubr.bf16.gmra.mrb[0].mxu0 %v977
      %v1898 = vpop.f32.mrb[0].mxu0
      %v1899 = vadd.f32 %v1738, %v1898
      %v1900 = vpop.f32.mrb[0].mxu0
      %v1901 = vpop.f32.mrb[0].mxu0
      %v1902 = vadd.f32 %v1741, %v1901
      %v1903 = vpop.f32.mrb[0].mxu0
      %1904 = vmatprep.mubr.bf16.mxu0 %v987
      %1905 = vmatmul.mubr.bf16.gmra.mrb[0].mxu0 %v986
      %v1906 = vpop.f32.mrb[0].mxu0
      %v1907 = vadd.f32 %v1746, %v1906
      %v1908 = vpop.f32.mrb[0].mxu0
      %v1909 = vpop.f32.mrb[0].mxu0
      %v1910 = vadd.f32 %v1749, %v1909
      %v1911 = vpop.f32.mrb[0].mxu0
      %1912 = vdwg.mxu0
      %1913 = vmatprep.subr.bf16.mxu0 0
      %1914 = vmatpush1.bf16.msra.mxu0 %v1334
      %1915 = vmatprep.subr.bf16.mxu0 0
      %1916 = vmatpush1.bf16.msra.mxu0 %v1335
      %1917 = vmatprep.subr.bf16.mxu0 0
      %1918 = vmatpush1.bf16.msra.mxu0 %v1336
      %1919 = vmatprep.subr.bf16.mxu0 0
      %1920 = vmatpush1.bf16.msra.mxu0 %v1337
      %1921 = vmatprep.subr.bf16.mxu0 0
      %1922 = vmatpush1.bf16.msra.mxu0 %v1338
      %1923 = vmatprep.subr.bf16.mxu0 0
      %1924 = vmatpush1.bf16.msra.mxu0 %v1339
      %1925 = vmatprep.subr.bf16.mxu0 0
      %1926 = vmatpush1.bf16.msra.mxu0 %v1340
      %1927 = vmatprep.subr.bf16.mxu0 0
      %1928 = vmatpush1.bf16.msra.mxu0 %v1341
      %1929 = vmatprep.subr.bf16.mxu0 0
      %1930 = vmatpush1.bf16.msra.mxu0 %v1342
      %1931 = vmatprep.subr.bf16.mxu0 0
      %1932 = vmatpush1.bf16.msra.mxu0 %v1343
      %1933 = vmatprep.subr.bf16.mxu0 0
      %1934 = vmatpush1.bf16.msra.mxu0 %v1344
      %1935 = vmatprep.subr.bf16.mxu0 0
      %1936 = vmatpush1.bf16.msra.mxu0 %v1345
      %1937 = vmatprep.subr.bf16.mxu0 0
      %1938 = vmatpush1.bf16.msra.mxu0 %v1346
      %1939 = vmatprep.subr.bf16.mxu0 0
      %1940 = vmatpush1.bf16.msra.mxu0 %v1347
      %1941 = vmatprep.subr.bf16.mxu0 0
      %1942 = vmatpush1.bf16.msra.mxu0 %v1348
      %1943 = vmatprep.subr.bf16.mxu0 0
      %1944 = vmatpush1.bf16.msra.mxu0 %v1349
      %1945 = vmatprep.mubr.bf16.mxu0 %v854
      %1946 = vmatmul.mubr.bf16.gmra.mrb[0].mxu0 %v853
      %v1947 = vpop.f32.mrb[0].mxu0
      %v1948 = vadd.f32 %v1787, %v1947
      %v1949 = vpop.f32.mrb[0].mxu0
      %v1950 = vpop.f32.mrb[0].mxu0
      %v1951 = vadd.f32 %v1790, %v1950
      %v1952 = vpop.f32.mrb[0].mxu0
      %1953 = vmatprep.mubr.bf16.mxu0 %v863
      %1954 = vmatmul.mubr.bf16.gmra.mrb[0].mxu0 %v862
      %v1955 = vpop.f32.mrb[0].mxu0
      %v1956 = vadd.f32 %v1795, %v1955
      %v1957 = vpop.f32.mrb[0].mxu0
      %v1958 = vpop.f32.mrb[0].mxu0
      %v1959 = vadd.f32 %v1798, %v1958
      %v1960 = vpop.f32.mrb[0].mxu0
      %1961 = vmatprep.mubr.bf16.mxu0 %v872
      %1962 = vmatmul.mubr.bf16.gmra.mrb[0].mxu0 %v871
      %v1963 = vpop.f32.mrb[0].mxu0
      %v1964 = vadd.f32 %v1803, %v1963
      %v1965 = vpop.f32.mrb[0].mxu0
      %v1966 = vpop.f32.mrb[0].mxu0
      %v1967 = vadd.f32 %v1806, %v1966
      %v1968 = vpop.f32.mrb[0].mxu0
      %1969 = vmatprep.mubr.bf16.mxu0 %v881
      %1970 = vmatmul.mubr.bf16.gmra.mrb[0].mxu0 %v880
      %v1971 = vpop.f32.mrb[0].mxu0
      %v1972 = vadd.f32 %v1811, %v1971
      %v1973 = vpop.f32.mrb[0].mxu0
      %v1974 = vpop.f32.mrb[0].mxu0
      %v1975 = vadd.f32 %v1814, %v1974
      %v1976 = vpop.f32.mrb[0].mxu0
      %1977 = vmatprep.mubr.bf16.mxu0 %v890
      %1978 = vmatmul.mubr.bf16.gmra.mrb[0].mxu0 %v889
      %v1979 = vpop.f32.mrb[0].mxu0
      %v1980 = vadd.f32 %v1819, %v1979
      %v1981 = vpop.f32.mrb[0].mxu0
      %v1982 = vpop.f32.mrb[0].mxu0
      %v1983 = vadd.f32 %v1822, %v1982
      %v1984 = vpop.f32.mrb[0].mxu0
      %1985 = vmatprep.mubr.bf16.mxu0 %v899
      %1986 = vmatmul.mubr.bf16.gmra.mrb[0].mxu0 %v898
      %v1987 = vpop.f32.mrb[0].mxu0
      %v1988 = vadd.f32 %v1827, %v1987
      %v1989 = vpop.f32.mrb[0].mxu0
      %v1990 = vpop.f32.mrb[0].mxu0
      %v1991 = vadd.f32 %v1830, %v1990
      %v1992 = vpop.f32.mrb[0].mxu0
      %1993 = vmatprep.mubr.bf16.mxu0 %v908
      %1994 = vmatmul.mubr.bf16.gmra.mrb[0].mxu0 %v907
      %v1995 = vpop.f32.mrb[0].mxu0
      %v1996 = vadd.f32 %v1835, %v1995
      %v1997 = vpop.f32.mrb[0].mxu0
      %v1998 = vpop.f32.mrb[0].mxu0
      %v1999 = vadd.f32 %v1838, %v1998
      %v2000 = vpop.f32.mrb[0].mxu0
      %2001 = vmatprep.mubr.bf16.mxu0 %v917
      %2002 = vmatmul.mubr.bf16.gmra.mrb[0].mxu0 %v916
      %v2003 = vpop.f32.mrb[0].mxu0
      %v2004 = vadd.f32 %v1843, %v2003
      %v2005 = vpop.f32.mrb[0].mxu0
      %v2006 = vpop.f32.mrb[0].mxu0
      %v2007 = vadd.f32 %v1846, %v2006
      %v2008 = vpop.f32.mrb[0].mxu0
      %2009 = vmatprep.mubr.bf16.mxu0 %v926
      %2010 = vmatmul.mubr.bf16.gmra.mrb[0].mxu0 %v925
      %v2011 = vpop.f32.mrb[0].mxu0
      %v2012 = vadd.f32 %v1851, %v2011
      %v2013 = vpop.f32.mrb[0].mxu0
      %v2014 = vpop.f32.mrb[0].mxu0
      %v2015 = vadd.f32 %v1854, %v2014
      %v2016 = vpop.f32.mrb[0].mxu0
      %2017 = vmatprep.mubr.bf16.mxu0 %v935
      %2018 = vmatmul.mubr.bf16.gmra.mrb[0].mxu0 %v934
      %v2019 = vpop.f32.mrb[0].mxu0
      %v2020 = vadd.f32 %v1859, %v2019
      %v2021 = vpop.f32.mrb[0].mxu0
      %v2022 = vpop.f32.mrb[0].mxu0
      %v2023 = vadd.f32 %v1862, %v2022
      %v2024 = vpop.f32.mrb[0].mxu0
      %2025 = vmatprep.mubr.bf16.mxu0 %v944
      %2026 = vmatmul.mubr.bf16.gmra.mrb[0].mxu0 %v943
      %v2027 = vpop.f32.mrb[0].mxu0
      %v2028 = vadd.f32 %v1867, %v2027
      %v2029 = vpop.f32.mrb[0].mxu0
      %v2030 = vpop.f32.mrb[0].mxu0
      %v2031 = vadd.f32 %v1870, %v2030
      %v2032 = vpop.f32.mrb[0].mxu0
      %2033 = vmatprep.mubr.bf16.mxu0 %v953
      %2034 = vmatmul.mubr.bf16.gmra.mrb[0].mxu0 %v952
      %v2035 = vpop.f32.mrb[0].mxu0
      %v2036 = vadd.f32 %v1875, %v2035
      %v2037 = vpop.f32.mrb[0].mxu0
      %v2038 = vpop.f32.mrb[0].mxu0
      %v2039 = vadd.f32 %v1878, %v2038
      %v2040 = vpop.f32.mrb[0].mxu0
      %2041 = vmatprep.mubr.bf16.mxu0 %v962
      %2042 = vmatmul.mubr.bf16.gmra.mrb[0].mxu0 %v961
      %v2043 = vpop.f32.mrb[0].mxu0
      %v2044 = vadd.f32 %v1883, %v2043
      %v2045 = vpop.f32.mrb[0].mxu0
      %v2046 = vpop.f32.mrb[0].mxu0
      %v2047 = vadd.f32 %v1886, %v2046
      %v2048 = vpop.f32.mrb[0].mxu0
      %2049 = vmatprep.mubr.bf16.mxu0 %v971
      %2050 = vmatmul.mubr.bf16.gmra.mrb[0].mxu0 %v970
      %v2051 = vpop.f32.mrb[0].mxu0
      %v2052 = vadd.f32 %v1891, %v2051
      %v2053 = vpop.f32.mrb[0].mxu0
      %v2054 = vpop.f32.mrb[0].mxu0
      %v2055 = vadd.f32 %v1894, %v2054
      %v2056 = vpop.f32.mrb[0].mxu0
      %2057 = vmatprep.mubr.bf16.mxu0 %v980
      %2058 = vmatmul.mubr.bf16.gmra.mrb[0].mxu0 %v979
      %v2059 = vpop.f32.mrb[0].mxu0
      %v2060 = vadd.f32 %v1899, %v2059
      %v2061 = vpop.f32.mrb[0].mxu0
      %v2062 = vpop.f32.mrb[0].mxu0
      %v2063 = vadd.f32 %v1902, %v2062
      %v2064 = vpop.f32.mrb[0].mxu0
      %2065 = vmatprep.mubr.bf16.mxu0 %v989
      %2066 = vmatmul.mubr.bf16.gmra.mrb[0].mxu0 %v988
      %v2067 = vpop.f32.mrb[0].mxu0
      %v2068 = vadd.f32 %v1907, %v2067
      %v2069 = vpop.f32.mrb[0].mxu0
      %v2070 = vpop.f32.mrb[0].mxu0
      %v2071 = vadd.f32 %v1910, %v2070
      %v2072 = vpop.f32.mrb[0].mxu0
      %2073 = vdwg.mxu0
      %2074 = vmatprep.subr.bf16.mxu0 0
      %2075 = vmatpush1.bf16.msra.mxu0 %v1350
      %2076 = vmatprep.subr.bf16.mxu0 0
      %2077 = vmatpush1.bf16.msra.mxu0 %v1351
      %2078 = vmatprep.subr.bf16.mxu0 0
      %2079 = vmatpush1.bf16.msra.mxu0 %v1352
      %2080 = vmatprep.subr.bf16.mxu0 0
      %2081 = vmatpush1.bf16.msra.mxu0 %v1353
      %2082 = vmatprep.subr.bf16.mxu0 0
      %2083 = vmatpush1.bf16.msra.mxu0 %v1354
      %2084 = vmatprep.subr.bf16.mxu0 0
      %2085 = vmatpush1.bf16.msra.mxu0 %v1355
      %2086 = vmatprep.subr.bf16.mxu0 0
      %2087 = vmatpush1.bf16.msra.mxu0 %v1356
      %2088 = vmatprep.subr.bf16.mxu0 0
      %2089 = vmatpush1.bf16.msra.mxu0 %v1357
      %2090 = vmatprep.subr.bf16.mxu0 0
      %2091 = vmatpush1.bf16.msra.mxu0 0
      %2092 = vmatprep.subr.bf16.mxu0 0
      %2093 = vmatpush1.bf16.msra.mxu0 0
      %2094 = vmatprep.subr.bf16.mxu0 0
      %2095 = vmatpush1.bf16.msra.mxu0 0
      %2096 = vmatprep.subr.bf16.mxu0 0
      %2097 = vmatpush1.bf16.msra.mxu0 0
      %2098 = vmatprep.subr.bf16.mxu0 0
      %2099 = vmatpush1.bf16.msra.mxu0 0
      %2100 = vmatprep.subr.bf16.mxu0 0
      %2101 = vmatpush1.bf16.msra.mxu0 0
      %2102 = vmatprep.subr.bf16.mxu0 0
      %2103 = vmatpush1.bf16.msra.mxu0 0
      %2104 = vmatprep.subr.bf16.mxu0 0
      %2105 = vmatpush1.bf16.msra.mxu0 0
      %2106 = vmatprep.mubr.bf16.mxu0 0
      %2107 = vmatmul.mubr.bf16.gmra.mrb[0].mxu0 %v855
      %v2108 = vpop.f32.mrb[0].mxu0
      %v2109 = vadd.f32 %v1948, %v2108
      %v2110 = vpop.f32.mrb[0].mxu0
      %v2111 = vpop.f32.mrb[0].mxu0
      %v2112 = vadd.f32 %v1951, %v2111
      %v2113 = vpop.f32.mrb[0].mxu0
      %2114 = vmatprep.mubr.bf16.mxu0 0
      %2115 = vmatmul.mubr.bf16.gmra.mrb[0].mxu0 %v864
      %v2116 = vpop.f32.mrb[0].mxu0
      %v2117 = vadd.f32 %v1956, %v2116
      %v2118 = vpop.f32.mrb[0].mxu0
      %v2119 = vpop.f32.mrb[0].mxu0
      %v2120 = vadd.f32 %v1959, %v2119
      %v2121 = vpop.f32.mrb[0].mxu0
      %2122 = vmatprep.mubr.bf16.mxu0 0
      %2123 = vmatmul.mubr.bf16.gmra.mrb[0].mxu0 %v873
      %v2124 = vpop.f32.mrb[0].mxu0
      %v2125 = vadd.f32 %v1964, %v2124
      %v2126 = vpop.f32.mrb[0].mxu0
      %v2127 = vpop.f32.mrb[0].mxu0
      %v2128 = vadd.f32 %v1967, %v2127
      %v2129 = vpop.f32.mrb[0].mxu0
      %2130 = vmatprep.mubr.bf16.mxu0 0
      %2131 = vmatmul.mubr.bf16.gmra.mrb[0].mxu0 %v882
      %v2132 = vpop.f32.mrb[0].mxu0
      %v2133 = vadd.f32 %v1972, %v2132
      %v2134 = vpop.f32.mrb[0].mxu0
      %v2135 = vpop.f32.mrb[0].mxu0
      %v2136 = vadd.f32 %v1975, %v2135
      %v2137 = vpop.f32.mrb[0].mxu0
      %2138 = vmatprep.mubr.bf16.mxu0 0
      %2139 = vmatmul.mubr.bf16.gmra.mrb[0].mxu0 %v891
      %v2140 = vpop.f32.mrb[0].mxu0
      %v2141 = vadd.f32 %v1980, %v2140
      %v2142 = vpop.f32.mrb[0].mxu0
      %v2143 = vpop.f32.mrb[0].mxu0
      %v2144 = vadd.f32 %v1983, %v2143
      %v2145 = vpop.f32.mrb[0].mxu0
      %2146 = vmatprep.mubr.bf16.mxu0 0
      %2147 = vmatmul.mubr.bf16.gmra.mrb[0].mxu0 %v900
      %v2148 = vpop.f32.mrb[0].mxu0
      %v2149 = vadd.f32 %v1988, %v2148
      %v2150 = vpop.f32.mrb[0].mxu0
      %v2151 = vpop.f32.mrb[0].mxu0
      %v2152 = vadd.f32 %v1991, %v2151
      %v2153 = vpop.f32.mrb[0].mxu0
      %2154 = vmatprep.mubr.bf16.mxu0 0
      %2155 = vmatmul.mubr.bf16.gmra.mrb[0].mxu0 %v909
      %v2156 = vpop.f32.mrb[0].mxu0
      %v2157 = vadd.f32 %v1996, %v2156
      %v2158 = vpop.f32.mrb[0].mxu0
      %v2159 = vpop.f32.mrb[0].mxu0
      %v2160 = vadd.f32 %v1999, %v2159
      %v2161 = vpop.f32.mrb[0].mxu0
      %2162 = vmatprep.mubr.bf16.mxu0 0
      %2163 = vmatmul.mubr.bf16.gmra.mrb[0].mxu0 %v918
      %v2164 = vpop.f32.mrb[0].mxu0
      %v2165 = vadd.f32 %v2004, %v2164
      %v2166 = vpop.f32.mrb[0].mxu0
      %v2167 = vpop.f32.mrb[0].mxu0
      %v2168 = vadd.f32 %v2007, %v2167
      %v2169 = vpop.f32.mrb[0].mxu0
      %2170 = vmatprep.mubr.bf16.mxu0 0
      %2171 = vmatmul.mubr.bf16.gmra.mrb[0].mxu0 %v927
      %v2172 = vpop.f32.mrb[0].mxu0
      %v2173 = vadd.f32 %v2012, %v2172
      %v2174 = vpop.f32.mrb[0].mxu0
      %v2175 = vpop.f32.mrb[0].mxu0
      %v2176 = vadd.f32 %v2015, %v2175
      %v2177 = vpop.f32.mrb[0].mxu0
      %2178 = vmatprep.mubr.bf16.mxu0 0
      %2179 = vmatmul.mubr.bf16.gmra.mrb[0].mxu0 %v936
      %v2180 = vpop.f32.mrb[0].mxu0
      %v2181 = vadd.f32 %v2020, %v2180
      %v2182 = vpop.f32.mrb[0].mxu0
      %v2183 = vpop.f32.mrb[0].mxu0
      %v2184 = vadd.f32 %v2023, %v2183
      %v2185 = vpop.f32.mrb[0].mxu0
      %2186 = vmatprep.mubr.bf16.mxu0 0
      %2187 = vmatmul.mubr.bf16.gmra.mrb[0].mxu0 %v945
      %v2188 = vpop.f32.mrb[0].mxu0
      %v2189 = vadd.f32 %v2028, %v2188
      %v2190 = vpop.f32.mrb[0].mxu0
      %v2191 = vpop.f32.mrb[0].mxu0
      %v2192 = vadd.f32 %v2031, %v2191
      %v2193 = vpop.f32.mrb[0].mxu0
      %2194 = vmatprep.mubr.bf16.mxu0 0
      %2195 = vmatmul.mubr.bf16.gmra.mrb[0].mxu0 %v954
      %v2196 = vpop.f32.mrb[0].mxu0
      %v2197 = vadd.f32 %v2036, %v2196
      %v2198 = vpop.f32.mrb[0].mxu0
      %v2199 = vpop.f32.mrb[0].mxu0
      %v2200 = vadd.f32 %v2039, %v2199
      %v2201 = vpop.f32.mrb[0].mxu0
      %2202 = vmatprep.mubr.bf16.mxu0 0
      %2203 = vmatmul.mubr.bf16.gmra.mrb[0].mxu0 %v963
      %v2204 = vpop.f32.mrb[0].mxu0
      %v2205 = vadd.f32 %v2044, %v2204
      %v2206 = vpop.f32.mrb[0].mxu0
      %v2207 = vpop.f32.mrb[0].mxu0
      %v2208 = vadd.f32 %v2047, %v2207
      %v2209 = vpop.f32.mrb[0].mxu0
      %2210 = vmatprep.mubr.bf16.mxu0 0
      %2211 = vmatmul.mubr.bf16.gmra.mrb[0].mxu0 %v972
      %v2212 = vpop.f32.mrb[0].mxu0
      %v2213 = vadd.f32 %v2052, %v2212
      %v2214 = vpop.f32.mrb[0].mxu0
      %v2215 = vpop.f32.mrb[0].mxu0
      %v2216 = vadd.f32 %v2055, %v2215
      %v2217 = vpop.f32.mrb[0].mxu0
      %2218 = vmatprep.mubr.bf16.mxu0 0
      %2219 = vmatmul.mubr.bf16.gmra.mrb[0].mxu0 %v981
      %v2220 = vpop.f32.mrb[0].mxu0
      %v2221 = vadd.f32 %v2060, %v2220
      %v2222 = vpop.f32.mrb[0].mxu0
      %v2223 = vpop.f32.mrb[0].mxu0
      %v2224 = vadd.f32 %v2063, %v2223
      %v2225 = vpop.f32.mrb[0].mxu0
      %2226 = vmatprep.mubr.bf16.mxu0 0
      %2227 = vmatmul.mubr.bf16.gmra.mrb[0].mxu0 %v990
      %v2228 = vpop.f32.mrb[0].mxu0
      %v2229 = vadd.f32 %v2068, %v2228
      %v2230 = vpop.f32.mrb[0].mxu0
      %v2231 = vpop.f32.mrb[0].mxu0
      %v2232 = vadd.f32 %v2071, %v2231
      %v2233 = vpop.f32.mrb[0].mxu0
      %2234 = vdwg.mxu0
      %v2235 = vmax.f32 %v2109, 0.0
      %v2236 = vmax.f32 %v2112, 0.0
      %v2237 = vmax.f32 %v2117, 0.0
      %v2238 = vmax.f32 %v2120, 0.0
      %v2239 = vmax.f32 %v2125, 0.0
      %v2240 = vmax.f32 %v2128, 0.0
      %v2241 = vmax.f32 %v2133, 0.0
      %v2242 = vmax.f32 %v2136, 0.0
      %v2243 = vmax.f32 %v2141, 0.0
      %v2244 = vmax.f32 %v2144, 0.0
      %v2245 = vmax.f32 %v2149, 0.0
      %v2246 = vmax.f32 %v2152, 0.0
      %v2247 = vmax.f32 %v2157, 0.0
      %v2248 = vmax.f32 %v2160, 0.0
      %v2249 = vmax.f32 %v2165, 0.0
      %v2250 = vmax.f32 %v2168, 0.0
      %v2251 = vmax.f32 %v2173, 0.0
      %v2252 = vmax.f32 %v2176, 0.0
      %v2253 = vmax.f32 %v2181, 0.0
      %v2254 = vmax.f32 %v2184, 0.0
      %v2255 = vmax.f32 %v2189, 0.0
      %v2256 = vmax.f32 %v2192, 0.0
      %v2257 = vmax.f32 %v2197, 0.0
      %v2258 = vmax.f32 %v2200, 0.0
      %v2259 = vmax.f32 %v2205, 0.0
      %v2260 = vmax.f32 %v2208, 0.0
      %v2261 = vmax.f32 %v2213, 0.0
      %v2262 = vmax.f32 %v2216, 0.0
      %v2263 = vmax.f32 %v2221, 0.0
      %v2264 = vmax.f32 %v2224, 0.0
      %v2265 = vmax.f32 %v2229, 0.0
      %v2266 = vmax.f32 %v2232, 0.0
      %s2267 = scalar_lea.vmem [#allocation3], 24
      %2268 = vst.msk [vmem:[%s2267 + $0x1] sm:$0xff] %vm271, %v2235
      %2269 = vst.msk [vmem:[%s2267 + $0x9] sm:$0xff] %vm271, %v2236
      %2270 = vst.msk [vmem:[%s2267 + $0x19] sm:$0xff] %vm271, %v2237
      %2271 = vst.msk [vmem:[%s2267 + $0x21] sm:$0xff] %vm271, %v2238
      %2272 = vst.msk [vmem:[%s2267 + $0x31] sm:$0xff] %vm271, %v2239
      %2273 = vst.msk [vmem:[%s2267 + $0x39] sm:$0xff] %vm271, %v2240
      %2274 = vst.msk [vmem:[%s2267 + $0x49] sm:$0xff] %vm271, %v2241
      %2275 = vst.msk [vmem:[%s2267 + $0x51] sm:$0xff] %vm271, %v2242
      %2276 = vst.msk [vmem:[%s2267 + $0x61] sm:$0xff] %vm271, %v2243
      %2277 = vst.msk [vmem:[%s2267 + $0x69] sm:$0xff] %vm271, %v2244
      %2278 = vst.msk [vmem:[%s2267 + $0x79] sm:$0xff] %vm271, %v2245
      %2279 = vst.msk [vmem:[%s2267 + $0x81] sm:$0xff] %vm271, %v2246
      %2280 = vst.msk [vmem:[%s2267 + $0x91] sm:$0xff] %vm271, %v2247
      %2281 = vst.msk [vmem:[%s2267 + $0x99] sm:$0xff] %vm271, %v2248
      %2282 = vst.msk [vmem:[%s2267 + $0xa9] sm:$0xff] %vm271, %v2249
      %2283 = vst.msk [vmem:[%s2267 + $0xb1] sm:$0xff] %vm271, %v2250
      %2284 = vst.msk [vmem:[%s2267 + $0xc1] sm:$0xff] %vm271, %v2251
      %2285 = vst.msk [vmem:[%s2267 + $0xc9] sm:$0xff] %vm271, %v2252
      %2286 = vst.msk [vmem:[%s2267 + $0xd9] sm:$0xff] %vm271, %v2253
      %2287 = vst.msk [vmem:[%s2267 + $0xe1] sm:$0xff] %vm271, %v2254
      %2288 = vst.msk [vmem:[%s2267 + $0xf1] sm:$0xff] %vm271, %v2255
      %2289 = vst.msk [vmem:[%s2267 + $0xf9] sm:$0xff] %vm271, %v2256
      %2290 = vst.msk [vmem:[%s2267 + $0x109] sm:$0xff] %vm271, %v2257
      %2291 = vst.msk [vmem:[%s2267 + $0x111] sm:$0xff] %vm271, %v2258
      %2292 = vst.msk [vmem:[%s2267 + $0x121] sm:$0xff] %vm271, %v2259
      %2293 = vst.msk [vmem:[%s2267 + $0x129] sm:$0xff] %vm271, %v2260
      %2294 = vst.msk [vmem:[%s2267 + $0x139] sm:$0xff] %vm271, %v2261
      %2295 = vst.msk [vmem:[%s2267 + $0x141] sm:$0xff] %vm271, %v2262
      %2296 = vst.msk [vmem:[%s2267 + $0x151] sm:$0xff] %vm271, %v2263
      %2297 = vst.msk [vmem:[%s2267 + $0x159] sm:$0xff] %vm271, %v2264
      %2298 = vst.msk [vmem:[%s2267 + $0x169] sm:$0xff] %vm271, %v2265
      %2299 = vst.msk [vmem:[%s2267 + $0x171] sm:$0xff] %vm271, %v2266
      %v2300 = vld [vmem:[%s3] sm:$0xf]
      %v2301 = vld [vmem:[%s3 + $0x4] sm:$0xf]
      %v2302 = vld [vmem:[%s3 + $0x8] sm:$0xf]
      %v2303 = vld [vmem:[%s3 + $0xc] sm:$0xf]
      %v2304 = vld [vmem:[%s3 + $0x10] sm:$0xf]
      %v2305 = vld [vmem:[%s3 + $0x14] sm:$0xf]
      %v2306 = vld [vmem:[%s3 + $0x18] sm:$0xf]
      %v2307 = vld [vmem:[%s3 + $0x1c] sm:$0xf]
      %v2308 = vld [vmem:[%s3 + $0x20] sm:$0xf]
      %v2309 = vld [vmem:[%s3 + $0x24] sm:$0xf]
      %v2310 = vld [vmem:[%s3 + $0x28] sm:$0xf]
      %v2311 = vld [vmem:[%s3 + $0x2c] sm:$0xf]
      %v2312 = vld [vmem:[%s3 + $0x30] sm:$0xf]
      %v2313 = vld [vmem:[%s3 + $0x34] sm:$0xf]
      %v2314 = vld [vmem:[%s3 + $0x38] sm:$0xf]
      %v2315 = vld [vmem:[%s3 + $0x3c] sm:$0xf]
      %v2316 = vld [vmem:[%s3 + $0x40] sm:$0xf]
      %v2317 = vld [vmem:[%s3 + $0x44] sm:$0xf]
      %v2318 = vld [vmem:[%s3 + $0x48] sm:$0xf]
      %v2319 = vld [vmem:[%s3 + $0x4c] sm:$0xf]
      %v2320 = vld [vmem:[%s3 + $0x50] sm:$0xf]
      %v2321 = vld [vmem:[%s3 + $0x54] sm:$0xf]
      %v2322 = vld [vmem:[%s3 + $0x58] sm:$0xf]
      %v2323 = vld [vmem:[%s3 + $0x5c] sm:$0xf]
      %v2324 = vld [vmem:[%s3 + $0x60] sm:$0xf]
      %v2325 = vld [vmem:[%s3 + $0x64] sm:$0xf]
      %v2326 = vld [vmem:[%s3 + $0x68] sm:$0xf]
      %v2327 = vld [vmem:[%s3 + $0x6c] sm:$0xf]
      %v2328 = vld [vmem:[%s3 + $0x70] sm:$0xf]
      %v2329 = vld [vmem:[%s3 + $0x74] sm:$0xf]
      %v2330 = vld [vmem:[%s3 + $0x78] sm:$0xf]
      %v2331 = vld [vmem:[%s3 + $0x7c] sm:$0xf]
      %v2332 = vld [vmem:[%s3 + $0x80] sm:$0xf]
      %v2333 = vld [vmem:[%s3 + $0x84] sm:$0xf]
      %v2334 = vld [vmem:[%s3 + $0x88] sm:$0xf]
      %v2335 = vld [vmem:[%s3 + $0x8c] sm:$0xf]
      %v2336 = vld [vmem:[%s3 + $0x90] sm:$0xf]
      %v2337 = vld [vmem:[%s3 + $0x94] sm:$0xf]
      %v2338 = vld [vmem:[%s3 + $0x98] sm:$0xf]
      %v2339 = vld [vmem:[%s3 + $0x9c] sm:$0xf]
      %v2340 = vld [vmem:[%s3 + $0xa0] sm:$0xf]
      %v2341 = vld [vmem:[%s3 + $0xa4] sm:$0xf]
      %v2342 = vld [vmem:[%s3 + $0xa8] sm:$0xf]
      %v2343 = vld [vmem:[%s3 + $0xac] sm:$0xf]
      %v2344 = vld [vmem:[%s3 + $0xb0] sm:$0xf]
      %v2345 = vld [vmem:[%s3 + $0xb4] sm:$0xf]
      %v2346 = vld [vmem:[%s3 + $0xb8] sm:$0xf]
      %v2347 = vld [vmem:[%s3 + $0xbc] sm:$0xf]
      %v2348 = vld [vmem:[%s3 + $0xc0] sm:$0xf]
      %v2349 = vld [vmem:[%s3 + $0xc4] sm:$0xf]
      %v2350 = vld [vmem:[%s3 + $0xc8] sm:$0xf]
      %v2351 = vld [vmem:[%s3 + $0xcc] sm:$0xf]
      %v2352 = vld [vmem:[%s3 + $0xd0] sm:$0xf]
      %v2353 = vld [vmem:[%s3 + $0xd4] sm:$0xf]
      %v2354 = vld [vmem:[%s3 + $0xd8] sm:$0xf]
      %v2355 = vld [vmem:[%s3 + $0xdc] sm:$0xf]
      %v2356 = vld [vmem:[%s3 + $0xe0] sm:$0xf]
      %v2357 = vld [vmem:[%s3 + $0xe4] sm:$0xf]
      %v2358 = vld [vmem:[%s3 + $0xe8] sm:$0xf]
      %v2359 = vld [vmem:[%s3 + $0xec] sm:$0xf]
      %v2360 = vld [vmem:[%s3 + $0xf0] sm:$0xf]
      %v2361 = vld [vmem:[%s3 + $0xf4] sm:$0xf]
      %v2362 = vld [vmem:[%s3 + $0xf8] sm:$0xf]
      %v2363 = vld [vmem:[%s3 + $0xfc] sm:$0xf]
      %v2364 = vld [vmem:[%s3 + $0x100] sm:$0xf]
      %v2365 = vld [vmem:[%s3 + $0x104] sm:$0xf]
      %v2366 = vld [vmem:[%s3 + $0x108] sm:$0xf]
      %v2367 = vld [vmem:[%s3 + $0x10c] sm:$0xf]
      %v2368 = vld [vmem:[%s3 + $0x110] sm:$0xf]
      %v2369 = vld [vmem:[%s3 + $0x114] sm:$0xf]
      %v2370 = vld [vmem:[%s3 + $0x118] sm:$0xf]
      %v2371 = vld [vmem:[%s3 + $0x11c] sm:$0xf]
      %v2372 = vld [vmem:[#allocation3] sm:$0xff]
      %v2373 = vld [vmem:[#allocation3 + $0x8] sm:$0xff]
      %v2374 = vld [vmem:[#allocation3 + $0x18] sm:$0xff]
      %v2375 = vld [vmem:[#allocation3 + $0x20] sm:$0xff]
      %v2376 = vld [vmem:[#allocation3 + $0x30] sm:$0xff]
      %v2377 = vld [vmem:[#allocation3 + $0x38] sm:$0xff]
      %v2378 = vld [vmem:[#allocation3 + $0x48] sm:$0xff]
      %v2379 = vld [vmem:[#allocation3 + $0x50] sm:$0xff]
      %v2380 = vld [vmem:[#allocation3 + $0x60] sm:$0xff]
      %v2381 = vld [vmem:[#allocation3 + $0x68] sm:$0xff]
      %v2382 = vld [vmem:[#allocation3 + $0x78] sm:$0xff]
      %v2383 = vld [vmem:[#allocation3 + $0x80] sm:$0xff]
      %v2384 = vld [vmem:[#allocation3 + $0x90] sm:$0xff]
      %v2385 = vld [vmem:[#allocation3 + $0x98] sm:$0xff]
      %v2386 = vld [vmem:[#allocation3 + $0xa8] sm:$0xff]
      %v2387 = vld [vmem:[#allocation3 + $0xb0] sm:$0xff]
      %v2388 = vld [vmem:[#allocation3 + $0xc0] sm:$0xff]
      %v2389 = vld [vmem:[#allocation3 + $0xc8] sm:$0xff]
      %v2390 = vld [vmem:[#allocation3 + $0xd8] sm:$0xff]
      %v2391 = vld [vmem:[#allocation3 + $0xe0] sm:$0xff]
      %v2392 = vld [vmem:[#allocation3 + $0xf0] sm:$0xff]
      %v2393 = vld [vmem:[#allocation3 + $0xf8] sm:$0xff]
      %v2394 = vld [vmem:[#allocation3 + $0x108] sm:$0xff]
      %v2395 = vld [vmem:[#allocation3 + $0x110] sm:$0xff]
      %v2396 = vld [vmem:[#allocation3 + $0x120] sm:$0xff]
      %v2397 = vld [vmem:[#allocation3 + $0x128] sm:$0xff]
      %v2398 = vld [vmem:[#allocation3 + $0x138] sm:$0xff]
      %v2399 = vld [vmem:[#allocation3 + $0x140] sm:$0xff]
      %v2400 = vld [vmem:[#allocation3 + $0x150] sm:$0xff]
      %v2401 = vld [vmem:[#allocation3 + $0x158] sm:$0xff]
      %v2402 = vld [vmem:[#allocation3 + $0x168] sm:$0xff]
      %v2403 = vld [vmem:[#allocation3 + $0x170] sm:$0xff]
      %v2404 = vld [vmem:[#allocation3 + $0x1] sm:$0xff]
      %v2405 = vld [vmem:[#allocation3 + $0x9] sm:$0xff]
      %v2406 = vld [vmem:[#allocation3 + $0x19] sm:$0xff]
      %v2407 = vld [vmem:[#allocation3 + $0x21] sm:$0xff]
      %v2408 = vld [vmem:[#allocation3 + $0x31] sm:$0xff]
      %v2409 = vld [vmem:[#allocation3 + $0x39] sm:$0xff]
      %v2410 = vld [vmem:[#allocation3 + $0x49] sm:$0xff]
      %v2411 = vld [vmem:[#allocation3 + $0x51] sm:$0xff]
      %v2412 = vld [vmem:[#allocation3 + $0x61] sm:$0xff]
      %v2413 = vld [vmem:[#allocation3 + $0x69] sm:$0xff]
      %v2414 = vld [vmem:[#allocation3 + $0x79] sm:$0xff]
      %v2415 = vld [vmem:[#allocation3 + $0x81] sm:$0xff]
      %v2416 = vld [vmem:[#allocation3 + $0x91] sm:$0xff]
      %v2417 = vld [vmem:[#allocation3 + $0x99] sm:$0xff]
      %v2418 = vld [vmem:[#allocation3 + $0xa9] sm:$0xff]
      %v2419 = vld [vmem:[#allocation3 + $0xb1] sm:$0xff]
      %v2420 = vld [vmem:[#allocation3 + $0xc1] sm:$0xff]
      %v2421 = vld [vmem:[#allocation3 + $0xc9] sm:$0xff]
      %v2422 = vld [vmem:[#allocation3 + $0xd9] sm:$0xff]
      %v2423 = vld [vmem:[#allocation3 + $0xe1] sm:$0xff]
      %v2424 = vld [vmem:[#allocation3 + $0xf1] sm:$0xff]
      %v2425 = vld [vmem:[#allocation3 + $0xf9] sm:$0xff]
      %v2426 = vld [vmem:[#allocation3 + $0x109] sm:$0xff]
      %v2427 = vld [vmem:[#allocation3 + $0x111] sm:$0xff]
      %v2428 = vld [vmem:[#allocation3 + $0x121] sm:$0xff]
      %v2429 = vld [vmem:[#allocation3 + $0x129] sm:$0xff]
      %v2430 = vld [vmem:[#allocation3 + $0x139] sm:$0xff]
      %v2431 = vld [vmem:[#allocation3 + $0x141] sm:$0xff]
      %v2432 = vld [vmem:[#allocation3 + $0x151] sm:$0xff]
      %v2433 = vld [vmem:[#allocation3 + $0x159] sm:$0xff]
      %v2434 = vld [vmem:[#allocation3 + $0x169] sm:$0xff]
      %v2435 = vld [vmem:[#allocation3 + $0x171] sm:$0xff]
      %v2436 = vld [vmem:[#allocation3 + $0x2] sm:$0xff]
      %v2437 = vld [vmem:[#allocation3 + $0xa] sm:$0xff]
      %v2438 = vld [vmem:[#allocation3 + $0x1a] sm:$0xff]
      %v2439 = vld [vmem:[#allocation3 + $0x22] sm:$0xff]
      %v2440 = vld [vmem:[#allocation3 + $0x32] sm:$0xff]
      %v2441 = vld [vmem:[#allocation3 + $0x3a] sm:$0xff]
      %v2442 = vld [vmem:[#allocation3 + $0x4a] sm:$0xff]
      %v2443 = vld [vmem:[#allocation3 + $0x52] sm:$0xff]
      %v2444 = vld [vmem:[#allocation3 + $0x62] sm:$0xff]
      %v2445 = vld [vmem:[#allocation3 + $0x6a] sm:$0xff]
      %v2446 = vld [vmem:[#allocation3 + $0x7a] sm:$0xff]
      %v2447 = vld [vmem:[#allocation3 + $0x82] sm:$0xff]
      %v2448 = vld [vmem:[#allocation3 + $0x92] sm:$0xff]
      %v2449 = vld [vmem:[#allocation3 + $0x9a] sm:$0xff]
      %v2450 = vld [vmem:[#allocation3 + $0xaa] sm:$0xff]
      %v2451 = vld [vmem:[#allocation3 + $0xb2] sm:$0xff]
      %v2452 = vld [vmem:[#allocation3 + $0xc2] sm:$0xff]
      %v2453 = vld [vmem:[#allocation3 + $0xca] sm:$0xff]
      %v2454 = vld [vmem:[#allocation3 + $0xda] sm:$0xff]
      %v2455 = vld [vmem:[#allocation3 + $0xe2] sm:$0xff]
      %v2456 = vld [vmem:[#allocation3 + $0xf2] sm:$0xff]
      %v2457 = vld [vmem:[#allocation3 + $0xfa] sm:$0xff]
      %v2458 = vld [vmem:[#allocation3 + $0x10a] sm:$0xff]
      %v2459 = vld [vmem:[#allocation3 + $0x112] sm:$0xff]
      %v2460 = vld [vmem:[#allocation3 + $0x122] sm:$0xff]
      %v2461 = vld [vmem:[#allocation3 + $0x12a] sm:$0xff]
      %v2462 = vld [vmem:[#allocation3 + $0x13a] sm:$0xff]
      %v2463 = vld [vmem:[#allocation3 + $0x142] sm:$0xff]
      %v2464 = vld [vmem:[#allocation3 + $0x152] sm:$0xff]
      %v2465 = vld [vmem:[#allocation3 + $0x15a] sm:$0xff]
      %v2466 = vld [vmem:[#allocation3 + $0x16a] sm:$0xff]
      %v2467 = vld [vmem:[#allocation3 + $0x172] sm:$0xff]
      %v2468 = vld [vmem:[%s2267] sm:$0xff]
      %v2469 = vld [vmem:[%s2267 + $0x8] sm:$0xff]
      %v2470 = vld [vmem:[%s2267 + $0x18] sm:$0xff]
      %v2471 = vld [vmem:[%s2267 + $0x20] sm:$0xff]
      %v2472 = vld [vmem:[%s2267 + $0x30] sm:$0xff]
      %v2473 = vld [vmem:[%s2267 + $0x38] sm:$0xff]
      %v2474 = vld [vmem:[%s2267 + $0x48] sm:$0xff]
      %v2475 = vld [vmem:[%s2267 + $0x50] sm:$0xff]
      %v2476 = vld [vmem:[%s2267 + $0x60] sm:$0xff]
      %v2477 = vld [vmem:[%s2267 + $0x68] sm:$0xff]
      %v2478 = vld [vmem:[%s2267 + $0x78] sm:$0xff]
      %v2479 = vld [vmem:[%s2267 + $0x80] sm:$0xff]
      %v2480 = vld [vmem:[%s2267 + $0x90] sm:$0xff]
      %v2481 = vld [vmem:[%s2267 + $0x98] sm:$0xff]
      %v2482 = vld [vmem:[%s2267 + $0xa8] sm:$0xff]
      %v2483 = vld [vmem:[%s2267 + $0xb0] sm:$0xff]
      %v2484 = vld [vmem:[%s2267 + $0xc0] sm:$0xff]
      %v2485 = vld [vmem:[%s2267 + $0xc8] sm:$0xff]
      %v2486 = vld [vmem:[%s2267 + $0xd8] sm:$0xff]
      %v2487 = vld [vmem:[%s2267 + $0xe0] sm:$0xff]
      %v2488 = vld [vmem:[%s2267 + $0xf0] sm:$0xff]
      %v2489 = vld [vmem:[%s2267 + $0xf8] sm:$0xff]
      %v2490 = vld [vmem:[%s2267 + $0x108] sm:$0xff]
      %v2491 = vld [vmem:[%s2267 + $0x110] sm:$0xff]
      %v2492 = vld [vmem:[%s2267 + $0x120] sm:$0xff]
      %v2493 = vld [vmem:[%s2267 + $0x128] sm:$0xff]
      %v2494 = vld [vmem:[%s2267 + $0x138] sm:$0xff]
      %v2495 = vld [vmem:[%s2267 + $0x140] sm:$0xff]
      %v2496 = vld [vmem:[%s2267 + $0x150] sm:$0xff]
      %v2497 = vld [vmem:[%s2267 + $0x158] sm:$0xff]
      %v2498 = vld [vmem:[%s2267 + $0x168] sm:$0xff]
      %v2499 = vld [vmem:[%s2267 + $0x170] sm:$0xff]
      %v2500 = vld [vmem:[%s2267 + $0x1] sm:$0xff]
      %v2501 = vld [vmem:[%s2267 + $0x9] sm:$0xff]
      %v2502 = vld [vmem:[%s2267 + $0x19] sm:$0xff]
      %v2503 = vld [vmem:[%s2267 + $0x21] sm:$0xff]
      %v2504 = vld [vmem:[%s2267 + $0x31] sm:$0xff]
      %v2505 = vld [vmem:[%s2267 + $0x39] sm:$0xff]
      %v2506 = vld [vmem:[%s2267 + $0x49] sm:$0xff]
      %v2507 = vld [vmem:[%s2267 + $0x51] sm:$0xff]
      %v2508 = vld [vmem:[%s2267 + $0x61] sm:$0xff]
      %v2509 = vld [vmem:[%s2267 + $0x69] sm:$0xff]
      %v2510 = vld [vmem:[%s2267 + $0x79] sm:$0xff]
      %v2511 = vld [vmem:[%s2267 + $0x81] sm:$0xff]
      %v2512 = vld [vmem:[%s2267 + $0x91] sm:$0xff]
      %v2513 = vld [vmem:[%s2267 + $0x99] sm:$0xff]
      %v2514 = vld [vmem:[%s2267 + $0xa9] sm:$0xff]
      %v2515 = vld [vmem:[%s2267 + $0xb1] sm:$0xff]
      %v2516 = vld [vmem:[%s2267 + $0xc1] sm:$0xff]
      %v2517 = vld [vmem:[%s2267 + $0xc9] sm:$0xff]
      %v2518 = vld [vmem:[%s2267 + $0xd9] sm:$0xff]
      %v2519 = vld [vmem:[%s2267 + $0xe1] sm:$0xff]
      %v2520 = vld [vmem:[%s2267 + $0xf1] sm:$0xff]
      %v2521 = vld [vmem:[%s2267 + $0xf9] sm:$0xff]
      %v2522 = vld [vmem:[%s2267 + $0x109] sm:$0xff]
      %v2523 = vld [vmem:[%s2267 + $0x111] sm:$0xff]
      %v2524 = vld [vmem:[%s2267 + $0x121] sm:$0xff]
      %v2525 = vld [vmem:[%s2267 + $0x129] sm:$0xff]
      %v2526 = vld [vmem:[%s2267 + $0x139] sm:$0xff]
      %v2527 = vld [vmem:[%s2267 + $0x141] sm:$0xff]
      %v2528 = vld [vmem:[%s2267 + $0x151] sm:$0xff]
      %v2529 = vld [vmem:[%s2267 + $0x159] sm:$0xff]
      %v2530 = vld [vmem:[%s2267 + $0x169] sm:$0xff]
      %v2531 = vld [vmem:[%s2267 + $0x171] sm:$0xff]
      %v2532 = vld [vmem:[%s2267 + $0x2] sm:$0xff]
      %v2533 = vld [vmem:[%s2267 + $0xa] sm:$0xff]
      %v2534 = vld [vmem:[%s2267 + $0x1a] sm:$0xff]
      %v2535 = vld [vmem:[%s2267 + $0x22] sm:$0xff]
      %v2536 = vld [vmem:[%s2267 + $0x32] sm:$0xff]
      %v2537 = vld [vmem:[%s2267 + $0x3a] sm:$0xff]
      %v2538 = vld [vmem:[%s2267 + $0x4a] sm:$0xff]
      %v2539 = vld [vmem:[%s2267 + $0x52] sm:$0xff]
      %v2540 = vld [vmem:[%s2267 + $0x62] sm:$0xff]
      %v2541 = vld [vmem:[%s2267 + $0x6a] sm:$0xff]
      %v2542 = vld [vmem:[%s2267 + $0x7a] sm:$0xff]
      %v2543 = vld [vmem:[%s2267 + $0x82] sm:$0xff]
      %v2544 = vld [vmem:[%s2267 + $0x92] sm:$0xff]
      %v2545 = vld [vmem:[%s2267 + $0x9a] sm:$0xff]
      %v2546 = vld [vmem:[%s2267 + $0xaa] sm:$0xff]
      %v2547 = vld [vmem:[%s2267 + $0xb2] sm:$0xff]
      %v2548 = vld [vmem:[%s2267 + $0xc2] sm:$0xff]
      %v2549 = vld [vmem:[%s2267 + $0xca] sm:$0xff]
      %v2550 = vld [vmem:[%s2267 + $0xda] sm:$0xff]
      %v2551 = vld [vmem:[%s2267 + $0xe2] sm:$0xff]
      %v2552 = vld [vmem:[%s2267 + $0xf2] sm:$0xff]
      %v2553 = vld [vmem:[%s2267 + $0xfa] sm:$0xff]
      %v2554 = vld [vmem:[%s2267 + $0x10a] sm:$0xff]
      %v2555 = vld [vmem:[%s2267 + $0x112] sm:$0xff]
      %v2556 = vld [vmem:[%s2267 + $0x122] sm:$0xff]
      %v2557 = vld [vmem:[%s2267 + $0x12a] sm:$0xff]
      %v2558 = vld [vmem:[%s2267 + $0x13a] sm:$0xff]
      %v2559 = vld [vmem:[%s2267 + $0x142] sm:$0xff]
      %v2560 = vld [vmem:[%s2267 + $0x152] sm:$0xff]
      %v2561 = vld [vmem:[%s2267 + $0x15a] sm:$0xff]
      %v2562 = vld [vmem:[%s2267 + $0x16a] sm:$0xff]
      %v2563 = vld [vmem:[%s2267 + $0x172] sm:$0xff]
      %s2564 = scalar_lea.vmem [#allocation3], 48
      %v2565 = vld [vmem:[%s2564] sm:$0xff]
      %v2566 = vld [vmem:[%s2564 + $0x8] sm:$0xff]
      %v2567 = vld [vmem:[%s2564 + $0x18] sm:$0xff]
      %v2568 = vld [vmem:[%s2564 + $0x20] sm:$0xff]
      %v2569 = vld [vmem:[%s2564 + $0x30] sm:$0xff]
      %v2570 = vld [vmem:[%s2564 + $0x38] sm:$0xff]
      %v2571 = vld [vmem:[%s2564 + $0x48] sm:$0xff]
      %v2572 = vld [vmem:[%s2564 + $0x50] sm:$0xff]
      %v2573 = vld [vmem:[%s2564 + $0x60] sm:$0xff]
      %v2574 = vld [vmem:[%s2564 + $0x68] sm:$0xff]
      %v2575 = vld [vmem:[%s2564 + $0x78] sm:$0xff]
      %v2576 = vld [vmem:[%s2564 + $0x80] sm:$0xff]
      %v2577 = vld [vmem:[%s2564 + $0x90] sm:$0xff]
      %v2578 = vld [vmem:[%s2564 + $0x98] sm:$0xff]
      %v2579 = vld [vmem:[%s2564 + $0xa8] sm:$0xff]
      %v2580 = vld [vmem:[%s2564 + $0xb0] sm:$0xff]
      %v2581 = vld [vmem:[%s2564 + $0xc0] sm:$0xff]
      %v2582 = vld [vmem:[%s2564 + $0xc8] sm:$0xff]
      %v2583 = vld [vmem:[%s2564 + $0xd8] sm:$0xff]
      %v2584 = vld [vmem:[%s2564 + $0xe0] sm:$0xff]
      %v2585 = vld [vmem:[%s2564 + $0xf0] sm:$0xff]
      %v2586 = vld [vmem:[%s2564 + $0xf8] sm:$0xff]
      %v2587 = vld [vmem:[%s2564 + $0x108] sm:$0xff]
      %v2588 = vld [vmem:[%s2564 + $0x110] sm:$0xff]
      %v2589 = vld [vmem:[%s2564 + $0x120] sm:$0xff]
      %v2590 = vld [vmem:[%s2564 + $0x128] sm:$0xff]
      %v2591 = vld [vmem:[%s2564 + $0x138] sm:$0xff]
      %v2592 = vld [vmem:[%s2564 + $0x140] sm:$0xff]
      %v2593 = vld [vmem:[%s2564 + $0x150] sm:$0xff]
      %v2594 = vld [vmem:[%s2564 + $0x158] sm:$0xff]
      %v2595 = vld [vmem:[%s2564 + $0x168] sm:$0xff]
      %v2596 = vld [vmem:[%s2564 + $0x170] sm:$0xff]
      %v2597 = vld [vmem:[%s2564 + $0x1] sm:$0xff]
      %v2598 = vld [vmem:[%s2564 + $0x9] sm:$0xff]
      %v2599 = vld [vmem:[%s2564 + $0x19] sm:$0xff]
      %v2600 = vld [vmem:[%s2564 + $0x21] sm:$0xff]
      %v2601 = vld [vmem:[%s2564 + $0x31] sm:$0xff]
      %v2602 = vld [vmem:[%s2564 + $0x39] sm:$0xff]
      %v2603 = vld [vmem:[%s2564 + $0x49] sm:$0xff]
      %v2604 = vld [vmem:[%s2564 + $0x51] sm:$0xff]
      %v2605 = vld [vmem:[%s2564 + $0x61] sm:$0xff]
      %v2606 = vld [vmem:[%s2564 + $0x69] sm:$0xff]
      %v2607 = vld [vmem:[%s2564 + $0x79] sm:$0xff]
      %v2608 = vld [vmem:[%s2564 + $0x81] sm:$0xff]
      %v2609 = vld [vmem:[%s2564 + $0x91] sm:$0xff]
      %v2610 = vld [vmem:[%s2564 + $0x99] sm:$0xff]
      %v2611 = vld [vmem:[%s2564 + $0xa9] sm:$0xff]
      %v2612 = vld [vmem:[%s2564 + $0xb1] sm:$0xff]
      %v2613 = vld [vmem:[%s2564 + $0xc1] sm:$0xff]
      %v2614 = vld [vmem:[%s2564 + $0xc9] sm:$0xff]
      %v2615 = vld [vmem:[%s2564 + $0xd9] sm:$0xff]
      %v2616 = vld [vmem:[%s2564 + $0xe1] sm:$0xff]
      %v2617 = vld [vmem:[%s2564 + $0xf1] sm:$0xff]
      %v2618 = vld [vmem:[%s2564 + $0xf9] sm:$0xff]
      %v2619 = vld [vmem:[%s2564 + $0x109] sm:$0xff]
      %v2620 = vld [vmem:[%s2564 + $0x111] sm:$0xff]
      %v2621 = vld [vmem:[%s2564 + $0x121] sm:$0xff]
      %v2622 = vld [vmem:[%s2564 + $0x129] sm:$0xff]
      %v2623 = vld [vmem:[%s2564 + $0x139] sm:$0xff]
      %v2624 = vld [vmem:[%s2564 + $0x141] sm:$0xff]
      %v2625 = vld [vmem:[%s2564 + $0x151] sm:$0xff]
      %v2626 = vld [vmem:[%s2564 + $0x159] sm:$0xff]
      %v2627 = vld [vmem:[%s2564 + $0x169] sm:$0xff]
      %v2628 = vld [vmem:[%s2564 + $0x171] sm:$0xff]
      %v2629 = vld [vmem:[%s2564 + $0x2] sm:$0xff]
      %v2630 = vld [vmem:[%s2564 + $0xa] sm:$0xff]
      %v2631 = vld [vmem:[%s2564 + $0x1a] sm:$0xff]
      %v2632 = vld [vmem:[%s2564 + $0x22] sm:$0xff]
      %v2633 = vld [vmem:[%s2564 + $0x32] sm:$0xff]
      %v2634 = vld [vmem:[%s2564 + $0x3a] sm:$0xff]
      %v2635 = vld [vmem:[%s2564 + $0x4a] sm:$0xff]
      %v2636 = vld [vmem:[%s2564 + $0x52] sm:$0xff]
      %v2637 = vld [vmem:[%s2564 + $0x62] sm:$0xff]
      %v2638 = vld [vmem:[%s2564 + $0x6a] sm:$0xff]
      %v2639 = vld [vmem:[%s2564 + $0x7a] sm:$0xff]
      %v2640 = vld [vmem:[%s2564 + $0x82] sm:$0xff]
      %v2641 = vld [vmem:[%s2564 + $0x92] sm:$0xff]
      %v2642 = vld [vmem:[%s2564 + $0x9a] sm:$0xff]
      %v2643 = vld [vmem:[%s2564 + $0xaa] sm:$0xff]
      %v2644 = vld [vmem:[%s2564 + $0xb2] sm:$0xff]
      %v2645 = vld [vmem:[%s2564 + $0xc2] sm:$0xff]
      %v2646 = vld [vmem:[%s2564 + $0xca] sm:$0xff]
      %v2647 = vld [vmem:[%s2564 + $0xda] sm:$0xff]
      %v2648 = vld [vmem:[%s2564 + $0xe2] sm:$0xff]
      %v2649 = vld [vmem:[%s2564 + $0xf2] sm:$0xff]
      %v2650 = vld [vmem:[%s2564 + $0xfa] sm:$0xff]
      %v2651 = vld [vmem:[%s2564 + $0x10a] sm:$0xff]
      %v2652 = vld [vmem:[%s2564 + $0x112] sm:$0xff]
      %v2653 = vld [vmem:[%s2564 + $0x122] sm:$0xff]
      %v2654 = vld [vmem:[%s2564 + $0x12a] sm:$0xff]
      %v2655 = vld [vmem:[%s2564 + $0x13a] sm:$0xff]
      %v2656 = vld [vmem:[%s2564 + $0x142] sm:$0xff]
      %v2657 = vld [vmem:[%s2564 + $0x152] sm:$0xff]
      %v2658 = vld [vmem:[%s2564 + $0x15a] sm:$0xff]
      %v2659 = vld [vmem:[%s2564 + $0x16a] sm:$0xff]
      %v2660 = vld [vmem:[%s2564 + $0x172] sm:$0xff]
      %2693 = vrot.lane.b32.xlu0 %v2404, 64
      %v2694 = vpop.permute.xlu0 %2693
      %2695 = vrot.lane.b32.xlu0 %v2405, 64
      %v2696 = vpop.permute.xlu0 %2695
      %2697 = vrot.lane.b32.xlu0 %v2406, 64
      %v2698 = vpop.permute.xlu0 %2697
      %2699 = vrot.lane.b32.xlu0 %v2407, 64
      %v2700 = vpop.permute.xlu0 %2699
      %2701 = vrot.lane.b32.xlu0 %v2408, 64
      %v2702 = vpop.permute.xlu0 %2701
      %2703 = vrot.lane.b32.xlu0 %v2409, 64
      %v2704 = vpop.permute.xlu0 %2703
      %2705 = vrot.lane.b32.xlu0 %v2410, 64
      %v2706 = vpop.permute.xlu0 %2705
      %2707 = vrot.lane.b32.xlu0 %v2411, 64
      %v2708 = vpop.permute.xlu0 %2707
      %2709 = vrot.lane.b32.xlu0 %v2412, 64
      %v2710 = vpop.permute.xlu0 %2709
      %2711 = vrot.lane.b32.xlu0 %v2413, 64
      %v2712 = vpop.permute.xlu0 %2711
      %2713 = vrot.lane.b32.xlu0 %v2414, 64
      %v2714 = vpop.permute.xlu0 %2713
      %2715 = vrot.lane.b32.xlu0 %v2415, 64
      %v2716 = vpop.permute.xlu0 %2715
      %2717 = vrot.lane.b32.xlu0 %v2416, 64
      %v2718 = vpop.permute.xlu0 %2717
      %2719 = vrot.lane.b32.xlu0 %v2417, 64
      %v2720 = vpop.permute.xlu0 %2719
      %2721 = vrot.lane.b32.xlu0 %v2418, 64
      %v2722 = vpop.permute.xlu0 %2721
      %2723 = vrot.lane.b32.xlu0 %v2419, 64
      %v2724 = vpop.permute.xlu0 %2723
      %2725 = vrot.lane.b32.xlu0 %v2420, 64
      %v2726 = vpop.permute.xlu0 %2725
      %2727 = vrot.lane.b32.xlu0 %v2421, 64
      %v2728 = vpop.permute.xlu0 %2727
      %2729 = vrot.lane.b32.xlu0 %v2422, 64
      %v2730 = vpop.permute.xlu0 %2729
      %2731 = vrot.lane.b32.xlu0 %v2423, 64
      %v2732 = vpop.permute.xlu0 %2731
      %2733 = vrot.lane.b32.xlu0 %v2424, 64
      %v2734 = vpop.permute.xlu0 %2733
      %2735 = vrot.lane.b32.xlu0 %v2425, 64
      %v2736 = vpop.permute.xlu0 %2735
      %2737 = vrot.lane.b32.xlu0 %v2426, 64
      %v2738 = vpop.permute.xlu0 %2737
      %2739 = vrot.lane.b32.xlu0 %v2427, 64
      %v2740 = vpop.permute.xlu0 %2739
      %2741 = vrot.lane.b32.xlu0 %v2428, 64
      %v2742 = vpop.permute.xlu0 %2741
      %2743 = vrot.lane.b32.xlu0 %v2429, 64
      %v2744 = vpop.permute.xlu0 %2743
      %2745 = vrot.lane.b32.xlu0 %v2430, 64
      %v2746 = vpop.permute.xlu0 %2745
      %2747 = vrot.lane.b32.xlu0 %v2431, 64
      %v2748 = vpop.permute.xlu0 %2747
      %2749 = vrot.lane.b32.xlu0 %v2432, 64
      %v2750 = vpop.permute.xlu0 %2749
      %2751 = vrot.lane.b32.xlu0 %v2433, 64
      %v2752 = vpop.permute.xlu0 %2751
      %2753 = vrot.lane.b32.xlu0 %v2434, 64
      %v2754 = vpop.permute.xlu0 %2753
      %2755 = vrot.lane.b32.xlu0 %v2435, 64
      %v2756 = vpop.permute.xlu0 %2755
      %2821 = vrot.lane.b32.xlu0 %v2468, 64
      %v2822 = vpop.permute.xlu0 %2821
      %2823 = vrot.lane.b32.xlu0 %v2469, 64
      %v2824 = vpop.permute.xlu0 %2823
      %2825 = vrot.lane.b32.xlu0 %v2470, 64
      %v2826 = vpop.permute.xlu0 %2825
      %2827 = vrot.lane.b32.xlu0 %v2471, 64
      %v2828 = vpop.permute.xlu0 %2827
      %2829 = vrot.lane.b32.xlu0 %v2472, 64
      %v2830 = vpop.permute.xlu0 %2829
      %2831 = vrot.lane.b32.xlu0 %v2473, 64
      %v2832 = vpop.permute.xlu0 %2831
      %2833 = vrot.lane.b32.xlu0 %v2474, 64
      %v2834 = vpop.permute.xlu0 %2833
      %2835 = vrot.lane.b32.xlu0 %v2475, 64
      %v2836 = vpop.permute.xlu0 %2835
      %2837 = vrot.lane.b32.xlu0 %v2476, 64
      %v2838 = vpop.permute.xlu0 %2837
      %2839 = vrot.lane.b32.xlu0 %v2477, 64
      %v2840 = vpop.permute.xlu0 %2839
      %2841 = vrot.lane.b32.xlu0 %v2478, 64
      %v2842 = vpop.permute.xlu0 %2841
      %2843 = vrot.lane.b32.xlu0 %v2479, 64
      %v2844 = vpop.permute.xlu0 %2843
      %2845 = vrot.lane.b32.xlu0 %v2480, 64
      %v2846 = vpop.permute.xlu0 %2845
      %2847 = vrot.lane.b32.xlu0 %v2481, 64
      %v2848 = vpop.permute.xlu0 %2847
      %2849 = vrot.lane.b32.xlu0 %v2482, 64
      %v2850 = vpop.permute.xlu0 %2849
      %2851 = vrot.lane.b32.xlu0 %v2483, 64
      %v2852 = vpop.permute.xlu0 %2851
      %2853 = vrot.lane.b32.xlu0 %v2484, 64
      %v2854 = vpop.permute.xlu0 %2853
      %2855 = vrot.lane.b32.xlu0 %v2485, 64
      %v2856 = vpop.permute.xlu0 %2855
      %2857 = vrot.lane.b32.xlu0 %v2486, 64
      %v2858 = vpop.permute.xlu0 %2857
      %2859 = vrot.lane.b32.xlu0 %v2487, 64
      %v2860 = vpop.permute.xlu0 %2859
      %2861 = vrot.lane.b32.xlu0 %v2488, 64
      %v2862 = vpop.permute.xlu0 %2861
      %2863 = vrot.lane.b32.xlu0 %v2489, 64
      %v2864 = vpop.permute.xlu0 %2863
      %2865 = vrot.lane.b32.xlu0 %v2490, 64
      %v2866 = vpop.permute.xlu0 %2865
      %2867 = vrot.lane.b32.xlu0 %v2491, 64
      %v2868 = vpop.permute.xlu0 %2867
      %2869 = vrot.lane.b32.xlu0 %v2492, 64
      %v2870 = vpop.permute.xlu0 %2869
      %2871 = vrot.lane.b32.xlu0 %v2493, 64
      %v2872 = vpop.permute.xlu0 %2871
      %2873 = vrot.lane.b32.xlu0 %v2494, 64
      %v2874 = vpop.permute.xlu0 %2873
      %2875 = vrot.lane.b32.xlu0 %v2495, 64
      %v2876 = vpop.permute.xlu0 %2875
      %2877 = vrot.lane.b32.xlu0 %v2496, 64
      %v2878 = vpop.permute.xlu0 %2877
      %2879 = vrot.lane.b32.xlu0 %v2497, 64
      %v2880 = vpop.permute.xlu0 %2879
      %2881 = vrot.lane.b32.xlu0 %v2498, 64
      %v2882 = vpop.permute.xlu0 %2881
      %2883 = vrot.lane.b32.xlu0 %v2499, 64
      %v2884 = vpop.permute.xlu0 %2883
      %2949 = vrot.lane.b32.xlu0 %v2532, 64
      %v2950 = vpop.permute.xlu0 %2949
      %2951 = vrot.lane.b32.xlu0 %v2533, 64
      %v2952 = vpop.permute.xlu0 %2951
      %2953 = vrot.lane.b32.xlu0 %v2534, 64
      %v2954 = vpop.permute.xlu0 %2953
      %2955 = vrot.lane.b32.xlu0 %v2535, 64
      %v2956 = vpop.permute.xlu0 %2955
      %2957 = vrot.lane.b32.xlu0 %v2536, 64
      %v2958 = vpop.permute.xlu0 %2957
      %2959 = vrot.lane.b32.xlu0 %v2537, 64
      %v2960 = vpop.permute.xlu0 %2959
      %2961 = vrot.lane.b32.xlu0 %v2538, 64
      %v2962 = vpop.permute.xlu0 %2961
      %2963 = vrot.lane.b32.xlu0 %v2539, 64
      %v2964 = vpop.permute.xlu0 %2963
      %2965 = vrot.lane.b32.xlu0 %v2540, 64
      %v2966 = vpop.permute.xlu0 %2965
      %2967 = vrot.lane.b32.xlu0 %v2541, 64
      %v2968 = vpop.permute.xlu0 %2967
      %2969 = vrot.lane.b32.xlu0 %v2542, 64
      %v2970 = vpop.permute.xlu0 %2969
      %2971 = vrot.lane.b32.xlu0 %v2543, 64
      %v2972 = vpop.permute.xlu0 %2971
      %2973 = vrot.lane.b32.xlu0 %v2544, 64
      %v2974 = vpop.permute.xlu0 %2973
      %2975 = vrot.lane.b32.xlu0 %v2545, 64
      %v2976 = vpop.permute.xlu0 %2975
      %2977 = vrot.lane.b32.xlu0 %v2546, 64
      %v2978 = vpop.permute.xlu0 %2977
      %2979 = vrot.lane.b32.xlu0 %v2547, 64
      %v2980 = vpop.permute.xlu0 %2979
      %2981 = vrot.lane.b32.xlu0 %v2548, 64
      %v2982 = vpop.permute.xlu0 %2981
      %2983 = vrot.lane.b32.xlu0 %v2549, 64
      %v2984 = vpop.permute.xlu0 %2983
      %2985 = vrot.lane.b32.xlu0 %v2550, 64
      %v2986 = vpop.permute.xlu0 %2985
      %2987 = vrot.lane.b32.xlu0 %v2551, 64
      %v2988 = vpop.permute.xlu0 %2987
      %2989 = vrot.lane.b32.xlu0 %v2552, 64
      %v2990 = vpop.permute.xlu0 %2989
      %2991 = vrot.lane.b32.xlu0 %v2553, 64
      %v2992 = vpop.permute.xlu0 %2991
      %2993 = vrot.lane.b32.xlu0 %v2554, 64
      %v2994 = vpop.permute.xlu0 %2993
      %2995 = vrot.lane.b32.xlu0 %v2555, 64
      %v2996 = vpop.permute.xlu0 %2995
      %2997 = vrot.lane.b32.xlu0 %v2556, 64
      %v2998 = vpop.permute.xlu0 %2997
      %2999 = vrot.lane.b32.xlu0 %v2557, 64
      %v3000 = vpop.permute.xlu0 %2999
      %3001 = vrot.lane.b32.xlu0 %v2558, 64
      %v3002 = vpop.permute.xlu0 %3001
      %3003 = vrot.lane.b32.xlu0 %v2559, 64
      %v3004 = vpop.permute.xlu0 %3003
      %3005 = vrot.lane.b32.xlu0 %v2560, 64
      %v3006 = vpop.permute.xlu0 %3005
      %3007 = vrot.lane.b32.xlu0 %v2561, 64
      %v3008 = vpop.permute.xlu0 %3007
      %3009 = vrot.lane.b32.xlu0 %v2562, 64
      %v3010 = vpop.permute.xlu0 %3009
      %3011 = vrot.lane.b32.xlu0 %v2563, 64
      %v3012 = vpop.permute.xlu0 %3011
      %3077 = vrot.lane.b32.xlu0 %v2597, 64
      %v3078 = vpop.permute.xlu0 %3077
      %3079 = vrot.lane.b32.xlu0 %v2598, 64
      %v3080 = vpop.permute.xlu0 %3079
      %3081 = vrot.lane.b32.xlu0 %v2599, 64
      %v3082 = vpop.permute.xlu0 %3081
      %3083 = vrot.lane.b32.xlu0 %v2600, 64
      %v3084 = vpop.permute.xlu0 %3083
      %3085 = vrot.lane.b32.xlu0 %v2601, 64
      %v3086 = vpop.permute.xlu0 %3085
      %3087 = vrot.lane.b32.xlu0 %v2602, 64
      %v3088 = vpop.permute.xlu0 %3087
      %3089 = vrot.lane.b32.xlu0 %v2603, 64
      %v3090 = vpop.permute.xlu0 %3089
      %3091 = vrot.lane.b32.xlu0 %v2604, 64
      %v3092 = vpop.permute.xlu0 %3091
      %3093 = vrot.lane.b32.xlu0 %v2605, 64
      %v3094 = vpop.permute.xlu0 %3093
      %3095 = vrot.lane.b32.xlu0 %v2606, 64
      %v3096 = vpop.permute.xlu0 %3095
      %3097 = vrot.lane.b32.xlu0 %v2607, 64
      %v3098 = vpop.permute.xlu0 %3097
      %3099 = vrot.lane.b32.xlu0 %v2608, 64
      %v3100 = vpop.permute.xlu0 %3099
      %3101 = vrot.lane.b32.xlu0 %v2609, 64
      %v3102 = vpop.permute.xlu0 %3101
      %3103 = vrot.lane.b32.xlu0 %v2610, 64
      %v3104 = vpop.permute.xlu0 %3103
      %3105 = vrot.lane.b32.xlu0 %v2611, 64
      %v3106 = vpop.permute.xlu0 %3105
      %3107 = vrot.lane.b32.xlu0 %v2612, 64
      %v3108 = vpop.permute.xlu0 %3107
      %3109 = vrot.lane.b32.xlu0 %v2613, 64
      %v3110 = vpop.permute.xlu0 %3109
      %3111 = vrot.lane.b32.xlu0 %v2614, 64
      %v3112 = vpop.permute.xlu0 %3111
      %3113 = vrot.lane.b32.xlu0 %v2615, 64
      %v3114 = vpop.permute.xlu0 %3113
      %3115 = vrot.lane.b32.xlu0 %v2616, 64
      %v3116 = vpop.permute.xlu0 %3115
      %3117 = vrot.lane.b32.xlu0 %v2617, 64
      %v3118 = vpop.permute.xlu0 %3117
      %3119 = vrot.lane.b32.xlu0 %v2618, 64
      %v3120 = vpop.permute.xlu0 %3119
      %3121 = vrot.lane.b32.xlu0 %v2619, 64
      %v3122 = vpop.permute.xlu0 %3121
      %3123 = vrot.lane.b32.xlu0 %v2620, 64
      %v3124 = vpop.permute.xlu0 %3123
      %3125 = vrot.lane.b32.xlu0 %v2621, 64
      %v3126 = vpop.permute.xlu0 %3125
      %3127 = vrot.lane.b32.xlu0 %v2622, 64
      %v3128 = vpop.permute.xlu0 %3127
      %3129 = vrot.lane.b32.xlu0 %v2623, 64
      %v3130 = vpop.permute.xlu0 %3129
      %3131 = vrot.lane.b32.xlu0 %v2624, 64
      %v3132 = vpop.permute.xlu0 %3131
      %3133 = vrot.lane.b32.xlu0 %v2625, 64
      %v3134 = vpop.permute.xlu0 %3133
      %3135 = vrot.lane.b32.xlu0 %v2626, 64
      %v3136 = vpop.permute.xlu0 %3135
      %3137 = vrot.lane.b32.xlu0 %v2627, 64
      %v3138 = vpop.permute.xlu0 %3137
      %3139 = vrot.lane.b32.xlu0 %v2628, 64
      %v3140 = vpop.permute.xlu0 %3139
      %v3173 = vsel %vm271, %v2372, %v2694
      %v3174 = vsel %vm271, %v2373, %v2696
      %v3175 = vsel %vm271, %v2374, %v2698
      %v3176 = vsel %vm271, %v2375, %v2700
      %v3177 = vsel %vm271, %v2376, %v2702
      %v3178 = vsel %vm271, %v2377, %v2704
      %v3179 = vsel %vm271, %v2378, %v2706
      %v3180 = vsel %vm271, %v2379, %v2708
      %v3181 = vsel %vm271, %v2380, %v2710
      %v3182 = vsel %vm271, %v2381, %v2712
      %v3183 = vsel %vm271, %v2382, %v2714
      %v3184 = vsel %vm271, %v2383, %v2716
      %v3185 = vsel %vm271, %v2384, %v2718
      %v3186 = vsel %vm271, %v2385, %v2720
      %v3187 = vsel %vm271, %v2386, %v2722
      %v3188 = vsel %vm271, %v2387, %v2724
      %v3189 = vsel %vm271, %v2388, %v2726
      %v3190 = vsel %vm271, %v2389, %v2728
      %v3191 = vsel %vm271, %v2390, %v2730
      %v3192 = vsel %vm271, %v2391, %v2732
      %v3193 = vsel %vm271, %v2392, %v2734
      %v3194 = vsel %vm271, %v2393, %v2736
      %v3195 = vsel %vm271, %v2394, %v2738
      %v3196 = vsel %vm271, %v2395, %v2740
      %v3197 = vsel %vm271, %v2396, %v2742
      %v3198 = vsel %vm271, %v2397, %v2744
      %v3199 = vsel %vm271, %v2398, %v2746
      %v3200 = vsel %vm271, %v2399, %v2748
      %v3201 = vsel %vm271, %v2400, %v2750
      %v3202 = vsel %vm271, %v2401, %v2752
      %v3203 = vsel %vm271, %v2402, %v2754
      %v3204 = vsel %vm271, %v2403, %v2756
      %v3205 = vsel %vm271, %v2436, %v2822
      %v3206 = vsel %vm271, %v2437, %v2824
      %v3207 = vsel %vm271, %v2438, %v2826
      %v3208 = vsel %vm271, %v2439, %v2828
      %v3209 = vsel %vm271, %v2440, %v2830
      %v3210 = vsel %vm271, %v2441, %v2832
      %v3211 = vsel %vm271, %v2442, %v2834
      %v3212 = vsel %vm271, %v2443, %v2836
      %v3213 = vsel %vm271, %v2444, %v2838
      %v3214 = vsel %vm271, %v2445, %v2840
      %v3215 = vsel %vm271, %v2446, %v2842
      %v3216 = vsel %vm271, %v2447, %v2844
      %v3217 = vsel %vm271, %v2448, %v2846
      %v3218 = vsel %vm271, %v2449, %v2848
      %v3219 = vsel %vm271, %v2450, %v2850
      %v3220 = vsel %vm271, %v2451, %v2852
      %v3221 = vsel %vm271, %v2452, %v2854
      %v3222 = vsel %vm271, %v2453, %v2856
      %v3223 = vsel %vm271, %v2454, %v2858
      %v3224 = vsel %vm271, %v2455, %v2860
      %v3225 = vsel %vm271, %v2456, %v2862
      %v3226 = vsel %vm271, %v2457, %v2864
      %v3227 = vsel %vm271, %v2458, %v2866
      %v3228 = vsel %vm271, %v2459, %v2868
      %v3229 = vsel %vm271, %v2460, %v2870
      %v3230 = vsel %vm271, %v2461, %v2872
      %v3231 = vsel %vm271, %v2462, %v2874
      %v3232 = vsel %vm271, %v2463, %v2876
      %v3233 = vsel %vm271, %v2464, %v2878
      %v3234 = vsel %vm271, %v2465, %v2880
      %v3235 = vsel %vm271, %v2466, %v2882
      %v3236 = vsel %vm271, %v2467, %v2884
      %v3237 = vsel %vm271, %v2500, %v2950
      %v3238 = vsel %vm271, %v2501, %v2952
      %v3239 = vsel %vm271, %v2502, %v2954
      %v3240 = vsel %vm271, %v2503, %v2956
      %v3241 = vsel %vm271, %v2504, %v2958
      %v3242 = vsel %vm271, %v2505, %v2960
      %v3243 = vsel %vm271, %v2506, %v2962
      %v3244 = vsel %vm271, %v2507, %v2964
      %v3245 = vsel %vm271, %v2508, %v2966
      %v3246 = vsel %vm271, %v2509, %v2968
      %v3247 = vsel %vm271, %v2510, %v2970
      %v3248 = vsel %vm271, %v2511, %v2972
      %v3249 = vsel %vm271, %v2512, %v2974
      %v3250 = vsel %vm271, %v2513, %v2976
      %v3251 = vsel %vm271, %v2514, %v2978
      %v3252 = vsel %vm271, %v2515, %v2980
      %v3253 = vsel %vm271, %v2516, %v2982
      %v3254 = vsel %vm271, %v2517, %v2984
      %v3255 = vsel %vm271, %v2518, %v2986
      %v3256 = vsel %vm271, %v2519, %v2988
      %v3257 = vsel %vm271, %v2520, %v2990
      %v3258 = vsel %vm271, %v2521, %v2992
      %v3259 = vsel %vm271, %v2522, %v2994
      %v3260 = vsel %vm271, %v2523, %v2996
      %v3261 = vsel %vm271, %v2524, %v2998
      %v3262 = vsel %vm271, %v2525, %v3000
      %v3263 = vsel %vm271, %v2526, %v3002
      %v3264 = vsel %vm271, %v2527, %v3004
      %v3265 = vsel %vm271, %v2528, %v3006
      %v3266 = vsel %vm271, %v2529, %v3008
      %v3267 = vsel %vm271, %v2530, %v3010
      %v3268 = vsel %vm271, %v2531, %v3012
      %v3269 = vsel %vm271, %v2565, %v3078
      %v3270 = vsel %vm271, %v2566, %v3080
      %v3271 = vsel %vm271, %v2567, %v3082
      %v3272 = vsel %vm271, %v2568, %v3084
      %v3273 = vsel %vm271, %v2569, %v3086
      %v3274 = vsel %vm271, %v2570, %v3088
      %v3275 = vsel %vm271, %v2571, %v3090
      %v3276 = vsel %vm271, %v2572, %v3092
      %v3277 = vsel %vm271, %v2573, %v3094
      %v3278 = vsel %vm271, %v2574, %v3096
      %v3279 = vsel %vm271, %v2575, %v3098
      %v3280 = vsel %vm271, %v2576, %v3100
      %v3281 = vsel %vm271, %v2577, %v3102
      %v3282 = vsel %vm271, %v2578, %v3104
      %v3283 = vsel %vm271, %v2579, %v3106
      %v3284 = vsel %vm271, %v2580, %v3108
      %v3285 = vsel %vm271, %v2581, %v3110
      %v3286 = vsel %vm271, %v2582, %v3112
      %v3287 = vsel %vm271, %v2583, %v3114
      %v3288 = vsel %vm271, %v2584, %v3116
      %v3289 = vsel %vm271, %v2585, %v3118
      %v3290 = vsel %vm271, %v2586, %v3120
      %v3291 = vsel %vm271, %v2587, %v3122
      %v3292 = vsel %vm271, %v2588, %v3124
      %v3293 = vsel %vm271, %v2589, %v3126
      %v3294 = vsel %vm271, %v2590, %v3128
      %v3295 = vsel %vm271, %v2591, %v3130
      %v3296 = vsel %vm271, %v2592, %v3132
      %v3297 = vsel %vm271, %v2593, %v3134
      %v3298 = vsel %vm271, %v2594, %v3136
      %v3299 = vsel %vm271, %v2595, %v3138
      %v3300 = vsel %vm271, %v2596, %v3140
      %v3301 = vpack.c.bf16 %v3174, %v3173
      %v3302 = vpack.c.bf16 %v3206, %v3205
      %v3303 = vpack.c.bf16 %v3238, %v3237
      %v3304 = vpack.c.bf16 %v3270, %v3269
      %v3305 = vpack.c.bf16 %v2630, %v2629
      %v3306 = vpack.c.bf16 %v3176, %v3175
      %v3307 = vpack.c.bf16 %v3208, %v3207
      %v3308 = vpack.c.bf16 %v3240, %v3239
      %v3309 = vpack.c.bf16 %v3272, %v3271
      %v3310 = vpack.c.bf16 %v2632, %v2631
      %v3311 = vpack.c.bf16 %v3178, %v3177
      %v3312 = vpack.c.bf16 %v3210, %v3209
      %v3313 = vpack.c.bf16 %v3242, %v3241
      %v3314 = vpack.c.bf16 %v3274, %v3273
      %v3315 = vpack.c.bf16 %v2634, %v2633
      %v3316 = vpack.c.bf16 %v3180, %v3179
      %v3317 = vpack.c.bf16 %v3212, %v3211
      %v3318 = vpack.c.bf16 %v3244, %v3243
      %v3319 = vpack.c.bf16 %v3276, %v3275
      %v3320 = vpack.c.bf16 %v2636, %v2635
      %v3321 = vpack.c.bf16 %v3182, %v3181
      %v3322 = vpack.c.bf16 %v3214, %v3213
      %v3323 = vpack.c.bf16 %v3246, %v3245
      %v3324 = vpack.c.bf16 %v3278, %v3277
      %v3325 = vpack.c.bf16 %v2638, %v2637
      %v3326 = vpack.c.bf16 %v3184, %v3183
      %v3327 = vpack.c.bf16 %v3216, %v3215
      %v3328 = vpack.c.bf16 %v3248, %v3247
      %v3329 = vpack.c.bf16 %v3280, %v3279
      %v3330 = vpack.c.bf16 %v2640, %v2639
      %v3331 = vpack.c.bf16 %v3186, %v3185
      %v3332 = vpack.c.bf16 %v3218, %v3217
      %v3333 = vpack.c.bf16 %v3250, %v3249
      %v3334 = vpack.c.bf16 %v3282, %v3281
      %v3335 = vpack.c.bf16 %v2642, %v2641
      %v3336 = vpack.c.bf16 %v3188, %v3187
      %v3337 = vpack.c.bf16 %v3220, %v3219
      %v3338 = vpack.c.bf16 %v3252, %v3251
      %v3339 = vpack.c.bf16 %v3284, %v3283
      %v3340 = vpack.c.bf16 %v2644, %v2643
      %v3341 = vpack.c.bf16 %v3190, %v3189
      %v3342 = vpack.c.bf16 %v3222, %v3221
      %v3343 = vpack.c.bf16 %v3254, %v3253
      %v3344 = vpack.c.bf16 %v3286, %v3285
      %v3345 = vpack.c.bf16 %v2646, %v2645
      %v3346 = vpack.c.bf16 %v3192, %v3191
      %v3347 = vpack.c.bf16 %v3224, %v3223
      %v3348 = vpack.c.bf16 %v3256, %v3255
      %v3349 = vpack.c.bf16 %v3288, %v3287
      %v3350 = vpack.c.bf16 %v2648, %v2647
      %v3351 = vpack.c.bf16 %v3194, %v3193
      %v3352 = vpack.c.bf16 %v3226, %v3225
      %v3353 = vpack.c.bf16 %v3258, %v3257
      %v3354 = vpack.c.bf16 %v3290, %v3289
      %v3355 = vpack.c.bf16 %v2650, %v2649
      %v3356 = vpack.c.bf16 %v3196, %v3195
      %v3357 = vpack.c.bf16 %v3228, %v3227
      %v3358 = vpack.c.bf16 %v3260, %v3259
      %v3359 = vpack.c.bf16 %v3292, %v3291
      %v3360 = vpack.c.bf16 %v2652, %v2651
      %v3361 = vpack.c.bf16 %v3198, %v3197
      %v3362 = vpack.c.bf16 %v3230, %v3229
      %v3363 = vpack.c.bf16 %v3262, %v3261
      %v3364 = vpack.c.bf16 %v3294, %v3293
      %v3365 = vpack.c.bf16 %v2654, %v2653
      %v3366 = vpack.c.bf16 %v3200, %v3199
      %v3367 = vpack.c.bf16 %v3232, %v3231
      %v3368 = vpack.c.bf16 %v3264, %v3263
      %v3369 = vpack.c.bf16 %v3296, %v3295
      %v3370 = vpack.c.bf16 %v2656, %v2655
      %v3371 = vpack.c.bf16 %v3202, %v3201
      %v3372 = vpack.c.bf16 %v3234, %v3233
      %v3373 = vpack.c.bf16 %v3266, %v3265
      %v3374 = vpack.c.bf16 %v3298, %v3297
      %v3375 = vpack.c.bf16 %v2658, %v2657
      %v3376 = vpack.c.bf16 %v3204, %v3203
      %v3377 = vpack.c.bf16 %v3236, %v3235
      %v3378 = vpack.c.bf16 %v3268, %v3267
      %v3379 = vpack.c.bf16 %v3300, %v3299
      %v3380 = vpack.c.bf16 %v2660, %v2659
      %v3381 = vld [vmem:[#allocation4] sm:$0x1]
      %v3383 = vlaneseq
      %v3384 = vshrl.u32 %v3383, 7
      %v3385 = vsub.s32 0, %v3384
      %v3386 = vrot.slane %v3381, %v3385
      %v3460 = vunpack.c.l.b16 %v2300
      %v3461 = vunpack.c.l.b16 %v2301
      %v3462 = vunpack.c.l.b16 %v2302
      %v3463 = vunpack.c.l.b16 %v2303
      %v3464 = vunpack.c.l.b16 %v2304
      %v3465 = vunpack.c.l.b16 %v2305
      %v3466 = vunpack.c.l.b16 %v2306
      %v3467 = vunpack.c.l.b16 %v2307
      %v3468 = vunpack.c.l.b16 %v2308
      %v3469 = vunpack.c.l.b16 %v2309
      %v3470 = vunpack.c.l.b16 %v2310
      %v3471 = vunpack.c.l.b16 %v2311
      %v3472 = vunpack.c.l.b16 %v2312
      %v3473 = vunpack.c.l.b16 %v2313
      %v3474 = vunpack.c.l.b16 %v2314
      %v3475 = vunpack.c.l.b16 %v2315
      %v3476 = vunpack.c.l.b16 %v2316
      %v3477 = vunpack.c.l.b16 %v2317
      %v3478 = vunpack.c.l.b16 %v2318
      %v3479 = vunpack.c.l.b16 %v2319
      %v3480 = vunpack.c.l.b16 %v2320
      %v3481 = vunpack.c.l.b16 %v2321
      %v3482 = vunpack.c.l.b16 %v2322
      %v3483 = vunpack.c.l.b16 %v2323
      %v3484 = vunpack.c.l.b16 %v2324
      %v3485 = vunpack.c.l.b16 %v2325
      %v3486 = vunpack.c.l.b16 %v2326
      %v3487 = vunpack.c.l.b16 %v2327
      %v3488 = vunpack.c.l.b16 %v2328
      %v3489 = vunpack.c.l.b16 %v2329
      %v3490 = vunpack.c.l.b16 %v2330
      %v3491 = vunpack.c.l.b16 %v2331
      %v3492 = vunpack.c.l.b16 %v2332
      %v3493 = vunpack.c.l.b16 %v2333
      %v3494 = vunpack.c.l.b16 %v2334
      %v3495 = vunpack.c.l.b16 %v2335
      %v3496 = vunpack.c.l.b16 %v2336
      %v3497 = vunpack.c.l.b16 %v2337
      %v3498 = vunpack.c.l.b16 %v2338
      %v3499 = vunpack.c.l.b16 %v2339
      %v3500 = vunpack.c.l.b16 %v2340
      %v3501 = vunpack.c.l.b16 %v2341
      %v3502 = vunpack.c.l.b16 %v2342
      %v3503 = vunpack.c.l.b16 %v2343
      %v3504 = vunpack.c.l.b16 %v2344
      %v3505 = vunpack.c.l.b16 %v2345
      %v3506 = vunpack.c.l.b16 %v2346
      %v3507 = vunpack.c.l.b16 %v2347
      %v3508 = vunpack.c.l.b16 %v2348
      %v3509 = vunpack.c.l.b16 %v2349
      %v3510 = vunpack.c.l.b16 %v2350
      %v3511 = vunpack.c.l.b16 %v2351
      %v3512 = vunpack.c.l.b16 %v2352
      %v3513 = vunpack.c.l.b16 %v2353
      %v3514 = vunpack.c.l.b16 %v2354
      %v3515 = vunpack.c.l.b16 %v2355
      %v3516 = vunpack.c.l.b16 %v2356
      %v3517 = vunpack.c.l.b16 %v2357
      %v3518 = vunpack.c.l.b16 %v2358
      %v3519 = vunpack.c.l.b16 %v2359
      %v3520 = vunpack.c.l.b16 %v2360
      %v3521 = vunpack.c.l.b16 %v2361
      %v3522 = vunpack.c.l.b16 %v2362
      %v3523 = vunpack.c.l.b16 %v2363
      %v3524 = vunpack.c.l.b16 %v2364
      %v3525 = vunpack.c.l.b16 %v2365
      %v3526 = vunpack.c.l.b16 %v2366
      %v3527 = vunpack.c.l.b16 %v2367
      %v3528 = vunpack.c.l.b16 %v2368
      %v3529 = vunpack.c.l.b16 %v2369
      %v3530 = vunpack.c.l.b16 %v2370
      %v3531 = vunpack.c.l.b16 %v2371
      %v3532 = vpack.c.b16 %v3461, %v3460
      %v3533 = vpack.c.b16 %v3463, %v3462
      %v3534 = vpack.c.b16 %v3465, %v3464
      %v3535 = vpack.c.b16 %v3467, %v3466
      %v3536 = vpack.c.b16 %v3469, %v3468
      %v3537 = vpack.c.b16 %v3471, %v3470
      %v3538 = vpack.c.b16 %v3473, %v3472
      %v3539 = vpack.c.b16 %v3475, %v3474
      %v3540 = vpack.c.b16 %v3477, %v3476
      %v3541 = vpack.c.b16 %v3479, %v3478
      %v3542 = vpack.c.b16 %v3481, %v3480
      %v3543 = vpack.c.b16 %v3483, %v3482
      %v3544 = vpack.c.b16 %v3485, %v3484
      %v3545 = vpack.c.b16 %v3487, %v3486
      %v3546 = vpack.c.b16 %v3489, %v3488
      %v3547 = vpack.c.b16 %v3491, %v3490
      %v3548 = vpack.c.b16 %v3493, %v3492
      %v3549 = vpack.c.b16 %v3495, %v3494
      %v3550 = vpack.c.b16 %v3497, %v3496
      %v3551 = vpack.c.b16 %v3499, %v3498
      %v3552 = vpack.c.b16 %v3501, %v3500
      %v3553 = vpack.c.b16 %v3503, %v3502
      %v3554 = vpack.c.b16 %v3505, %v3504
      %v3555 = vpack.c.b16 %v3507, %v3506
      %v3556 = vpack.c.b16 %v3509, %v3508
      %v3557 = vpack.c.b16 %v3511, %v3510
      %v3558 = vpack.c.b16 %v3513, %v3512
      %v3559 = vpack.c.b16 %v3515, %v3514
      %v3560 = vpack.c.b16 %v3517, %v3516
      %v3561 = vpack.c.b16 %v3519, %v3518
      %v3562 = vpack.c.b16 %v3521, %v3520
      %v3563 = vpack.c.b16 %v3523, %v3522
      %v3564 = vpack.c.b16 %v3525, %v3524
      %v3565 = vpack.c.b16 %v3527, %v3526
      %v3566 = vpack.c.b16 %v3529, %v3528
      %v3567 = vpack.c.b16 %v3531, %v3530
      %v3605 = vsel %vm271, %v3305, 0
      %v3608 = vsel %vm271, %v3310, 0
      %v3611 = vsel %vm271, %v3315, 0
      %v3614 = vsel %vm271, %v3320, 0
      %v3617 = vsel %vm271, %v3325, 0
      %v3620 = vsel %vm271, %v3330, 0
      %v3623 = vsel %vm271, %v3335, 0
      %v3626 = vsel %vm271, %v3340, 0
      %v3629 = vsel %vm271, %v3345, 0
      %v3632 = vsel %vm271, %v3350, 0
      %v3635 = vsel %vm271, %v3355, 0
      %v3638 = vsel %vm271, %v3360, 0
      %v3641 = vsel %vm271, %v3365, 0
      %v3644 = vsel %vm271, %v3370, 0
      %v3647 = vsel %vm271, %v3375, 0
      %v3650 = vsel %vm271, %v3380, 0
      %3652 = vmatprep.subr.bf16.mxu0 0
      %3653 = vmatpush1.bf16.msra.mxu0 %v3532
      %3654 = vmatprep.subr.bf16.mxu0 0
      %3655 = vmatpush1.bf16.msra.mxu0 %v3533
      %3656 = vmatprep.subr.bf16.mxu0 0
      %3657 = vmatpush1.bf16.msra.mxu0 %v3534
      %3658 = vmatprep.subr.bf16.mxu0 0
      %3659 = vmatpush1.bf16.msra.mxu0 %v3535
      %3660 = vmatprep.subr.bf16.mxu0 0
      %3661 = vmatpush1.bf16.msra.mxu0 %v3536
      %3662 = vmatprep.subr.bf16.mxu0 0
      %3663 = vmatpush1.bf16.msra.mxu0 %v3537
      %3664 = vmatprep.subr.bf16.mxu0 0
      %3665 = vmatpush1.bf16.msra.mxu0 %v3538
      %3666 = vmatprep.subr.bf16.mxu0 0
      %3667 = vmatpush1.bf16.msra.mxu0 %v3539
      %3668 = vmatprep.subr.bf16.mxu0 0
      %3669 = vmatpush1.bf16.msra.mxu0 %v3540
      %3670 = vmatprep.subr.bf16.mxu0 0
      %3671 = vmatpush1.bf16.msra.mxu0 %v3541
      %3672 = vmatprep.subr.bf16.mxu0 0
      %3673 = vmatpush1.bf16.msra.mxu0 %v3542
      %3674 = vmatprep.subr.bf16.mxu0 0
      %3675 = vmatpush1.bf16.msra.mxu0 %v3543
      %3676 = vmatprep.subr.bf16.mxu0 0
      %3677 = vmatpush1.bf16.msra.mxu0 %v3544
      %3678 = vmatprep.subr.bf16.mxu0 0
      %3679 = vmatpush1.bf16.msra.mxu0 %v3545
      %3680 = vmatprep.subr.bf16.mxu0 0
      %3681 = vmatpush1.bf16.msra.mxu0 %v3546
      %3682 = vmatprep.subr.bf16.mxu0 0
      %3683 = vmatpush1.bf16.msra.mxu0 %v3547
      %3684 = vmatprep.mubr.bf16.mxu0 %v3302
      %3685 = vmatmul.mubr.bf16.gmra.mrb[0].mxu0 %v3301
      %v3686 = vpop.f32.mrb[0].mxu0
      %v3687 = vadd.f32 %v3386, %v3686
      %v3688 = vpop.f32.mrb[0].mxu0
      %v3689 = vpop.f32.mrb[0].mxu0
      %v3690 = vadd.f32 %v3386, %v3689
      %v3691 = vpop.f32.mrb[0].mxu0
      %3692 = vmatprep.mubr.bf16.mxu0 %v3307
      %3693 = vmatmul.mubr.bf16.gmra.mrb[0].mxu0 %v3306
      %v3694 = vpop.f32.mrb[0].mxu0
      %v3695 = vadd.f32 %v3386, %v3694
      %v3696 = vpop.f32.mrb[0].mxu0
      %v3697 = vpop.f32.mrb[0].mxu0
      %v3698 = vadd.f32 %v3386, %v3697
      %v3699 = vpop.f32.mrb[0].mxu0
      %3700 = vmatprep.mubr.bf16.mxu0 %v3312
      %3701 = vmatmul.mubr.bf16.gmra.mrb[0].mxu0 %v3311
      %v3702 = vpop.f32.mrb[0].mxu0
      %v3703 = vadd.f32 %v3386, %v3702
      %v3704 = vpop.f32.mrb[0].mxu0
      %v3705 = vpop.f32.mrb[0].mxu0
      %v3706 = vadd.f32 %v3386, %v3705
      %v3707 = vpop.f32.mrb[0].mxu0
      %3708 = vmatprep.mubr.bf16.mxu0 %v3317
      %3709 = vmatmul.mubr.bf16.gmra.mrb[0].mxu0 %v3316
      %v3710 = vpop.f32.mrb[0].mxu0
      %v3711 = vadd.f32 %v3386, %v3710
      %v3712 = vpop.f32.mrb[0].mxu0
      %v3713 = vpop.f32.mrb[0].mxu0
      %v3714 = vadd.f32 %v3386, %v3713
      %v3715 = vpop.f32.mrb[0].mxu0
      %3716 = vmatprep.mubr.bf16.mxu0 %v3322
      %3717 = vmatmul.mubr.bf16.gmra.mrb[0].mxu0 %v3321
      %v3718 = vpop.f32.mrb[0].mxu0
      %v3719 = vadd.f32 %v3386, %v3718
      %v3720 = vpop.f32.mrb[0].mxu0
      %v3721 = vpop.f32.mrb[0].mxu0
      %v3722 = vadd.f32 %v3386, %v3721
      %v3723 = vpop.f32.mrb[0].mxu0
      %3724 = vmatprep.mubr.bf16.mxu0 %v3327
      %3725 = vmatmul.mubr.bf16.gmra.mrb[0].mxu0 %v3326
      %v3726 = vpop.f32.mrb[0].mxu0
      %v3727 = vadd.f32 %v3386, %v3726
      %v3728 = vpop.f32.mrb[0].mxu0
      %v3729 = vpop.f32.mrb[0].mxu0
      %v3730 = vadd.f32 %v3386, %v3729
      %v3731 = vpop.f32.mrb[0].mxu0
      %3732 = vmatprep.mubr.bf16.mxu0 %v3332
      %3733 = vmatmul.mubr.bf16.gmra.mrb[0].mxu0 %v3331
      %v3734 = vpop.f32.mrb[0].mxu0
      %v3735 = vadd.f32 %v3386, %v3734
      %v3736 = vpop.f32.mrb[0].mxu0
      %v3737 = vpop.f32.mrb[0].mxu0
      %v3738 = vadd.f32 %v3386, %v3737
      %v3739 = vpop.f32.mrb[0].mxu0
      %3740 = vmatprep.mubr.bf16.mxu0 %v3337
      %3741 = vmatmul.mubr.bf16.gmra.mrb[0].mxu0 %v3336
      %v3742 = vpop.f32.mrb[0].mxu0
      %v3743 = vadd.f32 %v3386, %v3742
      %v3744 = vpop.f32.mrb[0].mxu0
      %v3745 = vpop.f32.mrb[0].mxu0
      %v3746 = vadd.f32 %v3386, %v3745
      %v3747 = vpop.f32.mrb[0].mxu0
      %3748 = vmatprep.mubr.bf16.mxu0 %v3342
      %3749 = vmatmul.mubr.bf16.gmra.mrb[0].mxu0 %v3341
      %v3750 = vpop.f32.mrb[0].mxu0
      %v3751 = vadd.f32 %v3386, %v3750
      %v3752 = vpop.f32.mrb[0].mxu0
      %v3753 = vpop.f32.mrb[0].mxu0
      %v3754 = vadd.f32 %v3386, %v3753
      %v3755 = vpop.f32.mrb[0].mxu0
      %3756 = vmatprep.mubr.bf16.mxu0 %v3347
      %3757 = vmatmul.mubr.bf16.gmra.mrb[0].mxu0 %v3346
      %v3758 = vpop.f32.mrb[0].mxu0
      %v3759 = vadd.f32 %v3386, %v3758
      %v3760 = vpop.f32.mrb[0].mxu0
      %v3761 = vpop.f32.mrb[0].mxu0
      %v3762 = vadd.f32 %v3386, %v3761
      %v3763 = vpop.f32.mrb[0].mxu0
      %3764 = vmatprep.mubr.bf16.mxu0 %v3352
      %3765 = vmatmul.mubr.bf16.gmra.mrb[0].mxu0 %v3351
      %v3766 = vpop.f32.mrb[0].mxu0
      %v3767 = vadd.f32 %v3386, %v3766
      %v3768 = vpop.f32.mrb[0].mxu0
      %v3769 = vpop.f32.mrb[0].mxu0
      %v3770 = vadd.f32 %v3386, %v3769
      %v3771 = vpop.f32.mrb[0].mxu0
      %3772 = vmatprep.mubr.bf16.mxu0 %v3357
      %3773 = vmatmul.mubr.bf16.gmra.mrb[0].mxu0 %v3356
      %v3774 = vpop.f32.mrb[0].mxu0
      %v3775 = vadd.f32 %v3386, %v3774
      %v3776 = vpop.f32.mrb[0].mxu0
      %v3777 = vpop.f32.mrb[0].mxu0
      %v3778 = vadd.f32 %v3386, %v3777
      %v3779 = vpop.f32.mrb[0].mxu0
      %3780 = vmatprep.mubr.bf16.mxu0 %v3362
      %3781 = vmatmul.mubr.bf16.gmra.mrb[0].mxu0 %v3361
      %v3782 = vpop.f32.mrb[0].mxu0
      %v3783 = vadd.f32 %v3386, %v3782
      %v3784 = vpop.f32.mrb[0].mxu0
      %v3785 = vpop.f32.mrb[0].mxu0
      %v3786 = vadd.f32 %v3386, %v3785
      %v3787 = vpop.f32.mrb[0].mxu0
      %3788 = vmatprep.mubr.bf16.mxu0 %v3367
      %3789 = vmatmul.mubr.bf16.gmra.mrb[0].mxu0 %v3366
      %v3790 = vpop.f32.mrb[0].mxu0
      %v3791 = vadd.f32 %v3386, %v3790
      %v3792 = vpop.f32.mrb[0].mxu0
      %v3793 = vpop.f32.mrb[0].mxu0
      %v3794 = vadd.f32 %v3386, %v3793
      %v3795 = vpop.f32.mrb[0].mxu0
      %3796 = vmatprep.mubr.bf16.mxu0 %v3372
      %3797 = vmatmul.mubr.bf16.gmra.mrb[0].mxu0 %v3371
      %v3798 = vpop.f32.mrb[0].mxu0
      %v3799 = vadd.f32 %v3386, %v3798
      %v3800 = vpop.f32.mrb[0].mxu0
      %v3801 = vpop.f32.mrb[0].mxu0
      %v3802 = vadd.f32 %v3386, %v3801
      %v3803 = vpop.f32.mrb[0].mxu0
      %3804 = vmatprep.mubr.bf16.mxu0 %v3377
      %3805 = vmatmul.mubr.bf16.gmra.mrb[0].mxu0 %v3376
      %v3806 = vpop.f32.mrb[0].mxu0
      %v3807 = vadd.f32 %v3386, %v3806
      %v3808 = vpop.f32.mrb[0].mxu0
      %v3809 = vpop.f32.mrb[0].mxu0
      %v3810 = vadd.f32 %v3386, %v3809
      %v3811 = vpop.f32.mrb[0].mxu0
      %3812 = vdwg.mxu0
      %3813 = vmatprep.subr.bf16.mxu0 0
      %3814 = vmatpush1.bf16.msra.mxu0 %v3548
      %3815 = vmatprep.subr.bf16.mxu0 0
      %3816 = vmatpush1.bf16.msra.mxu0 %v3549
      %3817 = vmatprep.subr.bf16.mxu0 0
      %3818 = vmatpush1.bf16.msra.mxu0 %v3550
      %3819 = vmatprep.subr.bf16.mxu0 0
      %3820 = vmatpush1.bf16.msra.mxu0 %v3551
      %3821 = vmatprep.subr.bf16.mxu0 0
      %3822 = vmatpush1.bf16.msra.mxu0 %v3552
      %3823 = vmatprep.subr.bf16.mxu0 0
      %3824 = vmatpush1.bf16.msra.mxu0 %v3553
      %3825 = vmatprep.subr.bf16.mxu0 0
      %3826 = vmatpush1.bf16.msra.mxu0 %v3554
      %3827 = vmatprep.subr.bf16.mxu0 0
      %3828 = vmatpush1.bf16.msra.mxu0 %v3555
      %3829 = vmatprep.subr.bf16.mxu0 0
      %3830 = vmatpush1.bf16.msra.mxu0 %v3556
      %3831 = vmatprep.subr.bf16.mxu0 0
      %3832 = vmatpush1.bf16.msra.mxu0 %v3557
      %3833 = vmatprep.subr.bf16.mxu0 0
      %3834 = vmatpush1.bf16.msra.mxu0 %v3558
      %3835 = vmatprep.subr.bf16.mxu0 0
      %3836 = vmatpush1.bf16.msra.mxu0 %v3559
      %3837 = vmatprep.subr.bf16.mxu0 0
      %3838 = vmatpush1.bf16.msra.mxu0 %v3560
      %3839 = vmatprep.subr.bf16.mxu0 0
      %3840 = vmatpush1.bf16.msra.mxu0 %v3561
      %3841 = vmatprep.subr.bf16.mxu0 0
      %3842 = vmatpush1.bf16.msra.mxu0 %v3562
      %3843 = vmatprep.subr.bf16.mxu0 0
      %3844 = vmatpush1.bf16.msra.mxu0 %v3563
      %3845 = vmatprep.mubr.bf16.mxu0 %v3304
      %3846 = vmatmul.mubr.bf16.gmra.mrb[0].mxu0 %v3303
      %v3847 = vpop.f32.mrb[0].mxu0
      %v3848 = vadd.f32 %v3687, %v3847
      %v3849 = vpop.f32.mrb[0].mxu0
      %v3850 = vpop.f32.mrb[0].mxu0
      %v3851 = vadd.f32 %v3690, %v3850
      %v3852 = vpop.f32.mrb[0].mxu0
      %3853 = vmatprep.mubr.bf16.mxu0 %v3309
      %3854 = vmatmul.mubr.bf16.gmra.mrb[0].mxu0 %v3308
      %v3855 = vpop.f32.mrb[0].mxu0
      %v3856 = vadd.f32 %v3695, %v3855
      %v3857 = vpop.f32.mrb[0].mxu0
      %v3858 = vpop.f32.mrb[0].mxu0
      %v3859 = vadd.f32 %v3698, %v3858
      %v3860 = vpop.f32.mrb[0].mxu0
      %3861 = vmatprep.mubr.bf16.mxu0 %v3314
      %3862 = vmatmul.mubr.bf16.gmra.mrb[0].mxu0 %v3313
      %v3863 = vpop.f32.mrb[0].mxu0
      %v3864 = vadd.f32 %v3703, %v3863
      %v3865 = vpop.f32.mrb[0].mxu0
      %v3866 = vpop.f32.mrb[0].mxu0
      %v3867 = vadd.f32 %v3706, %v3866
      %v3868 = vpop.f32.mrb[0].mxu0
      %3869 = vmatprep.mubr.bf16.mxu0 %v3319
      %3870 = vmatmul.mubr.bf16.gmra.mrb[0].mxu0 %v3318
      %v3871 = vpop.f32.mrb[0].mxu0
      %v3872 = vadd.f32 %v3711, %v3871
      %v3873 = vpop.f32.mrb[0].mxu0
      %v3874 = vpop.f32.mrb[0].mxu0
      %v3875 = vadd.f32 %v3714, %v3874
      %v3876 = vpop.f32.mrb[0].mxu0
      %3877 = vmatprep.mubr.bf16.mxu0 %v3324
      %3878 = vmatmul.mubr.bf16.gmra.mrb[0].mxu0 %v3323
      %v3879 = vpop.f32.mrb[0].mxu0
      %v3880 = vadd.f32 %v3719, %v3879
      %v3881 = vpop.f32.mrb[0].mxu0
      %v3882 = vpop.f32.mrb[0].mxu0
      %v3883 = vadd.f32 %v3722, %v3882
      %v3884 = vpop.f32.mrb[0].mxu0
      %3885 = vmatprep.mubr.bf16.mxu0 %v3329
      %3886 = vmatmul.mubr.bf16.gmra.mrb[0].mxu0 %v3328
      %v3887 = vpop.f32.mrb[0].mxu0
      %v3888 = vadd.f32 %v3727, %v3887
      %v3889 = vpop.f32.mrb[0].mxu0
      %v3890 = vpop.f32.mrb[0].mxu0
      %v3891 = vadd.f32 %v3730, %v3890
      %v3892 = vpop.f32.mrb[0].mxu0
      %3893 = vmatprep.mubr.bf16.mxu0 %v3334
      %3894 = vmatmul.mubr.bf16.gmra.mrb[0].mxu0 %v3333
      %v3895 = vpop.f32.mrb[0].mxu0
      %v3896 = vadd.f32 %v3735, %v3895
      %v3897 = vpop.f32.mrb[0].mxu0
      %v3898 = vpop.f32.mrb[0].mxu0
      %v3899 = vadd.f32 %v3738, %v3898
      %v3900 = vpop.f32.mrb[0].mxu0
      %3901 = vmatprep.mubr.bf16.mxu0 %v3339
      %3902 = vmatmul.mubr.bf16.gmra.mrb[0].mxu0 %v3338
      %v3903 = vpop.f32.mrb[0].mxu0
      %v3904 = vadd.f32 %v3743, %v3903
      %v3905 = vpop.f32.mrb[0].mxu0
      %v3906 = vpop.f32.mrb[0].mxu0
      %v3907 = vadd.f32 %v3746, %v3906
      %v3908 = vpop.f32.mrb[0].mxu0
      %3909 = vmatprep.mubr.bf16.mxu0 %v3344
      %3910 = vmatmul.mubr.bf16.gmra.mrb[0].mxu0 %v3343
      %v3911 = vpop.f32.mrb[0].mxu0
      %v3912 = vadd.f32 %v3751, %v3911
      %v3913 = vpop.f32.mrb[0].mxu0
      %v3914 = vpop.f32.mrb[0].mxu0
      %v3915 = vadd.f32 %v3754, %v3914
      %v3916 = vpop.f32.mrb[0].mxu0
      %3917 = vmatprep.mubr.bf16.mxu0 %v3349
      %3918 = vmatmul.mubr.bf16.gmra.mrb[0].mxu0 %v3348
      %v3919 = vpop.f32.mrb[0].mxu0
      %v3920 = vadd.f32 %v3759, %v3919
      %v3921 = vpop.f32.mrb[0].mxu0
      %v3922 = vpop.f32.mrb[0].mxu0
      %v3923 = vadd.f32 %v3762, %v3922
      %v3924 = vpop.f32.mrb[0].mxu0
      %3925 = vmatprep.mubr.bf16.mxu0 %v3354
      %3926 = vmatmul.mubr.bf16.gmra.mrb[0].mxu0 %v3353
      %v3927 = vpop.f32.mrb[0].mxu0
      %v3928 = vadd.f32 %v3767, %v3927
      %v3929 = vpop.f32.mrb[0].mxu0
      %v3930 = vpop.f32.mrb[0].mxu0
      %v3931 = vadd.f32 %v3770, %v3930
      %v3932 = vpop.f32.mrb[0].mxu0
      %3933 = vmatprep.mubr.bf16.mxu0 %v3359
      %3934 = vmatmul.mubr.bf16.gmra.mrb[0].mxu0 %v3358
      %v3935 = vpop.f32.mrb[0].mxu0
      %v3936 = vadd.f32 %v3775, %v3935
      %v3937 = vpop.f32.mrb[0].mxu0
      %v3938 = vpop.f32.mrb[0].mxu0
      %v3939 = vadd.f32 %v3778, %v3938
      %v3940 = vpop.f32.mrb[0].mxu0
      %3941 = vmatprep.mubr.bf16.mxu0 %v3364
      %3942 = vmatmul.mubr.bf16.gmra.mrb[0].mxu0 %v3363
      %v3943 = vpop.f32.mrb[0].mxu0
      %v3944 = vadd.f32 %v3783, %v3943
      %v3945 = vpop.f32.mrb[0].mxu0
      %v3946 = vpop.f32.mrb[0].mxu0
      %v3947 = vadd.f32 %v3786, %v3946
      %v3948 = vpop.f32.mrb[0].mxu0
      %3949 = vmatprep.mubr.bf16.mxu0 %v3369
      %3950 = vmatmul.mubr.bf16.gmra.mrb[0].mxu0 %v3368
      %v3951 = vpop.f32.mrb[0].mxu0
      %v3952 = vadd.f32 %v3791, %v3951
      %v3953 = vpop.f32.mrb[0].mxu0
      %v3954 = vpop.f32.mrb[0].mxu0
      %v3955 = vadd.f32 %v3794, %v3954
      %v3956 = vpop.f32.mrb[0].mxu0
      %3957 = vmatprep.mubr.bf16.mxu0 %v3374
      %3958 = vmatmul.mubr.bf16.gmra.mrb[0].mxu0 %v3373
      %v3959 = vpop.f32.mrb[0].mxu0
      %v3960 = vadd.f32 %v3799, %v3959
      %v3961 = vpop.f32.mrb[0].mxu0
      %v3962 = vpop.f32.mrb[0].mxu0
      %v3963 = vadd.f32 %v3802, %v3962
      %v3964 = vpop.f32.mrb[0].mxu0
      %3965 = vmatprep.mubr.bf16.mxu0 %v3379
      %3966 = vmatmul.mubr.bf16.gmra.mrb[0].mxu0 %v3378
      %v3967 = vpop.f32.mrb[0].mxu0
      %v3968 = vadd.f32 %v3807, %v3967
      %v3969 = vpop.f32.mrb[0].mxu0
      %v3970 = vpop.f32.mrb[0].mxu0
      %v3971 = vadd.f32 %v3810, %v3970
      %v3972 = vpop.f32.mrb[0].mxu0
      %3973 = vdwg.mxu0
      %3974 = vmatprep.subr.bf16.mxu0 0
      %3975 = vmatpush1.bf16.msra.mxu0 %v3564
      %3976 = vmatprep.subr.bf16.mxu0 0
      %3977 = vmatpush1.bf16.msra.mxu0 %v3565
      %3978 = vmatprep.subr.bf16.mxu0 0
      %3979 = vmatpush1.bf16.msra.mxu0 %v3566
      %3980 = vmatprep.subr.bf16.mxu0 0
      %3981 = vmatpush1.bf16.msra.mxu0 %v3567
      %3982 = vmatprep.subr.bf16.mxu0 0
      %3983 = vmatpush1.bf16.msra.mxu0 0
      %3984 = vmatprep.subr.bf16.mxu0 0
      %3985 = vmatpush1.bf16.msra.mxu0 0
      %3986 = vmatprep.subr.bf16.mxu0 0
      %3987 = vmatpush1.bf16.msra.mxu0 0
      %3988 = vmatprep.subr.bf16.mxu0 0
      %3989 = vmatpush1.bf16.msra.mxu0 0
      %3990 = vmatprep.subr.bf16.mxu0 0
      %3991 = vmatpush1.bf16.msra.mxu0 0
      %3992 = vmatprep.subr.bf16.mxu0 0
      %3993 = vmatpush1.bf16.msra.mxu0 0
      %3994 = vmatprep.subr.bf16.mxu0 0
      %3995 = vmatpush1.bf16.msra.mxu0 0
      %3996 = vmatprep.subr.bf16.mxu0 0
      %3997 = vmatpush1.bf16.msra.mxu0 0
      %3998 = vmatprep.subr.bf16.mxu0 0
      %3999 = vmatpush1.bf16.msra.mxu0 0
      %4000 = vmatprep.subr.bf16.mxu0 0
      %4001 = vmatpush1.bf16.msra.mxu0 0
      %4002 = vmatprep.subr.bf16.mxu0 0
      %4003 = vmatpush1.bf16.msra.mxu0 0
      %4004 = vmatprep.subr.bf16.mxu0 0
      %4005 = vmatpush1.bf16.msra.mxu0 0
      %4006 = vmatprep.mubr.bf16.mxu0 0
      %4007 = vmatmul.mubr.bf16.gmra.mrb[0].mxu0 %v3605
      %v4008 = vpop.f32.mrb[0].mxu0
      %v4009 = vadd.f32 %v3848, %v4008
      %v4010 = vpop.f32.mrb[0].mxu0
      %v4011 = vpop.f32.mrb[0].mxu0
      %v4012 = vadd.f32 %v3851, %v4011
      %v4013 = vpop.f32.mrb[0].mxu0
      %4014 = vmatprep.mubr.bf16.mxu0 0
      %4015 = vmatmul.mubr.bf16.gmra.mrb[0].mxu0 %v3608
      %v4016 = vpop.f32.mrb[0].mxu0
      %v4017 = vadd.f32 %v3856, %v4016
      %v4018 = vpop.f32.mrb[0].mxu0
      %v4019 = vpop.f32.mrb[0].mxu0
      %v4020 = vadd.f32 %v3859, %v4019
      %v4021 = vpop.f32.mrb[0].mxu0
      %4022 = vmatprep.mubr.bf16.mxu0 0
      %4023 = vmatmul.mubr.bf16.gmra.mrb[0].mxu0 %v3611
      %v4024 = vpop.f32.mrb[0].mxu0
      %v4025 = vadd.f32 %v3864, %v4024
      %v4026 = vpop.f32.mrb[0].mxu0
      %v4027 = vpop.f32.mrb[0].mxu0
      %v4028 = vadd.f32 %v3867, %v4027
      %v4029 = vpop.f32.mrb[0].mxu0
      %4030 = vmatprep.mubr.bf16.mxu0 0
      %4031 = vmatmul.mubr.bf16.gmra.mrb[0].mxu0 %v3614
      %v4032 = vpop.f32.mrb[0].mxu0
      %v4033 = vadd.f32 %v3872, %v4032
      %v4034 = vpop.f32.mrb[0].mxu0
      %v4035 = vpop.f32.mrb[0].mxu0
      %v4036 = vadd.f32 %v3875, %v4035
      %v4037 = vpop.f32.mrb[0].mxu0
      %4038 = vmatprep.mubr.bf16.mxu0 0
      %4039 = vmatmul.mubr.bf16.gmra.mrb[0].mxu0 %v3617
      %v4040 = vpop.f32.mrb[0].mxu0
      %v4041 = vadd.f32 %v3880, %v4040
      %v4042 = vpop.f32.mrb[0].mxu0
      %v4043 = vpop.f32.mrb[0].mxu0
      %v4044 = vadd.f32 %v3883, %v4043
      %v4045 = vpop.f32.mrb[0].mxu0
      %4046 = vmatprep.mubr.bf16.mxu0 0
      %4047 = vmatmul.mubr.bf16.gmra.mrb[0].mxu0 %v3620
      %v4048 = vpop.f32.mrb[0].mxu0
      %v4049 = vadd.f32 %v3888, %v4048
      %v4050 = vpop.f32.mrb[0].mxu0
      %v4051 = vpop.f32.mrb[0].mxu0
      %v4052 = vadd.f32 %v3891, %v4051
      %v4053 = vpop.f32.mrb[0].mxu0
      %4054 = vmatprep.mubr.bf16.mxu0 0
      %4055 = vmatmul.mubr.bf16.gmra.mrb[0].mxu0 %v3623
      %v4056 = vpop.f32.mrb[0].mxu0
      %v4057 = vadd.f32 %v3896, %v4056
      %v4058 = vpop.f32.mrb[0].mxu0
      %v4059 = vpop.f32.mrb[0].mxu0
      %v4060 = vadd.f32 %v3899, %v4059
      %v4061 = vpop.f32.mrb[0].mxu0
      %4062 = vmatprep.mubr.bf16.mxu0 0
      %4063 = vmatmul.mubr.bf16.gmra.mrb[0].mxu0 %v3626
      %v4064 = vpop.f32.mrb[0].mxu0
      %v4065 = vadd.f32 %v3904, %v4064
      %v4066 = vpop.f32.mrb[0].mxu0
      %v4067 = vpop.f32.mrb[0].mxu0
      %v4068 = vadd.f32 %v3907, %v4067
      %v4069 = vpop.f32.mrb[0].mxu0
      %4070 = vmatprep.mubr.bf16.mxu0 0
      %4071 = vmatmul.mubr.bf16.gmra.mrb[0].mxu0 %v3629
      %v4072 = vpop.f32.mrb[0].mxu0
      %v4073 = vadd.f32 %v3912, %v4072
      %v4074 = vpop.f32.mrb[0].mxu0
      %v4075 = vpop.f32.mrb[0].mxu0
      %v4076 = vadd.f32 %v3915, %v4075
      %v4077 = vpop.f32.mrb[0].mxu0
      %4078 = vmatprep.mubr.bf16.mxu0 0
      %4079 = vmatmul.mubr.bf16.gmra.mrb[0].mxu0 %v3632
      %v4080 = vpop.f32.mrb[0].mxu0
      %v4081 = vadd.f32 %v3920, %v4080
      %v4082 = vpop.f32.mrb[0].mxu0
      %v4083 = vpop.f32.mrb[0].mxu0
      %v4084 = vadd.f32 %v3923, %v4083
      %v4085 = vpop.f32.mrb[0].mxu0
      %4086 = vmatprep.mubr.bf16.mxu0 0
      %4087 = vmatmul.mubr.bf16.gmra.mrb[0].mxu0 %v3635
      %v4088 = vpop.f32.mrb[0].mxu0
      %v4089 = vadd.f32 %v3928, %v4088
      %v4090 = vpop.f32.mrb[0].mxu0
      %v4091 = vpop.f32.mrb[0].mxu0
      %v4092 = vadd.f32 %v3931, %v4091
      %v4093 = vpop.f32.mrb[0].mxu0
      %4094 = vmatprep.mubr.bf16.mxu0 0
      %4095 = vmatmul.mubr.bf16.gmra.mrb[0].mxu0 %v3638
      %v4096 = vpop.f32.mrb[0].mxu0
      %v4097 = vadd.f32 %v3936, %v4096
      %v4098 = vpop.f32.mrb[0].mxu0
      %v4099 = vpop.f32.mrb[0].mxu0
      %v4100 = vadd.f32 %v3939, %v4099
      %v4101 = vpop.f32.mrb[0].mxu0
      %4102 = vmatprep.mubr.bf16.mxu0 0
      %4103 = vmatmul.mubr.bf16.gmra.mrb[0].mxu0 %v3641
      %v4104 = vpop.f32.mrb[0].mxu0
      %v4105 = vadd.f32 %v3944, %v4104
      %v4106 = vpop.f32.mrb[0].mxu0
      %v4107 = vpop.f32.mrb[0].mxu0
      %v4108 = vadd.f32 %v3947, %v4107
      %v4109 = vpop.f32.mrb[0].mxu0
      %4110 = vmatprep.mubr.bf16.mxu0 0
      %4111 = vmatmul.mubr.bf16.gmra.mrb[0].mxu0 %v3644
      %v4112 = vpop.f32.mrb[0].mxu0
      %v4113 = vadd.f32 %v3952, %v4112
      %v4114 = vpop.f32.mrb[0].mxu0
      %v4115 = vpop.f32.mrb[0].mxu0
      %v4116 = vadd.f32 %v3955, %v4115
      %v4117 = vpop.f32.mrb[0].mxu0
      %4118 = vmatprep.mubr.bf16.mxu0 0
      %4119 = vmatmul.mubr.bf16.gmra.mrb[0].mxu0 %v3647
      %v4120 = vpop.f32.mrb[0].mxu0
      %v4121 = vadd.f32 %v3960, %v4120
      %v4122 = vpop.f32.mrb[0].mxu0
      %v4123 = vpop.f32.mrb[0].mxu0
      %v4124 = vadd.f32 %v3963, %v4123
      %v4125 = vpop.f32.mrb[0].mxu0
      %4126 = vmatprep.mubr.bf16.mxu0 0
      %4127 = vmatmul.mubr.bf16.gmra.mrb[0].mxu0 %v3650
      %v4128 = vpop.f32.mrb[0].mxu0
      %v4129 = vadd.f32 %v3968, %v4128
      %v4130 = vpop.f32.mrb[0].mxu0
      %v4131 = vpop.f32.mrb[0].mxu0
      %v4132 = vadd.f32 %v3971, %v4131
      %v4133 = vpop.f32.mrb[0].mxu0
      %4134 = vdwg.mxu0
      %vm4135 = vcmask 7168
      %4136 = vst.msk [vmem:[%s226] sm:$0xff] %vm4135, %v4009
      %4137 = vst.msk [vmem:[%s226 + $0x8] sm:$0xff] %vm4135, %v4012
      %4138 = vst.msk [vmem:[%s226 + $0x10] sm:$0xff] %vm4135, %v4017
      %4139 = vst.msk [vmem:[%s226 + $0x18] sm:$0xff] %vm4135, %v4020
      %4140 = vst.msk [vmem:[%s226 + $0x20] sm:$0xff] %vm4135, %v4025
      %4141 = vst.msk [vmem:[%s226 + $0x28] sm:$0xff] %vm4135, %v4028
      %4142 = vst.msk [vmem:[%s226 + $0x30] sm:$0xff] %vm4135, %v4033
      %4143 = vst.msk [vmem:[%s226 + $0x38] sm:$0xff] %vm4135, %v4036
      %4144 = vst.msk [vmem:[%s226 + $0x40] sm:$0xff] %vm4135, %v4041
      %4145 = vst.msk [vmem:[%s226 + $0x48] sm:$0xff] %vm4135, %v4044
      %4146 = vst.msk [vmem:[%s226 + $0x50] sm:$0xff] %vm4135, %v4049
      %4147 = vst.msk [vmem:[%s226 + $0x58] sm:$0xff] %vm4135, %v4052
      %4148 = vst.msk [vmem:[%s226 + $0x60] sm:$0xff] %vm4135, %v4057
      %4149 = vst.msk [vmem:[%s226 + $0x68] sm:$0xff] %vm4135, %v4060
      %4150 = vst.msk [vmem:[%s226 + $0x70] sm:$0xff] %vm4135, %v4065
      %4151 = vst.msk [vmem:[%s226 + $0x78] sm:$0xff] %vm4135, %v4068
      %4152 = vst.msk [vmem:[%s226 + $0x80] sm:$0xff] %vm4135, %v4073
      %4153 = vst.msk [vmem:[%s226 + $0x88] sm:$0xff] %vm4135, %v4076
      %4154 = vst.msk [vmem:[%s226 + $0x90] sm:$0xff] %vm4135, %v4081
      %4155 = vst.msk [vmem:[%s226 + $0x98] sm:$0xff] %vm4135, %v4084
      %4156 = vst.msk [vmem:[%s226 + $0xa0] sm:$0xff] %vm4135, %v4089
      %4157 = vst.msk [vmem:[%s226 + $0xa8] sm:$0xff] %vm4135, %v4092
      %4158 = vst.msk [vmem:[%s226 + $0xb0] sm:$0xff] %vm4135, %v4097
      %4159 = vst.msk [vmem:[%s226 + $0xb8] sm:$0xff] %vm4135, %v4100
      %4160 = vst.msk [vmem:[%s226 + $0xc0] sm:$0xff] %vm4135, %v4105
      %4161 = vst.msk [vmem:[%s226 + $0xc8] sm:$0xff] %vm4135, %v4108
      %4162 = vst.msk [vmem:[%s226 + $0xd0] sm:$0xff] %vm4135, %v4113
      %4163 = vst.msk [vmem:[%s226 + $0xd8] sm:$0xff] %vm4135, %v4116
      %4164 = vst.msk [vmem:[%s226 + $0xe0] sm:$0xff] %vm4135, %v4121
      %4165 = vst.msk [vmem:[%s226 + $0xe8] sm:$0xff] %vm4135, %v4124
      %4166 = vst.msk [vmem:[%s226 + $0xf0] sm:$0xff] %vm4135, %v4129
      %4167 = vst.msk [vmem:[%s226 + $0xf8] sm:$0xff] %vm4135, %v4132
      %p4168 = scmp.lt.s32.totalorder %s18, 1
      %s4169 = scalar_select %p4168, %s18, 1
      %s4170 = smul.addr %s4169, 32
      %s4171 = smul.addr %s4170, 8
      %s4172 = scalar_lea.vmem %s5, %s4171
      // Predicated region
      $region41: #{twolayersnetsd_forward.1} parent=39 // pred_check
        %p4173 = pneg %p146
      $region42: #{twolayersnetsd_forward.1} parent=39 // pred_check_branch
        %4175 = sbr.rel (%p4173) target = $region44
      $region43: #{twolayersnetsd_forward.1} parent=39 // pred_region
        _
      $region44: #{twolayersnetsd_forward.1} parent=39 // pred_fallthru
        _
    $region40: #{twolayersnetsd_forward.1} parent=5 // pred_fallthru
      _
    %p4176 = scmp.le.s32.totalorder 2, %s13
    // Predicated region
    $region45: #{twolayersnetsd_forward.1} parent=5 // pred_check
      %p4177 = pneg %p4176
    $region46: #{twolayersnetsd_forward.1} parent=5 // pred_check_branch
      %4179 = sbr.rel (%p4177) target = $region48
    $region47: #{twolayersnetsd_forward.1} parent=5 // pred_region
      %s4180 = ssub.s32 %s13, 2
      // Predicated region
      $region49: #{twolayersnetsd_forward.1} parent=47 // pred_check
        %p4181 = pneg %p152
      $region50: #{twolayersnetsd_forward.1} parent=47 // pred_check_branch
        %4183 = sbr.rel (%p4181) target = $region52
      $region51: #{twolayersnetsd_forward.1} parent=47 // pred_region
        %p4184 = scmp.lt.s32.totalorder %s19, 1
        %s4185 = scalar_select %p4184, %s19, 1
        %s4186 = smul.addr %s4185, 32
        %s4187 = smul.addr %s4186, 8
        %s4188 = scalar_lea.vmem %s5, %s4187
      $region52: #{twolayersnetsd_forward.1} parent=47 // pred_fallthru
        _
    $region48: #{twolayersnetsd_forward.1} parent=5 // pred_fallthru
      _
  $region6: #{twolayersnetsd_forward.1} parent=0 // loop_footer
    %s17 = sadd.s32 1, %s13
  $region7: #{twolayersnetsd_forward.1} parent=0 // loop_footer_branch
    %12 = sbr.rel target = $region3
  $region8: #{twolayersnetsd_forward.1} parent=0 // loop_exit
    _

</llo_original>
